<compile_context>
chip_gen: v6e
topology: v6e:2x2x1
jax: 0.10.0
libtpu: 0.0.40
codegen_flags: <defaults>
</compile_context>

<pallas_src>
import math
import functools

import jax
import jax.numpy as jnp
from jax import lax
from jax.experimental import pallas as pl
from jax.experimental.pallas import tpu as pltpu

_INV_SQRT2 = 1.0 / math.sqrt(2.0)


def _pollute_linear_kernel(x_ref, w1_ref, b1_ref, w2_ref, b2_ref, out_ref, *, eps):
    """One tile of tokens.

    x_ref:   (TM, D_in)  token tile
    w1_ref:  (D_in, H)   dense weight (pre-transposed), grid-invariant
    b1_ref:  (1, H)      dense bias
    w2_ref:  (1, H)      gamma-folded decoder weight  (gamma * decoder.weight)
    b2_ref:  (1, 1)      beta-folded decoder bias     (beta . decoder.weight + decoder.bias)
    out_ref: (1, TM)     lane-dense per-token scalars
    """
    x = x_ref[...]

    # dense: x @ W1 + b1 -> (TM, H), f32 accumulation on the MXU.
    h = jnp.dot(x, w1_ref[...], preferred_element_type=jnp.float32) + b1_ref[...]

    # erf-form gelu (matches the torch reference exactly).
    h = h * 0.5 * (1.0 + lax.erf(h * _INV_SQRT2))

    # LayerNorm statistics over the hidden dim (two-pass for parity with torch).
    mu = jnp.mean(h, axis=-1, keepdims=True)          # (TM, 1)
    xc = h - mu                                        # (TM, H)
    var = jnp.mean(xc * xc, axis=-1)                   # (TM,)
    inv = lax.rsqrt(var + eps)                         # (TM,)

    # Folded LayerNorm-affine + decoder:
    #   LN(h) @ w2^T + b2 == ((h - mu) * inv) . (gamma * w2) + (beta . w2 + b2)
    # Elementwise multiply + cross-lane row reduction instead of a
    # [TM, H] x [H, 1] matmul that would only use one MXU column.
    s = jnp.sum(xc * w2_ref[...], axis=-1)             # (TM,)
    out = (s * inv).reshape(1, -1) + b2_ref[...]       # (1, TM), lane-dense
    out_ref[...] = out.astype(out_ref.dtype)


def pollute_linear(x, w1, b1, gamma, beta, w2, b2, *, eps=1e-12, tile_m=256):
    """x: [..., D_in]; weights in PyTorch layout:
       w1: (H, D_in), b1: (H,), gamma/beta: (H,), w2: (1, H), b2: (1,).
       Returns [..., 1]."""
    orig_shape = x.shape
    d_in = orig_shape[-1]
    h = w1.shape[0]

    x2 = x.reshape(-1, d_in)
    n = x2.shape[0]
    n_pad = pl.cdiv(n, tile_m) * tile_m
    if n_pad != n:
        # Pad tokens instead of asserting divisibility; padded (all-zero) rows
        # produce finite garbage and are sliced away after the call.
        x2 = jnp.pad(x2, ((0, n_pad - n), (0, 0)))

    # Wrapper-side parameter prep (negligible, one-time):
    w1_t = w1.T                                                       # (D_in, H)
    b1_r = b1.reshape(1, h)                                           # (1, H)
    w2_flat = w2.reshape(h)
    w2_eff = (gamma * w2_flat).reshape(1, h)                          # gamma folded
    b2_eff = (jnp.dot(beta, w2_flat) + b2.reshape(())).reshape(1, 1)  # beta folded

    grid = (n_pad // tile_m,)
    kernel = functools.partial(_pollute_linear_kernel, eps=eps)

    # VMEM budget: x tile double-buffered + resident params (also double-
    # buffered by default).  Cap at 64 MiB so the limit is valid on v7x too.
    # NOTE: grid-invariant operands could use pipeline_mode=pl.Buffered(1) to
    # drop their second buffer on VMEM-tight chips; skipped here for safety.
    itemsize = jnp.dtype(x.dtype).itemsize
    w_itemsize = jnp.dtype(w1.dtype).itemsize
    vmem_need = (2 * tile_m * d_in * itemsize            # x tiles
                 + 2 * tile_m * itemsize                 # out tiles
                 + 2 * (d_in * h + 2 * h + 1) * w_itemsize)
    vmem_limit = int(min(max(32 * 1024 * 1024, 2 * vmem_need), 64 * 1024 * 1024))

    out = pl.pallas_call(
        kernel,
        out_shape=jax.ShapeDtypeStruct((1, n_pad), x.dtype),
        grid_spec=pltpu.PrefetchScalarGridSpec(
            num_scalar_prefetch=0,
            grid=grid,
            in_specs=[
                pl.BlockSpec((tile_m, d_in), lambda i: (i, 0)),   # x tile
                pl.BlockSpec((d_in, h), lambda i: (0, 0)),        # W1^T (resident)
                pl.BlockSpec((1, h), lambda i: (0, 0)),           # b1
                pl.BlockSpec((1, h), lambda i: (0, 0)),           # gamma * w2
                pl.BlockSpec((1, 1), lambda i: (0, 0)),           # beta.w2 + b2
            ],
            out_specs=pl.BlockSpec((1, tile_m), lambda i: (0, i)),  # lane-dense
        ),
        compiler_params=pltpu.CompilerParams(
            dimension_semantics=("parallel",),
            vmem_limit_bytes=vmem_limit),
    )(x2, w1_t, b1_r, w2_eff, b2_eff)

    out = out.reshape(n_pad)[:n]
    return out.reshape(*orig_shape[:-1], 1)


def _reference(x, w1, b1, gamma, beta, w2, b2, eps=1e-12):
    h = x @ w1.T + b1
    h = h * 0.5 * (1.0 + lax.erf(h / math.sqrt(2.0)))
    mu = h.mean(-1, keepdims=True)
    var = ((h - mu) ** 2).mean(-1, keepdims=True)
    ln = (h - mu) / jnp.sqrt(var + eps) * gamma + beta
    return ln @ w2.T + b2


if __name__ == "__main__":
    # Small shapes consistent with the module; 300 tokens exercises both the
    # padding path (300 -> 512) and a 2-step parallel grid.
    B, S, D_IN, H = 3, 100, 32, 128
    key = jax.random.PRNGKey(0)
    k = jax.random.split(key, 7)

    x = jax.random.normal(k[0], (B, S, D_IN), dtype=jnp.float32)

    # Deterministic parameter init (PyTorch Linear-style uniform fan-in bounds),
    # with non-trivial gamma/beta so the affine folding is actually exercised.
    bound1 = 1.0 / math.sqrt(D_IN)
    w1 = jax.random.uniform(k[1], (H, D_IN), jnp.float32, -bound1, bound1)   # dense.weight
    b1 = jax.random.uniform(k[2], (H,), jnp.float32, -bound1, bound1)        # dense.bias
    gamma = 1.0 + 0.1 * jax.random.normal(k[3], (H,), jnp.float32)           # LayerNorm.weight
    beta = 0.1 * jax.random.normal(k[4], (H,), jnp.float32)                  # LayerNorm.bias
    bound2 = 1.0 / math.sqrt(H)
    w2 = jax.random.uniform(k[5], (1, H), jnp.float32, -bound2, bound2)      # decoder.weight
    b2 = jax.random.uniform(k[6], (1,), jnp.float32, -bound2, bound2)        # decoder.bias

    out = pollute_linear(x, w1, b1, gamma, beta, w2, b2)
    out = jax.block_until_ready(out)

    ref = _reference(x, w1, b1, gamma, beta, w2, b2)
    assert out.shape == (B, S, 1), out.shape
    assert jnp.allclose(out, ref, atol=2e-5, rtol=2e-5), (
        "mismatch vs JAX reference, max abs err = "
        + str(float(jnp.max(jnp.abs(out - ref)))))

    print("KERNEL_OK")
</pallas_src>

<mosaic_0001>
module attributes {stable_mosaic.version = 11 : i64} {
  func.func @_pollute_linear_kernel(%arg0: i32, %arg1: memref<256x32xf32, #tpu.memory_space<vmem>>, %arg2: memref<32x128xf32, #tpu.memory_space<vmem>>, %arg3: memref<1x128xf32, #tpu.memory_space<vmem>>, %arg4: memref<1x128xf32, #tpu.memory_space<vmem>>, %arg5: memref<1x1xf32, #tpu.memory_space<vmem>>, %arg6: memref<1x256xf32, #tpu.memory_space<vmem>>) attributes {dimension_semantics = [#tpu.dimension_semantics<parallel>], iteration_bounds = array<i64: 2>, scalar_prefetch = 0 : i64, scratch_operands = 0 : i64, tpu.core_type = #tpu.core_type<tc>, window_params = [{transform_indices = @transform_0, window_bounds = array<i64: 256, 32>}, {pipeline_mode = #tpu.pipeline_mode<synchronous>, transform_indices = @transform_1, window_bounds = array<i64: 32, 128>}, {pipeline_mode = #tpu.pipeline_mode<synchronous>, transform_indices = @transform_2, window_bounds = array<i64: 1, 128>}, {pipeline_mode = #tpu.pipeline_mode<synchronous>, transform_indices = @transform_3, window_bounds = array<i64: 1, 128>}, {pipeline_mode = #tpu.pipeline_mode<synchronous>, transform_indices = @transform_4, window_bounds = array<i64: 1, 1>}, {transform_indices = @transform_5, window_bounds = array<i64: 1, 256>}]} {
    %c0 = arith.constant 0 : index
    %c0_0 = arith.constant 0 : index
    %0 = vector.load %arg1[%c0, %c0_0] : memref<256x32xf32, #tpu.memory_space<vmem>>, vector<256x32xf32>
    %c0_1 = arith.constant 0 : index
    %c0_2 = arith.constant 0 : index
    %1 = vector.load %arg2[%c0_1, %c0_2] : memref<32x128xf32, #tpu.memory_space<vmem>>, vector<32x128xf32>
    %cst = arith.constant dense<0.000000e+00> : vector<256x128xf32>
    %2 = tpu.matmul %0, %1, %cst {dimension_numbers = #tpu.dot_dimension_numbers<[1], [0], [0], [1], [0, 0, 1, 1], [], []>} : vector<256x32xf32>, vector<32x128xf32>, vector<256x128xf32> -> vector<256x128xf32>
    %c0_3 = arith.constant 0 : index
    %c0_4 = arith.constant 0 : index
    %3 = vector.load %arg3[%c0_3, %c0_4] : memref<1x128xf32, #tpu.memory_space<vmem>>, vector<1x128xf32>
    %4 = vector.broadcast %3 : vector<1x128xf32> to vector<256x128xf32>
    %5 = arith.addf %2, %4 : vector<256x128xf32>
    %cst_5 = arith.constant 5.000000e-01 : f32
    %6 = vector.broadcast %cst_5 : f32 to vector<256x128xf32>
    %7 = arith.mulf %5, %6 : vector<256x128xf32>
    %cst_6 = arith.constant 0.707106769 : f32
    %8 = vector.broadcast %cst_6 : f32 to vector<256x128xf32>
    %9 = arith.mulf %5, %8 : vector<256x128xf32>
    %10 = math.erf %9 : vector<256x128xf32>
    %cst_7 = arith.constant 1.000000e+00 : f32
    %11 = vector.broadcast %cst_7 : f32 to vector<256x128xf32>
    %12 = arith.addf %11, %10 : vector<256x128xf32>
    %13 = arith.mulf %7, %12 : vector<256x128xf32>
    %cst_8 = arith.constant dense<0.000000e+00> : vector<256xf32>
    %14 = vector.multi_reduction <add>, %13, %cst_8 [1] : vector<256x128xf32> to vector<256xf32>
    %15 = vector.shape_cast %14 : vector<256xf32> to vector<256x1xf32>
    %cst_9 = arith.constant 1.280000e+02 : f32
    %16 = vector.broadcast %cst_9 : f32 to vector<256x1xf32>
    %17 = arith.divf %15, %16 : vector<256x1xf32>
    %18 = vector.broadcast %17 : vector<256x1xf32> to vector<256x128xf32>
    %19 = arith.subf %13, %18 : vector<256x128xf32>
    %20 = arith.mulf %19, %19 : vector<256x128xf32>
    %cst_10 = arith.constant dense<0.000000e+00> : vector<256xf32>
    %21 = vector.multi_reduction <add>, %20, %cst_10 [1] : vector<256x128xf32> to vector<256xf32>
    %cst_11 = arith.constant 1.280000e+02 : f32
    %22 = vector.broadcast %cst_11 : f32 to vector<256xf32>
    %23 = arith.divf %21, %22 : vector<256xf32>
    %cst_12 = arith.constant 9.99999996E-13 : f32
    %24 = vector.broadcast %cst_12 : f32 to vector<256xf32>
    %25 = arith.addf %23, %24 : vector<256xf32>
    %26 = math.rsqrt %25 : vector<256xf32>
    %c0_13 = arith.constant 0 : index
    %c0_14 = arith.constant 0 : index
    %27 = vector.load %arg4[%c0_13, %c0_14] : memref<1x128xf32, #tpu.memory_space<vmem>>, vector<1x128xf32>
    %28 = vector.broadcast %27 : vector<1x128xf32> to vector<256x128xf32>
    %29 = arith.mulf %19, %28 : vector<256x128xf32>
    %cst_15 = arith.constant dense<0.000000e+00> : vector<256xf32>
    %30 = vector.multi_reduction <add>, %29, %cst_15 [1] : vector<256x128xf32> to vector<256xf32>
    %31 = arith.mulf %30, %26 : vector<256xf32>
    %32 = vector.shape_cast %31 : vector<256xf32> to vector<1x256xf32>
    %c0_16 = arith.constant 0 : index
    %c0_17 = arith.constant 0 : index
    %33 = vector.load %arg5[%c0_16, %c0_17] : memref<1x1xf32, #tpu.memory_space<vmem>>, vector<1x1xf32>
    %34 = vector.broadcast %33 : vector<1x1xf32> to vector<1x256xf32>
    %35 = arith.addf %32, %34 : vector<1x256xf32>
    %c0_18 = arith.constant 0 : index
    %c0_19 = arith.constant 0 : index
    %36 = vector.load %arg6[%c0_18, %c0_19] : memref<1x256xf32, #tpu.memory_space<vmem>>, vector<1x256xf32>
    tpu.vector_store %arg6[%c0_18, %c0_19], %35 {strides = array<i32>} : memref<1x256xf32, #tpu.memory_space<vmem>>, vector<1x256xf32>,
    return
  }
  func.func @transform_0(%arg0: i32) -> (i32, i32) {
    %c0_i32 = arith.constant 0 : i32
    %c0_i32_0 = arith.constant 0 : i32
    return %arg0, %c0_i32 : i32, i32
  }
  func.func @transform_1(%arg0: i32) -> (i32, i32) {
    %c0_i32 = arith.constant 0 : i32
    %c0_i32_0 = arith.constant 0 : i32
    %c0_i32_1 = arith.constant 0 : i32
    return %c0_i32, %c0_i32_0 : i32, i32
  }
  func.func @transform_2(%arg0: i32) -> (i32, i32) {
    %c0_i32 = arith.constant 0 : i32
    %c0_i32_0 = arith.constant 0 : i32
    %c0_i32_1 = arith.constant 0 : i32
    return %c0_i32, %c0_i32_0 : i32, i32
  }
  func.func @transform_3(%arg0: i32) -> (i32, i32) {
    %c0_i32 = arith.constant 0 : i32
    %c0_i32_0 = arith.constant 0 : i32
    %c0_i32_1 = arith.constant 0 : i32
    return %c0_i32, %c0_i32_0 : i32, i32
  }
  func.func @transform_4(%arg0: i32) -> (i32, i32) {
    %c0_i32 = arith.constant 0 : i32
    %c0_i32_0 = arith.constant 0 : i32
    %c0_i32_1 = arith.constant 0 : i32
    return %c0_i32, %c0_i32_0 : i32, i32
  }
  func.func @transform_5(%arg0: i32) -> (i32, i32) {
    %c0_i32 = arith.constant 0 : i32
    %c0_i32_0 = arith.constant 0 : i32
    return %c0_i32, %arg0 : i32, i32
  }
}

</mosaic_0001>

<llo_original>
// kernel: tpu_custom_call.1
$region0: #{tpu_custom_call.1}
  #allocation0 [shape = 'u32[]', space=smem, size = 0x4, offset = 0x4, fixed_abs, tag = 'smem constant byte address 0x4 - core index']
  #allocation1 [shape = 'u32[144,128]{1,0:T(1,128)}', space=vmem, size = 0x12000, scoped, tag = 'internal scratch']
  #allocation2 [shape = 'f32[1,1]{1,0:T(1,128)S(1)}', space=vmem, size = 0x200, scoped, tag = 'scoped memory for tpu_custom_call.1']
  %s0 = inlined_call_operand.vmem [shape: f32[512,32], index: 0, kind: input, shape index: {}]
  %s1 = inlined_call_operand.vmem [shape: f32[32,128], index: 1, kind: input, shape index: {}]
  %s2 = inlined_call_operand.vmem [shape: f32[1,128], index: 2, kind: input, shape index: {}]
  %s3 = inlined_call_operand.vmem [shape: f32[1,128], index: 3, kind: input, shape index: {}]
  %s4 = inlined_call_operand.<no memory space> [shape: f32[1,1], index: 4, kind: input, shape index: {}]
  %s5 = inlined_call_operand.hbm [shape: f32[1,512], index: 5, kind: output, shape index: {}]
  %s6 = sld [smem:[#allocation0]]
  $region53: #{tpu_custom_call.1} parent=0
    _
  %s8 = ssub.s32 1, %s6
  %s9 = scalar_select 0, %s8, %s6
  %v10 = vstv %s4
  %11 = vst [vmem:[#allocation2] sm:$0x1] %v10
  $region1: #{tpu_custom_call.1} parent=0
    #allocation3 [shape = 'u8[2048]{0}', space=vmem, size = 0x800, scoped, tag = 'output window, operand 0']
    #allocation4 [shape = 's32[2]{0}', space=sflag, size = 0x8, scoped, tag = 'scoped memory for tpu_custom_call.1']
    %12 = vsyncpa [#allocation4], 0
    %s13 = scalar_lea.sflag [#allocation4], 1
    %14 = vsyncpa %s13, 0
    loop: start=0, step=1, limit=4
    $region2: #{tpu_custom_call.1} parent=1 // loop_pre_header
      _
    $region3: #{tpu_custom_call.1} parent=1 // loop_header
      %s16 = sphi 0, %s20
      %p17 = scmp.ge.s32.totalorder %s16, 4
      %s26 = sphi 0, %s28
      %s29 = sphi 0, %s26
      %s30 = sphi 0, %s29
      %s46 = sphi 0, %s30
      %s50 = sphi 0, %s50
      %s52 = sphi 0, %s50
      %s53 = sphi 0, %s52
      %s67 = sphi 0, %s53
      %s71 = sphi 0, %s71
      %s73 = sphi 0, %s71
      %s74 = sphi 0, %s73
      %s88 = sphi 0, %s74
      %s92 = sphi 0, %s92
      %s94 = sphi 0, %s92
      %s95 = sphi 0, %s94
      %s109 = sphi 0, %s95
      %s113 = sphi 0, %s113
      %s115 = sphi 0, %s113
      %s116 = sphi 0, %s115
      %s130 = sphi 0, %s116
      %s136 = sphi 0, %s138
      %s139 = sphi 0, %s136
      %s140 = sphi 0, %s139
      %s156 = sphi 0, %s140
    $region4: #{tpu_custom_call.1} parent=1 // loop_header_branch
      %19 = sbr.rel (%p17) target = $region8
    $region5: #{tpu_custom_call.1} parent=1 // loop_body
      %s21 = ssub.s32 %s16, 1
      %s22 = ssub.s32 %s16, 2
      %s23 = sadd.s32 %s16, 1
      %s24 = ssub.s32 %s16, %s23
      %p25 = scmp.eq.s32.totalorder %s24, 0
      %s27 = sadd.s32 %s26, 1
      %s28 = scalar_select %p25, %s26, %s27
      %p31 = pneg %p25
      %p32 = scmp.eq.s32.totalorder %s16, 1
      %p33 = por %p31, %p32
      %p34 = scmp.ne.s32.totalorder %s26, %s29
      %p35 = scmp.eq.s32.totalorder %s16, 0
      %p36 = por %p34, %p35
      %p37 = scmp.ne.s32.totalorder %s26, %s29
      %p38 = scmp.eq.s32.totalorder %s21, 1
      %p39 = por %p37, %p38
      %p40 = scmp.ne.s32.totalorder %s29, %s30
      %p41 = scmp.eq.s32.totalorder %s21, 0
      %p42 = por %p40, %p41
      %p43 = scmp.ne.s32.totalorder %s29, %s30
      %p44 = scmp.eq.s32.totalorder %s22, 1
      %p45 = por %p43, %p44
      %p47 = scmp.ne.s32.totalorder %s30, %s46
      %p48 = scmp.eq.s32.totalorder %s22, 0
      %p49 = por %p47, %p48
      %s51 = sadd.s32 %s50, 1
      %p54 = scmp.eq.s32.totalorder %s16, 1
      %p55 = scmp.ne.s32.totalorder %s50, %s52
      %p56 = scmp.eq.s32.totalorder %s16, 0
      %p57 = por %p55, %p56
      %p58 = scmp.ne.s32.totalorder %s50, %s52
      %p59 = scmp.eq.s32.totalorder %s21, 1
      %p60 = por %p58, %p59
      %p61 = scmp.ne.s32.totalorder %s52, %s53
      %p62 = scmp.eq.s32.totalorder %s21, 0
      %p63 = por %p61, %p62
      %p64 = scmp.ne.s32.totalorder %s52, %s53
      %p65 = scmp.eq.s32.totalorder %s22, 1
      %p66 = por %p64, %p65
      %p68 = scmp.ne.s32.totalorder %s53, %s67
      %p69 = scmp.eq.s32.totalorder %s22, 0
      %p70 = por %p68, %p69
      %s72 = sadd.s32 %s71, 1
      %p75 = scmp.eq.s32.totalorder %s16, 1
      %p76 = scmp.ne.s32.totalorder %s71, %s73
      %p77 = scmp.eq.s32.totalorder %s16, 0
      %p78 = por %p76, %p77
      %p79 = scmp.ne.s32.totalorder %s71, %s73
      %p80 = scmp.eq.s32.totalorder %s21, 1
      %p81 = por %p79, %p80
      %p82 = scmp.ne.s32.totalorder %s73, %s74
      %p83 = scmp.eq.s32.totalorder %s21, 0
      %p84 = por %p82, %p83
      %p85 = scmp.ne.s32.totalorder %s73, %s74
      %p86 = scmp.eq.s32.totalorder %s22, 1
      %p87 = por %p85, %p86
      %p89 = scmp.ne.s32.totalorder %s74, %s88
      %p90 = scmp.eq.s32.totalorder %s22, 0
      %p91 = por %p89, %p90
      %s93 = sadd.s32 %s92, 1
      %p96 = scmp.eq.s32.totalorder %s16, 1
      %p97 = scmp.ne.s32.totalorder %s92, %s94
      %p98 = scmp.eq.s32.totalorder %s16, 0
      %p99 = por %p97, %p98
      %p100 = scmp.ne.s32.totalorder %s92, %s94
      %p101 = scmp.eq.s32.totalorder %s21, 1
      %p102 = por %p100, %p101
      %p103 = scmp.ne.s32.totalorder %s94, %s95
      %p104 = scmp.eq.s32.totalorder %s21, 0
      %p105 = por %p103, %p104
      %p106 = scmp.ne.s32.totalorder %s94, %s95
      %p107 = scmp.eq.s32.totalorder %s22, 1
      %p108 = por %p106, %p107
      %p110 = scmp.ne.s32.totalorder %s95, %s109
      %p111 = scmp.eq.s32.totalorder %s22, 0
      %p112 = por %p110, %p111
      %s114 = sadd.s32 %s113, 1
      %p117 = scmp.eq.s32.totalorder %s16, 1
      %p118 = scmp.ne.s32.totalorder %s113, %s115
      %p119 = scmp.eq.s32.totalorder %s16, 0
      %p120 = por %p118, %p119
      %p121 = scmp.ne.s32.totalorder %s113, %s115
      %p122 = scmp.eq.s32.totalorder %s21, 1
      %p123 = por %p121, %p122
      %p124 = scmp.ne.s32.totalorder %s115, %s116
      %p125 = scmp.eq.s32.totalorder %s21, 0
      %p126 = por %p124, %p125
      %p127 = scmp.ne.s32.totalorder %s115, %s116
      %p128 = scmp.eq.s32.totalorder %s22, 1
      %p129 = por %p127, %p128
      %p131 = scmp.ne.s32.totalorder %s116, %s130
      %p132 = scmp.eq.s32.totalorder %s22, 0
      %p133 = por %p131, %p132
      %s134 = ssub.s32 %s16, %s23
      %p135 = scmp.eq.s32.totalorder %s134, 0
      %s137 = sadd.s32 %s136, 1
      %s138 = scalar_select %p135, %s136, %s137
      %p141 = pneg %p135
      %p142 = scmp.eq.s32.totalorder %s16, 1
      %p143 = por %p141, %p142
      %p144 = scmp.ne.s32.totalorder %s136, %s139
      %p145 = scmp.eq.s32.totalorder %s16, 0
      %p146 = por %p144, %p145
      %p147 = scmp.ne.s32.totalorder %s136, %s139
      %p148 = scmp.eq.s32.totalorder %s21, 1
      %p149 = por %p147, %p148
      %p150 = scmp.ne.s32.totalorder %s139, %s140
      %p151 = scmp.eq.s32.totalorder %s21, 0
      %p152 = por %p150, %p151
      %p153 = scmp.ne.s32.totalorder %s139, %s140
      %p154 = scmp.eq.s32.totalorder %s22, 1
      %p155 = por %p153, %p154
      %p157 = scmp.ne.s32.totalorder %s140, %s156
      %p158 = scmp.eq.s32.totalorder %s22, 0
      %p159 = por %p157, %p158
      %p160 = scmp.le.s32.totalorder 1, %s16
      %p161 = scmp.lt.s32.totalorder %s16, 3
      %p162 = pnand %p160, %p161
      %p163 = pneg %p162
      // Predicated region
      $region9: #{tpu_custom_call.1} parent=5 // pred_check
        _
      $region10: #{tpu_custom_call.1} parent=5 // pred_check_branch
        %165 = sbr.rel (%p162) target = $region12
      $region11: #{tpu_custom_call.1} parent=5 // pred_region
        %s166 = ssub.s32 %s16, 1
        // Predicated region
        $region13: #{tpu_custom_call.1} parent=11 // pred_check
          %p167 = pneg %p63
        $region14: #{tpu_custom_call.1} parent=11 // pred_check_branch
          %169 = sbr.rel (%p167) target = $region16
        $region15: #{tpu_custom_call.1} parent=11 // pred_region
          _
        $region16: #{tpu_custom_call.1} parent=11 // pred_fallthru
          _
        // Predicated region
        $region17: #{tpu_custom_call.1} parent=11 // pred_check
          %p170 = pneg %p84
        $region18: #{tpu_custom_call.1} parent=11 // pred_check_branch
          %172 = sbr.rel (%p170) target = $region20
        $region19: #{tpu_custom_call.1} parent=11 // pred_region
          _
        $region20: #{tpu_custom_call.1} parent=11 // pred_fallthru
          _
        // Predicated region
        $region21: #{tpu_custom_call.1} parent=11 // pred_check
          %p173 = pneg %p105
        $region22: #{tpu_custom_call.1} parent=11 // pred_check_branch
          %175 = sbr.rel (%p173) target = $region24
        $region23: #{tpu_custom_call.1} parent=11 // pred_region
          _
        $region24: #{tpu_custom_call.1} parent=11 // pred_fallthru
          _
        // Predicated region
        $region25: #{tpu_custom_call.1} parent=11 // pred_check
          %p176 = pneg %p126
        $region26: #{tpu_custom_call.1} parent=11 // pred_check_branch
          %178 = sbr.rel (%p176) target = $region28
        $region27: #{tpu_custom_call.1} parent=11 // pred_region
          _
        $region28: #{tpu_custom_call.1} parent=11 // pred_fallthru
          _
      $region12: #{tpu_custom_call.1} parent=5 // pred_fallthru
        _
      %p179 = scmp.lt.s32.totalorder %s16, 2
      // Predicated region
      $region29: #{tpu_custom_call.1} parent=5 // pred_check
        %p180 = pneg %p179
      $region30: #{tpu_custom_call.1} parent=5 // pred_check_branch
        %182 = sbr.rel (%p180) target = $region32
      $region31: #{tpu_custom_call.1} parent=5 // pred_region
        // Predicated region
        $region33: #{tpu_custom_call.1} parent=31 // pred_check
          %p183 = pneg %p36
        $region34: #{tpu_custom_call.1} parent=31 // pred_check_branch
          %185 = sbr.rel (%p183) target = $region36
        $region35: #{tpu_custom_call.1} parent=31 // pred_region
          %s186 = smul.u32 32, %s16
          %p187 = scmp.lt.s32.totalorder %s186, 63
          %s188 = scalar_select %p187, %s186, 63
          %s189 = smul.addr %s188, 8
          %s190 = scalar_lea.vmem %s0, %s189
          %s191 = smul.u32 32, %s16
        $region36: #{tpu_custom_call.1} parent=31 // pred_fallthru
          _
      $region32: #{tpu_custom_call.1} parent=5 // pred_fallthru
        _
      %p192 = scmp.le.s32.totalorder 1, %s16
      %p193 = scmp.lt.s32.totalorder %s16, 3
      %p194 = pnand %p192, %p193
      %p195 = pneg %p194
      // Predicated region
      $region37: #{tpu_custom_call.1} parent=5 // pred_check
        _
      $region38: #{tpu_custom_call.1} parent=5 // pred_check_branch
        %197 = sbr.rel (%p194) target = $region40
      $region39: #{tpu_custom_call.1} parent=5 // pred_region
        %s198 = ssub.s32 %s16, 1
        %s199 = smul.u32 32, %s21
        %p200 = scmp.lt.s32.totalorder %s199, 63
        %s201 = scalar_select %p200, %s199, 63
        %s202 = smul.addr %s201, 8
        %s203 = scalar_lea.vmem %s0, %s202
        %p204 = pneg %p42
        %p205 = pneg %p39
        %p206 = pneg %p63
        %p207 = pneg %p60
        %p208 = pneg %p84
        %p209 = pneg %p81
        %p210 = pneg %p105
        %p211 = pneg %p102
        %p212 = pneg %p126
        %p213 = pneg %p123
        %p214 = pneg %p152
        %p215 = pneg %p149
        %s216 = sand.u32 %s139, 1
        %s217 = scalar_lea.sflag [#allocation4], %s216
        %s218 = sand.u32 %s139, 1
        %s219 = smul.addr %s218, 2
        %s220 = scalar_lea.vmem [#allocation3], %s219
        %s221 = smul.u32 32, %s21
        %p222 = scmp.lt.s32.totalorder %s221, 63
        %s223 = scalar_select %p222, %s221, 63
        %s224 = smul.addr %s223, 8
        %s225 = scalar_lea.vmem %s0, %s224
        %s226 = smul.u32 32, %s21
        %s227 = smul.u32 2, %s21
        %v228 = vld [vmem:[%s225] sm:$0xff]
        %v229 = vld [vmem:[%s225 + $0x8] sm:$0xff]
        %v230 = vld [vmem:[%s225 + $0x10] sm:$0xff]
        %v231 = vld [vmem:[%s225 + $0x18] sm:$0xff]
        %v232 = vld [vmem:[%s225 + $0x20] sm:$0xff]
        %v233 = vld [vmem:[%s225 + $0x28] sm:$0xff]
        %v234 = vld [vmem:[%s225 + $0x30] sm:$0xff]
        %v235 = vld [vmem:[%s225 + $0x38] sm:$0xff]
        %v236 = vld [vmem:[%s225 + $0x40] sm:$0xff]
        %v237 = vld [vmem:[%s225 + $0x48] sm:$0xff]
        %v238 = vld [vmem:[%s225 + $0x50] sm:$0xff]
        %v239 = vld [vmem:[%s225 + $0x58] sm:$0xff]
        %v240 = vld [vmem:[%s225 + $0x60] sm:$0xff]
        %v241 = vld [vmem:[%s225 + $0x68] sm:$0xff]
        %v242 = vld [vmem:[%s225 + $0x70] sm:$0xff]
        %v243 = vld [vmem:[%s225 + $0x78] sm:$0xff]
        %v244 = vld [vmem:[%s225 + $0x80] sm:$0xff]
        %v245 = vld [vmem:[%s225 + $0x88] sm:$0xff]
        %v246 = vld [vmem:[%s225 + $0x90] sm:$0xff]
        %v247 = vld [vmem:[%s225 + $0x98] sm:$0xff]
        %v248 = vld [vmem:[%s225 + $0xa0] sm:$0xff]
        %v249 = vld [vmem:[%s225 + $0xa8] sm:$0xff]
        %v250 = vld [vmem:[%s225 + $0xb0] sm:$0xff]
        %v251 = vld [vmem:[%s225 + $0xb8] sm:$0xff]
        %v252 = vld [vmem:[%s225 + $0xc0] sm:$0xff]
        %v253 = vld [vmem:[%s225 + $0xc8] sm:$0xff]
        %v254 = vld [vmem:[%s225 + $0xd0] sm:$0xff]
        %v255 = vld [vmem:[%s225 + $0xd8] sm:$0xff]
        %v256 = vld [vmem:[%s225 + $0xe0] sm:$0xff]
        %v257 = vld [vmem:[%s225 + $0xe8] sm:$0xff]
        %v258 = vld [vmem:[%s225 + $0xf0] sm:$0xff]
        %v259 = vld [vmem:[%s225 + $0xf8] sm:$0xff]
        %v260 = vld [vmem:[%s1] sm:$0xff]
        %v261 = vld [vmem:[%s1 + $0x8] sm:$0xff]
        %v262 = vld [vmem:[%s1 + $0x10] sm:$0xff]
        %v263 = vld [vmem:[%s1 + $0x18] sm:$0xff]
        %v264 = vld [vmem:[%s2] sm:$0x1]
        %v266 = vlaneseq
        %v267 = vshrl.u32 %v266, 7
        %v268 = vsub.s32 0, %v267
        %v269 = vrot.slane %v264, %v268
        %vm271 = vcmask 261120
        %v273 = vsel %vm271, %v228, 0
        %v276 = vsel %vm271, %v229, 0
        %v279 = vsel %vm271, %v230, 0
        %v282 = vsel %vm271, %v231, 0
        %v285 = vsel %vm271, %v232, 0
        %v288 = vsel %vm271, %v233, 0
        %v291 = vsel %vm271, %v234, 0
        %v294 = vsel %vm271, %v235, 0
        %v297 = vsel %vm271, %v236, 0
        %v300 = vsel %vm271, %v237, 0
        %v303 = vsel %vm271, %v238, 0
        %v306 = vsel %vm271, %v239, 0
        %v309 = vsel %vm271, %v240, 0
        %v312 = vsel %vm271, %v241, 0
        %v315 = vsel %vm271, %v242, 0
        %v318 = vsel %vm271, %v243, 0
        %v321 = vsel %vm271, %v244, 0
        %v324 = vsel %vm271, %v245, 0
        %v327 = vsel %vm271, %v246, 0
        %v330 = vsel %vm271, %v247, 0
        %v333 = vsel %vm271, %v248, 0
        %v336 = vsel %vm271, %v249, 0
        %v339 = vsel %vm271, %v250, 0
        %v342 = vsel %vm271, %v251, 0
        %v345 = vsel %vm271, %v252, 0
        %v348 = vsel %vm271, %v253, 0
        %v351 = vsel %vm271, %v254, 0
        %v354 = vsel %vm271, %v255, 0
        %v357 = vsel %vm271, %v256, 0
        %v360 = vsel %vm271, %v257, 0
        %v363 = vsel %vm271, %v258, 0
        %v366 = vsel %vm271, %v259, 0
        %368 = vmatprep.subr.mxu0 0.0
        %369 = vmatpush1.msra.mxu0 0.0
        %370 = vmatprep.subr.mxu0 0.0
        %371 = vmatpush1.msra.mxu0 0.0
        %372 = vmatprep.subr.mxu0 0.0
        %373 = vmatpush1.msra.mxu0 0.0
        %374 = vmatprep.subr.mxu0 0.0
        %375 = vmatpush1.msra.mxu0 0.0
        %376 = vmatprep.subr.mxu0 0.0
        %377 = vmatpush1.msra.mxu0 0.0
        %378 = vmatprep.subr.mxu0 0.0
        %379 = vmatpush1.msra.mxu0 0.0
        %380 = vmatprep.subr.mxu0 0.0
        %381 = vmatpush1.msra.mxu0 0.0
        %382 = vmatprep.subr.mxu0 0.0
        %383 = vmatpush1.msra.mxu0 0.0
        %384 = vmatprep.subr.mxu0 0.0
        %385 = vmatpush1.msra.mxu0 0.0
        %386 = vmatprep.subr.mxu0 0.0
        %387 = vmatpush1.msra.mxu0 0.0
        %388 = vmatprep.subr.mxu0 0.0
        %389 = vmatpush1.msra.mxu0 0.0
        %390 = vmatprep.subr.mxu0 0.0
        %391 = vmatpush1.msra.mxu0 0.0
        %392 = vmatprep.subr.mxu0 0.0
        %393 = vmatpush1.msra.mxu0 %v263
        %394 = vmatprep.subr.mxu0 0.0
        %395 = vmatpush1.msra.mxu0 %v262
        %396 = vmatprep.subr.mxu0 0.0
        %397 = vmatpush1.msra.mxu0 %v261
        %398 = vmatprep.subr.mxu0 0.0
        %399 = vmatpush1.msra.mxu0 %v260
        %400 = vmatprep.subr.mxu0 0.0
        %401 = vmatpush2.msra.mxu0 0.0
        %402 = vmatprep.subr.mxu0 0.0
        %403 = vmatpush2.msra.mxu0 0.0
        %404 = vmatprep.subr.mxu0 0.0
        %405 = vmatpush2.msra.mxu0 0.0
        %406 = vmatprep.subr.mxu0 0.0
        %407 = vmatpush2.msra.mxu0 0.0
        %408 = vmatprep.subr.mxu0 0.0
        %409 = vmatpush2.msra.mxu0 0.0
        %410 = vmatprep.subr.mxu0 0.0
        %411 = vmatpush2.msra.mxu0 0.0
        %412 = vmatprep.subr.mxu0 0.0
        %413 = vmatpush2.msra.mxu0 0.0
        %414 = vmatprep.subr.mxu0 0.0
        %415 = vmatpush2.msra.mxu0 0.0
        %416 = vmatprep.subr.mxu0 0.0
        %417 = vmatpush2.msra.mxu0 0.0
        %418 = vmatprep.subr.mxu0 0.0
        %419 = vmatpush2.msra.mxu0 0.0
        %420 = vmatprep.subr.mxu0 0.0
        %421 = vmatpush2.msra.mxu0 0.0
        %422 = vmatprep.subr.mxu0 0.0
        %423 = vmatpush2.msra.mxu0 0.0
        %424 = vmatprep.subr.mxu0 0.0
        %425 = vmatpush2.msra.mxu0 0.0
        %426 = vmatprep.subr.mxu0 0.0
        %427 = vmatpush2.msra.mxu0 0.0
        %428 = vmatprep.subr.mxu0 0.0
        %429 = vmatpush2.msra.mxu0 0.0
        %430 = vmatprep.subr.mxu0 0.0
        %431 = vmatpush2.msra.mxu0 0.0
        %432 = vmatprep.mubr.f32.mxu0 0.0
        %433 = vmatmul.mubr.f32.gmra.mxu0 %v273
        %v434 = vpop.f32.mrf.mxu0
        %v435 = vadd.f32 %v269, %v434
        %v436 = vpop.f32.mrf.mxu0
        %437 = vmatprep.mubr.f32.mxu0 0.0
        %438 = vmatmul.mubr.f32.gmra.mxu0 %v276
        %v439 = vpop.f32.mrf.mxu0
        %v440 = vadd.f32 %v269, %v439
        %v441 = vpop.f32.mrf.mxu0
        %442 = vmatprep.mubr.f32.mxu0 0.0
        %443 = vmatmul.mubr.f32.gmra.mxu0 %v279
        %v444 = vpop.f32.mrf.mxu0
        %v445 = vadd.f32 %v269, %v444
        %v446 = vpop.f32.mrf.mxu0
        %447 = vmatprep.mubr.f32.mxu0 0.0
        %448 = vmatmul.mubr.f32.gmra.mxu0 %v282
        %v449 = vpop.f32.mrf.mxu0
        %v450 = vadd.f32 %v269, %v449
        %v451 = vpop.f32.mrf.mxu0
        %452 = vmatprep.mubr.f32.mxu0 0.0
        %453 = vmatmul.mubr.f32.gmra.mxu0 %v285
        %v454 = vpop.f32.mrf.mxu0
        %v455 = vadd.f32 %v269, %v454
        %v456 = vpop.f32.mrf.mxu0
        %457 = vmatprep.mubr.f32.mxu0 0.0
        %458 = vmatmul.mubr.f32.gmra.mxu0 %v288
        %v459 = vpop.f32.mrf.mxu0
        %v460 = vadd.f32 %v269, %v459
        %v461 = vpop.f32.mrf.mxu0
        %462 = vmatprep.mubr.f32.mxu0 0.0
        %463 = vmatmul.mubr.f32.gmra.mxu0 %v291
        %v464 = vpop.f32.mrf.mxu0
        %v465 = vadd.f32 %v269, %v464
        %v466 = vpop.f32.mrf.mxu0
        %467 = vmatprep.mubr.f32.mxu0 0.0
        %468 = vmatmul.mubr.f32.gmra.mxu0 %v294
        %v469 = vpop.f32.mrf.mxu0
        %v470 = vadd.f32 %v269, %v469
        %v471 = vpop.f32.mrf.mxu0
        %472 = vmatprep.mubr.f32.mxu0 0.0
        %473 = vmatmul.mubr.f32.gmra.mxu0 %v297
        %v474 = vpop.f32.mrf.mxu0
        %v475 = vadd.f32 %v269, %v474
        %v476 = vpop.f32.mrf.mxu0
        %477 = vmatprep.mubr.f32.mxu0 0.0
        %478 = vmatmul.mubr.f32.gmra.mxu0 %v300
        %v479 = vpop.f32.mrf.mxu0
        %v480 = vadd.f32 %v269, %v479
        %v481 = vpop.f32.mrf.mxu0
        %482 = vmatprep.mubr.f32.mxu0 0.0
        %483 = vmatmul.mubr.f32.gmra.mxu0 %v303
        %v484 = vpop.f32.mrf.mxu0
        %v485 = vadd.f32 %v269, %v484
        %v486 = vpop.f32.mrf.mxu0
        %487 = vmatprep.mubr.f32.mxu0 0.0
        %488 = vmatmul.mubr.f32.gmra.mxu0 %v306
        %v489 = vpop.f32.mrf.mxu0
        %v490 = vadd.f32 %v269, %v489
        %v491 = vpop.f32.mrf.mxu0
        %492 = vmatprep.mubr.f32.mxu0 0.0
        %493 = vmatmul.mubr.f32.gmra.mxu0 %v309
        %v494 = vpop.f32.mrf.mxu0
        %v495 = vadd.f32 %v269, %v494
        %v496 = vpop.f32.mrf.mxu0
        %497 = vmatprep.mubr.f32.mxu0 0.0
        %498 = vmatmul.mubr.f32.gmra.mxu0 %v312
        %v499 = vpop.f32.mrf.mxu0
        %v500 = vadd.f32 %v269, %v499
        %v501 = vpop.f32.mrf.mxu0
        %502 = vmatprep.mubr.f32.mxu0 0.0
        %503 = vmatmul.mubr.f32.gmra.mxu0 %v315
        %v504 = vpop.f32.mrf.mxu0
        %v505 = vadd.f32 %v269, %v504
        %v506 = vpop.f32.mrf.mxu0
        %507 = vmatprep.mubr.f32.mxu0 0.0
        %508 = vmatmul.mubr.f32.gmra.mxu0 %v318
        %v509 = vpop.f32.mrf.mxu0
        %v510 = vadd.f32 %v269, %v509
        %v511 = vpop.f32.mrf.mxu0
        %512 = vmatprep.mubr.f32.mxu0 0.0
        %513 = vmatmul.mubr.f32.gmra.mxu0 %v321
        %v514 = vpop.f32.mrf.mxu0
        %v515 = vadd.f32 %v269, %v514
        %v516 = vpop.f32.mrf.mxu0
        %517 = vmatprep.mubr.f32.mxu0 0.0
        %518 = vmatmul.mubr.f32.gmra.mxu0 %v324
        %v519 = vpop.f32.mrf.mxu0
        %v520 = vadd.f32 %v269, %v519
        %v521 = vpop.f32.mrf.mxu0
        %522 = vmatprep.mubr.f32.mxu0 0.0
        %523 = vmatmul.mubr.f32.gmra.mxu0 %v327
        %v524 = vpop.f32.mrf.mxu0
        %v525 = vadd.f32 %v269, %v524
        %v526 = vpop.f32.mrf.mxu0
        %527 = vmatprep.mubr.f32.mxu0 0.0
        %528 = vmatmul.mubr.f32.gmra.mxu0 %v330
        %v529 = vpop.f32.mrf.mxu0
        %v530 = vadd.f32 %v269, %v529
        %v531 = vpop.f32.mrf.mxu0
        %532 = vmatprep.mubr.f32.mxu0 0.0
        %533 = vmatmul.mubr.f32.gmra.mxu0 %v333
        %v534 = vpop.f32.mrf.mxu0
        %v535 = vadd.f32 %v269, %v534
        %v536 = vpop.f32.mrf.mxu0
        %537 = vmatprep.mubr.f32.mxu0 0.0
        %538 = vmatmul.mubr.f32.gmra.mxu0 %v336
        %v539 = vpop.f32.mrf.mxu0
        %v540 = vadd.f32 %v269, %v539
        %v541 = vpop.f32.mrf.mxu0
        %542 = vmatprep.mubr.f32.mxu0 0.0
        %543 = vmatmul.mubr.f32.gmra.mxu0 %v339
        %v544 = vpop.f32.mrf.mxu0
        %v545 = vadd.f32 %v269, %v544
        %v546 = vpop.f32.mrf.mxu0
        %547 = vmatprep.mubr.f32.mxu0 0.0
        %548 = vmatmul.mubr.f32.gmra.mxu0 %v342
        %v549 = vpop.f32.mrf.mxu0
        %v550 = vadd.f32 %v269, %v549
        %v551 = vpop.f32.mrf.mxu0
        %552 = vmatprep.mubr.f32.mxu0 0.0
        %553 = vmatmul.mubr.f32.gmra.mxu0 %v345
        %v554 = vpop.f32.mrf.mxu0
        %v555 = vadd.f32 %v269, %v554
        %v556 = vpop.f32.mrf.mxu0
        %557 = vmatprep.mubr.f32.mxu0 0.0
        %558 = vmatmul.mubr.f32.gmra.mxu0 %v348
        %v559 = vpop.f32.mrf.mxu0
        %v560 = vadd.f32 %v269, %v559
        %v561 = vpop.f32.mrf.mxu0
        %562 = vmatprep.mubr.f32.mxu0 0.0
        %563 = vmatmul.mubr.f32.gmra.mxu0 %v351
        %v564 = vpop.f32.mrf.mxu0
        %v565 = vadd.f32 %v269, %v564
        %v566 = vpop.f32.mrf.mxu0
        %567 = vmatprep.mubr.f32.mxu0 0.0
        %568 = vmatmul.mubr.f32.gmra.mxu0 %v354
        %v569 = vpop.f32.mrf.mxu0
        %v570 = vadd.f32 %v269, %v569
        %v571 = vpop.f32.mrf.mxu0
        %572 = vmatprep.mubr.f32.mxu0 0.0
        %573 = vmatmul.mubr.f32.gmra.mxu0 %v357
        %v574 = vpop.f32.mrf.mxu0
        %v575 = vadd.f32 %v269, %v574
        %v576 = vpop.f32.mrf.mxu0
        %577 = vmatprep.mubr.f32.mxu0 0.0
        %578 = vmatmul.mubr.f32.gmra.mxu0 %v360
        %v579 = vpop.f32.mrf.mxu0
        %v580 = vadd.f32 %v269, %v579
        %v581 = vpop.f32.mrf.mxu0
        %582 = vmatprep.mubr.f32.mxu0 0.0
        %583 = vmatmul.mubr.f32.gmra.mxu0 %v363
        %v584 = vpop.f32.mrf.mxu0
        %v585 = vadd.f32 %v269, %v584
        %v586 = vpop.f32.mrf.mxu0
        %587 = vmatprep.mubr.f32.mxu0 0.0
        %588 = vmatmul.mubr.f32.gmra.mxu0 %v366
        %v589 = vpop.f32.mrf.mxu0
        %v590 = vadd.f32 %v269, %v589
        %v591 = vpop.f32.mrf.mxu0
        %592 = vdwg.mxu0
        %v593 = vmul.f32 %v435, 0.5
        %v594 = vmul.f32 %v440, 0.5
        %v595 = vmul.f32 %v445, 0.5
        %v596 = vmul.f32 %v450, 0.5
        %v597 = vmul.f32 %v455, 0.5
        %v598 = vmul.f32 %v460, 0.5
        %v599 = vmul.f32 %v465, 0.5
        %v600 = vmul.f32 %v470, 0.5
        %v601 = vmul.f32 %v475, 0.5
        %v602 = vmul.f32 %v480, 0.5
        %v603 = vmul.f32 %v485, 0.5
        %v604 = vmul.f32 %v490, 0.5
        %v605 = vmul.f32 %v495, 0.5
        %v606 = vmul.f32 %v500, 0.5
        %v607 = vmul.f32 %v505, 0.5
        %v608 = vmul.f32 %v510, 0.5
        %v609 = vmul.f32 %v515, 0.5
        %v610 = vmul.f32 %v520, 0.5
        %v611 = vmul.f32 %v525, 0.5
        %v612 = vmul.f32 %v530, 0.5
        %v613 = vmul.f32 %v535, 0.5
        %v614 = vmul.f32 %v540, 0.5
        %v615 = vmul.f32 %v545, 0.5
        %v616 = vmul.f32 %v550, 0.5
        %v617 = vmul.f32 %v555, 0.5
        %v618 = vmul.f32 %v560, 0.5
        %v619 = vmul.f32 %v565, 0.5
        %v620 = vmul.f32 %v570, 0.5
        %v621 = vmul.f32 %v575, 0.5
        %v622 = vmul.f32 %v580, 0.5
        %v623 = vmul.f32 %v585, 0.5
        %v624 = vmul.f32 %v590, 0.5
        %v625 = vmul.f32 %v435, 0.70710677
        %v626 = vmul.f32 %v440, 0.70710677
        %v627 = vmul.f32 %v445, 0.70710677
        %v628 = vmul.f32 %v450, 0.70710677
        %v629 = vmul.f32 %v455, 0.70710677
        %v630 = vmul.f32 %v460, 0.70710677
        %v631 = vmul.f32 %v465, 0.70710677
        %v632 = vmul.f32 %v470, 0.70710677
        %v633 = vmul.f32 %v475, 0.70710677
        %v634 = vmul.f32 %v480, 0.70710677
        %v635 = vmul.f32 %v485, 0.70710677
        %v636 = vmul.f32 %v490, 0.70710677
        %v637 = vmul.f32 %v495, 0.70710677
        %v638 = vmul.f32 %v500, 0.70710677
        %v639 = vmul.f32 %v505, 0.70710677
        %v640 = vmul.f32 %v510, 0.70710677
        %v641 = vmul.f32 %v515, 0.70710677
        %v642 = vmul.f32 %v520, 0.70710677
        %v643 = vmul.f32 %v525, 0.70710677
        %v644 = vmul.f32 %v530, 0.70710677
        %v645 = vmul.f32 %v535, 0.70710677
        %v646 = vmul.f32 %v540, 0.70710677
        %v647 = vmul.f32 %v545, 0.70710677
        %v648 = vmul.f32 %v550, 0.70710677
        %v649 = vmul.f32 %v555, 0.70710677
        %v650 = vmul.f32 %v560, 0.70710677
        %v651 = vmul.f32 %v565, 0.70710677
        %v652 = vmul.f32 %v570, 0.70710677
        %v653 = vmul.f32 %v575, 0.70710677
        %v654 = vmul.f32 %v580, 0.70710677
        %v655 = vmul.f32 %v585, 0.70710677
        %v656 = vmul.f32 %v590, 0.70710677
        %v657 = verf.f32.pop %v625
        %v658 = verf.f32.pop %v626
        %v659 = verf.f32.pop %v627
        %v660 = verf.f32.pop %v628
        %v661 = verf.f32.pop %v629
        %v662 = verf.f32.pop %v630
        %v663 = verf.f32.pop %v631
        %v664 = verf.f32.pop %v632
        %v665 = verf.f32.pop %v633
        %v666 = verf.f32.pop %v634
        %v667 = verf.f32.pop %v635
        %v668 = verf.f32.pop %v636
        %v669 = verf.f32.pop %v637
        %v670 = verf.f32.pop %v638
        %v671 = verf.f32.pop %v639
        %v672 = verf.f32.pop %v640
        %v673 = verf.f32.pop %v641
        %v674 = verf.f32.pop %v642
        %v675 = verf.f32.pop %v643
        %v676 = verf.f32.pop %v644
        %v677 = verf.f32.pop %v645
        %v678 = verf.f32.pop %v646
        %v679 = verf.f32.pop %v647
        %v680 = verf.f32.pop %v648
        %v681 = verf.f32.pop %v649
        %v682 = verf.f32.pop %v650
        %v683 = verf.f32.pop %v651
        %v684 = verf.f32.pop %v652
        %v685 = verf.f32.pop %v653
        %v686 = verf.f32.pop %v654
        %v687 = verf.f32.pop %v655
        %v688 = verf.f32.pop %v656
        %v689 = vadd.f32 %v657, 1.0
        %v690 = vadd.f32 %v658, 1.0
        %v691 = vadd.f32 %v659, 1.0
        %v692 = vadd.f32 %v660, 1.0
        %v693 = vadd.f32 %v661, 1.0
        %v694 = vadd.f32 %v662, 1.0
        %v695 = vadd.f32 %v663, 1.0
        %v696 = vadd.f32 %v664, 1.0
        %v697 = vadd.f32 %v665, 1.0
        %v698 = vadd.f32 %v666, 1.0
        %v699 = vadd.f32 %v667, 1.0
        %v700 = vadd.f32 %v668, 1.0
        %v701 = vadd.f32 %v669, 1.0
        %v702 = vadd.f32 %v670, 1.0
        %v703 = vadd.f32 %v671, 1.0
        %v704 = vadd.f32 %v672, 1.0
        %v705 = vadd.f32 %v673, 1.0
        %v706 = vadd.f32 %v674, 1.0
        %v707 = vadd.f32 %v675, 1.0
        %v708 = vadd.f32 %v676, 1.0
        %v709 = vadd.f32 %v677, 1.0
        %v710 = vadd.f32 %v678, 1.0
        %v711 = vadd.f32 %v679, 1.0
        %v712 = vadd.f32 %v680, 1.0
        %v713 = vadd.f32 %v681, 1.0
        %v714 = vadd.f32 %v682, 1.0
        %v715 = vadd.f32 %v683, 1.0
        %v716 = vadd.f32 %v684, 1.0
        %v717 = vadd.f32 %v685, 1.0
        %v718 = vadd.f32 %v686, 1.0
        %v719 = vadd.f32 %v687, 1.0
        %v720 = vadd.f32 %v688, 1.0
        %v721 = vmul.f32 %v593, %v689
        %v722 = vmul.f32 %v594, %v690
        %v723 = vmul.f32 %v595, %v691
        %v724 = vmul.f32 %v596, %v692
        %v725 = vmul.f32 %v597, %v693
        %v726 = vmul.f32 %v598, %v694
        %v727 = vmul.f32 %v599, %v695
        %v728 = vmul.f32 %v600, %v696
        %v729 = vmul.f32 %v601, %v697
        %v730 = vmul.f32 %v602, %v698
        %v731 = vmul.f32 %v603, %v699
        %v732 = vmul.f32 %v604, %v700
        %v733 = vmul.f32 %v605, %v701
        %v734 = vmul.f32 %v606, %v702
        %v735 = vmul.f32 %v607, %v703
        %v736 = vmul.f32 %v608, %v704
        %v737 = vmul.f32 %v609, %v705
        %v738 = vmul.f32 %v610, %v706
        %v739 = vmul.f32 %v611, %v707
        %v740 = vmul.f32 %v612, %v708
        %v741 = vmul.f32 %v613, %v709
        %v742 = vmul.f32 %v614, %v710
        %v743 = vmul.f32 %v615, %v711
        %v744 = vmul.f32 %v616, %v712
        %v745 = vmul.f32 %v617, %v713
        %v746 = vmul.f32 %v618, %v714
        %v747 = vmul.f32 %v619, %v715
        %v748 = vmul.f32 %v620, %v716
        %v749 = vmul.f32 %v621, %v717
        %v750 = vmul.f32 %v622, %v718
        %v751 = vmul.f32 %v623, %v719
        %v752 = vmul.f32 %v624, %v720
        %753 = vadd.xlane.f32.xlu0 %v721
        %v754 = vpop.xlane.xlu0 %753
        %755 = vadd.xlane.f32.xlu0 %v722
        %v756 = vpop.xlane.xlu0 %755
        %757 = vadd.xlane.f32.xlu0 %v723
        %v758 = vpop.xlane.xlu0 %757
        %759 = vadd.xlane.f32.xlu0 %v724
        %v760 = vpop.xlane.xlu0 %759
        %761 = vadd.xlane.f32.xlu0 %v725
        %v762 = vpop.xlane.xlu0 %761
        %763 = vadd.xlane.f32.xlu0 %v726
        %v764 = vpop.xlane.xlu0 %763
        %765 = vadd.xlane.f32.xlu0 %v727
        %v766 = vpop.xlane.xlu0 %765
        %767 = vadd.xlane.f32.xlu0 %v728
        %v768 = vpop.xlane.xlu0 %767
        %769 = vadd.xlane.f32.xlu0 %v729
        %v770 = vpop.xlane.xlu0 %769
        %771 = vadd.xlane.f32.xlu0 %v730
        %v772 = vpop.xlane.xlu0 %771
        %773 = vadd.xlane.f32.xlu0 %v731
        %v774 = vpop.xlane.xlu0 %773
        %775 = vadd.xlane.f32.xlu0 %v732
        %v776 = vpop.xlane.xlu0 %775
        %777 = vadd.xlane.f32.xlu0 %v733
        %v778 = vpop.xlane.xlu0 %777
        %779 = vadd.xlane.f32.xlu0 %v734
        %v780 = vpop.xlane.xlu0 %779
        %781 = vadd.xlane.f32.xlu0 %v735
        %v782 = vpop.xlane.xlu0 %781
        %783 = vadd.xlane.f32.xlu0 %v736
        %v784 = vpop.xlane.xlu0 %783
        %785 = vadd.xlane.f32.xlu0 %v737
        %v786 = vpop.xlane.xlu0 %785
        %787 = vadd.xlane.f32.xlu0 %v738
        %v788 = vpop.xlane.xlu0 %787
        %789 = vadd.xlane.f32.xlu0 %v739
        %v790 = vpop.xlane.xlu0 %789
        %791 = vadd.xlane.f32.xlu0 %v740
        %v792 = vpop.xlane.xlu0 %791
        %793 = vadd.xlane.f32.xlu0 %v741
        %v794 = vpop.xlane.xlu0 %793
        %795 = vadd.xlane.f32.xlu0 %v742
        %v796 = vpop.xlane.xlu0 %795
        %797 = vadd.xlane.f32.xlu0 %v743
        %v798 = vpop.xlane.xlu0 %797
        %799 = vadd.xlane.f32.xlu0 %v744
        %v800 = vpop.xlane.xlu0 %799
        %801 = vadd.xlane.f32.xlu0 %v745
        %v802 = vpop.xlane.xlu0 %801
        %803 = vadd.xlane.f32.xlu0 %v746
        %v804 = vpop.xlane.xlu0 %803
        %805 = vadd.xlane.f32.xlu0 %v747
        %v806 = vpop.xlane.xlu0 %805
        %807 = vadd.xlane.f32.xlu0 %v748
        %v808 = vpop.xlane.xlu0 %807
        %809 = vadd.xlane.f32.xlu0 %v749
        %v810 = vpop.xlane.xlu0 %809
        %811 = vadd.xlane.f32.xlu0 %v750
        %v812 = vpop.xlane.xlu0 %811
        %813 = vadd.xlane.f32.xlu0 %v751
        %v814 = vpop.xlane.xlu0 %813
        %815 = vadd.xlane.f32.xlu0 %v752
        %v816 = vpop.xlane.xlu0 %815
        %v817 = vrcp.pop 128.0
        %v818 = vmul.f32 %v754, %v817
        %v819 = vmul.f32 %v756, %v817
        %v820 = vmul.f32 %v758, %v817
        %v821 = vmul.f32 %v760, %v817
        %v822 = vmul.f32 %v762, %v817
        %v823 = vmul.f32 %v764, %v817
        %v824 = vmul.f32 %v766, %v817
        %v825 = vmul.f32 %v768, %v817
        %v826 = vmul.f32 %v770, %v817
        %v827 = vmul.f32 %v772, %v817
        %v828 = vmul.f32 %v774, %v817
        %v829 = vmul.f32 %v776, %v817
        %v830 = vmul.f32 %v778, %v817
        %v831 = vmul.f32 %v780, %v817
        %v832 = vmul.f32 %v782, %v817
        %v833 = vmul.f32 %v784, %v817
        %v834 = vmul.f32 %v786, %v817
        %v835 = vmul.f32 %v788, %v817
        %v836 = vmul.f32 %v790, %v817
        %v837 = vmul.f32 %v792, %v817
        %v838 = vmul.f32 %v794, %v817
        %v839 = vmul.f32 %v796, %v817
        %v840 = vmul.f32 %v798, %v817
        %v841 = vmul.f32 %v800, %v817
        %v842 = vmul.f32 %v802, %v817
        %v843 = vmul.f32 %v804, %v817
        %v844 = vmul.f32 %v806, %v817
        %v845 = vmul.f32 %v808, %v817
        %v846 = vmul.f32 %v810, %v817
        %v847 = vmul.f32 %v812, %v817
        %v848 = vmul.f32 %v814, %v817
        %v849 = vmul.f32 %v816, %v817
        %v850 = vsub.f32 %v721, %v818
        %v851 = vsub.f32 %v722, %v819
        %v852 = vsub.f32 %v723, %v820
        %v853 = vsub.f32 %v724, %v821
        %v854 = vsub.f32 %v725, %v822
        %v855 = vsub.f32 %v726, %v823
        %v856 = vsub.f32 %v727, %v824
        %v857 = vsub.f32 %v728, %v825
        %v858 = vsub.f32 %v729, %v826
        %v859 = vsub.f32 %v730, %v827
        %v860 = vsub.f32 %v731, %v828
        %v861 = vsub.f32 %v732, %v829
        %v862 = vsub.f32 %v733, %v830
        %v863 = vsub.f32 %v734, %v831
        %v864 = vsub.f32 %v735, %v832
        %v865 = vsub.f32 %v736, %v833
        %v866 = vsub.f32 %v737, %v834
        %v867 = vsub.f32 %v738, %v835
        %v868 = vsub.f32 %v739, %v836
        %v869 = vsub.f32 %v740, %v837
        %v870 = vsub.f32 %v741, %v838
        %v871 = vsub.f32 %v742, %v839
        %v872 = vsub.f32 %v743, %v840
        %v873 = vsub.f32 %v744, %v841
        %v874 = vsub.f32 %v745, %v842
        %v875 = vsub.f32 %v746, %v843
        %v876 = vsub.f32 %v747, %v844
        %v877 = vsub.f32 %v748, %v845
        %v878 = vsub.f32 %v749, %v846
        %v879 = vsub.f32 %v750, %v847
        %v880 = vsub.f32 %v751, %v848
        %v881 = vsub.f32 %v752, %v849
        %v882 = vmul.f32 %v850, %v850
        %v883 = vmul.f32 %v851, %v851
        %v884 = vmul.f32 %v852, %v852
        %v885 = vmul.f32 %v853, %v853
        %v886 = vmul.f32 %v854, %v854
        %v887 = vmul.f32 %v855, %v855
        %v888 = vmul.f32 %v856, %v856
        %v889 = vmul.f32 %v857, %v857
        %v890 = vmul.f32 %v858, %v858
        %v891 = vmul.f32 %v859, %v859
        %v892 = vmul.f32 %v860, %v860
        %v893 = vmul.f32 %v861, %v861
        %v894 = vmul.f32 %v862, %v862
        %v895 = vmul.f32 %v863, %v863
        %v896 = vmul.f32 %v864, %v864
        %v897 = vmul.f32 %v865, %v865
        %v898 = vmul.f32 %v866, %v866
        %v899 = vmul.f32 %v867, %v867
        %v900 = vmul.f32 %v868, %v868
        %v901 = vmul.f32 %v869, %v869
        %v902 = vmul.f32 %v870, %v870
        %v903 = vmul.f32 %v871, %v871
        %v904 = vmul.f32 %v872, %v872
        %v905 = vmul.f32 %v873, %v873
        %v906 = vmul.f32 %v874, %v874
        %v907 = vmul.f32 %v875, %v875
        %v908 = vmul.f32 %v876, %v876
        %v909 = vmul.f32 %v877, %v877
        %v910 = vmul.f32 %v878, %v878
        %v911 = vmul.f32 %v879, %v879
        %v912 = vmul.f32 %v880, %v880
        %v913 = vmul.f32 %v881, %v881
        %914 = vadd.xlane.f32.xlu0 %v882
        %v915 = vpop.xlane.xlu0 %914
        %916 = vadd.xlane.f32.xlu0 %v883
        %v917 = vpop.xlane.xlu0 %916
        %918 = vadd.xlane.f32.xlu0 %v884
        %v919 = vpop.xlane.xlu0 %918
        %920 = vadd.xlane.f32.xlu0 %v885
        %v921 = vpop.xlane.xlu0 %920
        %922 = vadd.xlane.f32.xlu0 %v886
        %v923 = vpop.xlane.xlu0 %922
        %924 = vadd.xlane.f32.xlu0 %v887
        %v925 = vpop.xlane.xlu0 %924
        %926 = vadd.xlane.f32.xlu0 %v888
        %v927 = vpop.xlane.xlu0 %926
        %928 = vadd.xlane.f32.xlu0 %v889
        %v929 = vpop.xlane.xlu0 %928
        %930 = vadd.xlane.f32.xlu0 %v890
        %v931 = vpop.xlane.xlu0 %930
        %932 = vadd.xlane.f32.xlu0 %v891
        %v933 = vpop.xlane.xlu0 %932
        %934 = vadd.xlane.f32.xlu0 %v892
        %v935 = vpop.xlane.xlu0 %934
        %936 = vadd.xlane.f32.xlu0 %v893
        %v937 = vpop.xlane.xlu0 %936
        %938 = vadd.xlane.f32.xlu0 %v894
        %v939 = vpop.xlane.xlu0 %938
        %940 = vadd.xlane.f32.xlu0 %v895
        %v941 = vpop.xlane.xlu0 %940
        %942 = vadd.xlane.f32.xlu0 %v896
        %v943 = vpop.xlane.xlu0 %942
        %944 = vadd.xlane.f32.xlu0 %v897
        %v945 = vpop.xlane.xlu0 %944
        %946 = vadd.xlane.f32.xlu0 %v898
        %v947 = vpop.xlane.xlu0 %946
        %948 = vadd.xlane.f32.xlu0 %v899
        %v949 = vpop.xlane.xlu0 %948
        %950 = vadd.xlane.f32.xlu0 %v900
        %v951 = vpop.xlane.xlu0 %950
        %952 = vadd.xlane.f32.xlu0 %v901
        %v953 = vpop.xlane.xlu0 %952
        %954 = vadd.xlane.f32.xlu0 %v902
        %v955 = vpop.xlane.xlu0 %954
        %956 = vadd.xlane.f32.xlu0 %v903
        %v957 = vpop.xlane.xlu0 %956
        %958 = vadd.xlane.f32.xlu0 %v904
        %v959 = vpop.xlane.xlu0 %958
        %960 = vadd.xlane.f32.xlu0 %v905
        %v961 = vpop.xlane.xlu0 %960
        %962 = vadd.xlane.f32.xlu0 %v906
        %v963 = vpop.xlane.xlu0 %962
        %964 = vadd.xlane.f32.xlu0 %v907
        %v965 = vpop.xlane.xlu0 %964
        %966 = vadd.xlane.f32.xlu0 %v908
        %v967 = vpop.xlane.xlu0 %966
        %968 = vadd.xlane.f32.xlu0 %v909
        %v969 = vpop.xlane.xlu0 %968
        %970 = vadd.xlane.f32.xlu0 %v910
        %v971 = vpop.xlane.xlu0 %970
        %972 = vadd.xlane.f32.xlu0 %v911
        %v973 = vpop.xlane.xlu0 %972
        %974 = vadd.xlane.f32.xlu0 %v912
        %v975 = vpop.xlane.xlu0 %974
        %976 = vadd.xlane.f32.xlu0 %v913
        %v977 = vpop.xlane.xlu0 %976
        %v978 = vmul.f32 %v915, %v817
        %v979 = vmul.f32 %v917, %v817
        %v980 = vmul.f32 %v919, %v817
        %v981 = vmul.f32 %v921, %v817
        %v982 = vmul.f32 %v923, %v817
        %v983 = vmul.f32 %v925, %v817
        %v984 = vmul.f32 %v927, %v817
        %v985 = vmul.f32 %v929, %v817
        %v986 = vmul.f32 %v931, %v817
        %v987 = vmul.f32 %v933, %v817
        %v988 = vmul.f32 %v935, %v817
        %v989 = vmul.f32 %v937, %v817
        %v990 = vmul.f32 %v939, %v817
        %v991 = vmul.f32 %v941, %v817
        %v992 = vmul.f32 %v943, %v817
        %v993 = vmul.f32 %v945, %v817
        %v994 = vmul.f32 %v947, %v817
        %v995 = vmul.f32 %v949, %v817
        %v996 = vmul.f32 %v951, %v817
        %v997 = vmul.f32 %v953, %v817
        %v998 = vmul.f32 %v955, %v817
        %v999 = vmul.f32 %v957, %v817
        %v1000 = vmul.f32 %v959, %v817
        %v1001 = vmul.f32 %v961, %v817
        %v1002 = vmul.f32 %v963, %v817
        %v1003 = vmul.f32 %v965, %v817
        %v1004 = vmul.f32 %v967, %v817
        %v1005 = vmul.f32 %v969, %v817
        %v1006 = vmul.f32 %v971, %v817
        %v1007 = vmul.f32 %v973, %v817
        %v1008 = vmul.f32 %v975, %v817
        %v1009 = vmul.f32 %v977, %v817
        %v1010 = vadd.f32 %v978, 1e-12
        %v1011 = vadd.f32 %v979, 1e-12
        %v1012 = vadd.f32 %v980, 1e-12
        %v1013 = vadd.f32 %v981, 1e-12
        %v1014 = vadd.f32 %v982, 1e-12
        %v1015 = vadd.f32 %v983, 1e-12
        %v1016 = vadd.f32 %v984, 1e-12
        %v1017 = vadd.f32 %v985, 1e-12
        %v1018 = vadd.f32 %v986, 1e-12
        %v1019 = vadd.f32 %v987, 1e-12
        %v1020 = vadd.f32 %v988, 1e-12
        %v1021 = vadd.f32 %v989, 1e-12
        %v1022 = vadd.f32 %v990, 1e-12
        %v1023 = vadd.f32 %v991, 1e-12
        %v1024 = vadd.f32 %v992, 1e-12
        %v1025 = vadd.f32 %v993, 1e-12
        %v1026 = vadd.f32 %v994, 1e-12
        %v1027 = vadd.f32 %v995, 1e-12
        %v1028 = vadd.f32 %v996, 1e-12
        %v1029 = vadd.f32 %v997, 1e-12
        %v1030 = vadd.f32 %v998, 1e-12
        %v1031 = vadd.f32 %v999, 1e-12
        %v1032 = vadd.f32 %v1000, 1e-12
        %v1033 = vadd.f32 %v1001, 1e-12
        %v1034 = vadd.f32 %v1002, 1e-12
        %v1035 = vadd.f32 %v1003, 1e-12
        %v1036 = vadd.f32 %v1004, 1e-12
        %v1037 = vadd.f32 %v1005, 1e-12
        %v1038 = vadd.f32 %v1006, 1e-12
        %v1039 = vadd.f32 %v1007, 1e-12
        %v1040 = vadd.f32 %v1008, 1e-12
        %v1041 = vadd.f32 %v1009, 1e-12
        %v1042 = vrsqrt.pop %v1010
        %v1043 = vrsqrt.pop %v1011
        %v1044 = vrsqrt.pop %v1012
        %v1045 = vrsqrt.pop %v1013
        %v1046 = vrsqrt.pop %v1014
        %v1047 = vrsqrt.pop %v1015
        %v1048 = vrsqrt.pop %v1016
        %v1049 = vrsqrt.pop %v1017
        %v1050 = vrsqrt.pop %v1018
        %v1051 = vrsqrt.pop %v1019
        %v1052 = vrsqrt.pop %v1020
        %v1053 = vrsqrt.pop %v1021
        %v1054 = vrsqrt.pop %v1022
        %v1055 = vrsqrt.pop %v1023
        %v1056 = vrsqrt.pop %v1024
        %v1057 = vrsqrt.pop %v1025
        %v1058 = vrsqrt.pop %v1026
        %v1059 = vrsqrt.pop %v1027
        %v1060 = vrsqrt.pop %v1028
        %v1061 = vrsqrt.pop %v1029
        %v1062 = vrsqrt.pop %v1030
        %v1063 = vrsqrt.pop %v1031
        %v1064 = vrsqrt.pop %v1032
        %v1065 = vrsqrt.pop %v1033
        %v1066 = vrsqrt.pop %v1034
        %v1067 = vrsqrt.pop %v1035
        %v1068 = vrsqrt.pop %v1036
        %v1069 = vrsqrt.pop %v1037
        %v1070 = vrsqrt.pop %v1038
        %v1071 = vrsqrt.pop %v1039
        %v1072 = vrsqrt.pop %v1040
        %v1073 = vrsqrt.pop %v1041
        %v1074 = vld [vmem:[%s3] sm:$0x1]
        %v1076 = vlaneseq
        %v1077 = vshrl.u32 %v1076, 7
        %v1078 = vsub.s32 0, %v1077
        %v1079 = vrot.slane %v1074, %v1078
        %v1081 = vmul.f32 %v850, %v1079
        %v1082 = vmul.f32 %v851, %v1079
        %v1083 = vmul.f32 %v852, %v1079
        %v1084 = vmul.f32 %v853, %v1079
        %v1085 = vmul.f32 %v854, %v1079
        %v1086 = vmul.f32 %v855, %v1079
        %v1087 = vmul.f32 %v856, %v1079
        %v1088 = vmul.f32 %v857, %v1079
        %v1089 = vmul.f32 %v858, %v1079
        %v1090 = vmul.f32 %v859, %v1079
        %v1091 = vmul.f32 %v860, %v1079
        %v1092 = vmul.f32 %v861, %v1079
        %v1093 = vmul.f32 %v862, %v1079
        %v1094 = vmul.f32 %v863, %v1079
        %v1095 = vmul.f32 %v864, %v1079
        %v1096 = vmul.f32 %v865, %v1079
        %v1097 = vmul.f32 %v866, %v1079
        %v1098 = vmul.f32 %v867, %v1079
        %v1099 = vmul.f32 %v868, %v1079
        %v1100 = vmul.f32 %v869, %v1079
        %v1101 = vmul.f32 %v870, %v1079
        %v1102 = vmul.f32 %v871, %v1079
        %v1103 = vmul.f32 %v872, %v1079
        %v1104 = vmul.f32 %v873, %v1079
        %v1105 = vmul.f32 %v874, %v1079
        %v1106 = vmul.f32 %v875, %v1079
        %v1107 = vmul.f32 %v876, %v1079
        %v1108 = vmul.f32 %v877, %v1079
        %v1109 = vmul.f32 %v878, %v1079
        %v1110 = vmul.f32 %v879, %v1079
        %v1111 = vmul.f32 %v880, %v1079
        %v1112 = vmul.f32 %v881, %v1079
        %1113 = vadd.xlane.f32.xlu0 %v1081
        %v1114 = vpop.xlane.xlu0 %1113
        %1115 = vadd.xlane.f32.xlu0 %v1082
        %v1116 = vpop.xlane.xlu0 %1115
        %1117 = vadd.xlane.f32.xlu0 %v1083
        %v1118 = vpop.xlane.xlu0 %1117
        %1119 = vadd.xlane.f32.xlu0 %v1084
        %v1120 = vpop.xlane.xlu0 %1119
        %1121 = vadd.xlane.f32.xlu0 %v1085
        %v1122 = vpop.xlane.xlu0 %1121
        %1123 = vadd.xlane.f32.xlu0 %v1086
        %v1124 = vpop.xlane.xlu0 %1123
        %1125 = vadd.xlane.f32.xlu0 %v1087
        %v1126 = vpop.xlane.xlu0 %1125
        %1127 = vadd.xlane.f32.xlu0 %v1088
        %v1128 = vpop.xlane.xlu0 %1127
        %1129 = vadd.xlane.f32.xlu0 %v1089
        %v1130 = vpop.xlane.xlu0 %1129
        %1131 = vadd.xlane.f32.xlu0 %v1090
        %v1132 = vpop.xlane.xlu0 %1131
        %1133 = vadd.xlane.f32.xlu0 %v1091
        %v1134 = vpop.xlane.xlu0 %1133
        %1135 = vadd.xlane.f32.xlu0 %v1092
        %v1136 = vpop.xlane.xlu0 %1135
        %1137 = vadd.xlane.f32.xlu0 %v1093
        %v1138 = vpop.xlane.xlu0 %1137
        %1139 = vadd.xlane.f32.xlu0 %v1094
        %v1140 = vpop.xlane.xlu0 %1139
        %1141 = vadd.xlane.f32.xlu0 %v1095
        %v1142 = vpop.xlane.xlu0 %1141
        %1143 = vadd.xlane.f32.xlu0 %v1096
        %v1144 = vpop.xlane.xlu0 %1143
        %1145 = vadd.xlane.f32.xlu0 %v1097
        %v1146 = vpop.xlane.xlu0 %1145
        %1147 = vadd.xlane.f32.xlu0 %v1098
        %v1148 = vpop.xlane.xlu0 %1147
        %1149 = vadd.xlane.f32.xlu0 %v1099
        %v1150 = vpop.xlane.xlu0 %1149
        %1151 = vadd.xlane.f32.xlu0 %v1100
        %v1152 = vpop.xlane.xlu0 %1151
        %1153 = vadd.xlane.f32.xlu0 %v1101
        %v1154 = vpop.xlane.xlu0 %1153
        %1155 = vadd.xlane.f32.xlu0 %v1102
        %v1156 = vpop.xlane.xlu0 %1155
        %1157 = vadd.xlane.f32.xlu0 %v1103
        %v1158 = vpop.xlane.xlu0 %1157
        %1159 = vadd.xlane.f32.xlu0 %v1104
        %v1160 = vpop.xlane.xlu0 %1159
        %1161 = vadd.xlane.f32.xlu0 %v1105
        %v1162 = vpop.xlane.xlu0 %1161
        %1163 = vadd.xlane.f32.xlu0 %v1106
        %v1164 = vpop.xlane.xlu0 %1163
        %1165 = vadd.xlane.f32.xlu0 %v1107
        %v1166 = vpop.xlane.xlu0 %1165
        %1167 = vadd.xlane.f32.xlu0 %v1108
        %v1168 = vpop.xlane.xlu0 %1167
        %1169 = vadd.xlane.f32.xlu0 %v1109
        %v1170 = vpop.xlane.xlu0 %1169
        %1171 = vadd.xlane.f32.xlu0 %v1110
        %v1172 = vpop.xlane.xlu0 %1171
        %1173 = vadd.xlane.f32.xlu0 %v1111
        %v1174 = vpop.xlane.xlu0 %1173
        %1175 = vadd.xlane.f32.xlu0 %v1112
        %v1176 = vpop.xlane.xlu0 %1175
        %v1177 = vmul.f32 %v1114, %v1042
        %v1178 = vmul.f32 %v1116, %v1043
        %v1179 = vmul.f32 %v1118, %v1044
        %v1180 = vmul.f32 %v1120, %v1045
        %v1181 = vmul.f32 %v1122, %v1046
        %v1182 = vmul.f32 %v1124, %v1047
        %v1183 = vmul.f32 %v1126, %v1048
        %v1184 = vmul.f32 %v1128, %v1049
        %v1185 = vmul.f32 %v1130, %v1050
        %v1186 = vmul.f32 %v1132, %v1051
        %v1187 = vmul.f32 %v1134, %v1052
        %v1188 = vmul.f32 %v1136, %v1053
        %v1189 = vmul.f32 %v1138, %v1054
        %v1190 = vmul.f32 %v1140, %v1055
        %v1191 = vmul.f32 %v1142, %v1056
        %v1192 = vmul.f32 %v1144, %v1057
        %v1193 = vmul.f32 %v1146, %v1058
        %v1194 = vmul.f32 %v1148, %v1059
        %v1195 = vmul.f32 %v1150, %v1060
        %v1196 = vmul.f32 %v1152, %v1061
        %v1197 = vmul.f32 %v1154, %v1062
        %v1198 = vmul.f32 %v1156, %v1063
        %v1199 = vmul.f32 %v1158, %v1064
        %v1200 = vmul.f32 %v1160, %v1065
        %v1201 = vmul.f32 %v1162, %v1066
        %v1202 = vmul.f32 %v1164, %v1067
        %v1203 = vmul.f32 %v1166, %v1068
        %v1204 = vmul.f32 %v1168, %v1069
        %v1205 = vmul.f32 %v1170, %v1070
        %v1206 = vmul.f32 %v1172, %v1071
        %v1207 = vmul.f32 %v1174, %v1072
        %v1208 = vmul.f32 %v1176, %v1073
        %v1209 = vld [vmem:[#allocation2] sm:$0x1]
        %1211 = vset.pattern.permute.xlu0 0
        %1212 = vperm.xlu0 %1211, %v1209
        %v1213 = vpop.permute.xlu0 %1212
        %v1215 = vlaneseq
        %v1216 = vshrl.u32 %v1215, 7
        %v1217 = vsub.s32 0, %v1216
        %v1218 = vrot.slane %v1213, %v1217
        %v1219 = vadd.f32 %v1177, %v1218
        %v1220 = vadd.f32 %v1178, %v1218
        %v1221 = vadd.f32 %v1179, %v1218
        %v1222 = vadd.f32 %v1180, %v1218
        %v1223 = vadd.f32 %v1181, %v1218
        %v1224 = vadd.f32 %v1182, %v1218
        %v1225 = vadd.f32 %v1183, %v1218
        %v1226 = vadd.f32 %v1184, %v1218
        %v1227 = vadd.f32 %v1185, %v1218
        %v1228 = vadd.f32 %v1186, %v1218
        %v1229 = vadd.f32 %v1187, %v1218
        %v1230 = vadd.f32 %v1188, %v1218
        %v1231 = vadd.f32 %v1189, %v1218
        %v1232 = vadd.f32 %v1190, %v1218
        %v1233 = vadd.f32 %v1191, %v1218
        %v1234 = vadd.f32 %v1192, %v1218
        %v1235 = vadd.f32 %v1193, %v1218
        %v1236 = vadd.f32 %v1194, %v1218
        %v1237 = vadd.f32 %v1195, %v1218
        %v1238 = vadd.f32 %v1196, %v1218
        %v1239 = vadd.f32 %v1197, %v1218
        %v1240 = vadd.f32 %v1198, %v1218
        %v1241 = vadd.f32 %v1199, %v1218
        %v1242 = vadd.f32 %v1200, %v1218
        %v1243 = vadd.f32 %v1201, %v1218
        %v1244 = vadd.f32 %v1202, %v1218
        %v1245 = vadd.f32 %v1203, %v1218
        %v1246 = vadd.f32 %v1204, %v1218
        %v1247 = vadd.f32 %v1205, %v1218
        %v1248 = vadd.f32 %v1206, %v1218
        %v1249 = vadd.f32 %v1207, %v1218
        %v1250 = vadd.f32 %v1208, %v1218
        %v1283 = vlaneseq
        %v1284 = vshrl.u32 %v1283, 7
        %v1285 = vsub.s32 0, %v1284
        %v1286 = vrot.slane %v1219, %v1285
        %v1287 = vlaneseq
        %v1288 = vshrl.u32 %v1287, 7
        %v1289 = vsub.s32 1, %v1288
        %v1290 = vrot.slane %v1219, %v1289
        %v1291 = vlaneseq
        %v1292 = vshrl.u32 %v1291, 7
        %v1293 = vsub.s32 2, %v1292
        %v1294 = vrot.slane %v1219, %v1293
        %v1295 = vlaneseq
        %v1296 = vshrl.u32 %v1295, 7
        %v1297 = vsub.s32 3, %v1296
        %v1298 = vrot.slane %v1219, %v1297
        %v1299 = vlaneseq
        %v1300 = vshrl.u32 %v1299, 7
        %v1301 = vsub.s32 4, %v1300
        %v1302 = vrot.slane %v1219, %v1301
        %v1303 = vlaneseq
        %v1304 = vshrl.u32 %v1303, 7
        %v1305 = vsub.s32 5, %v1304
        %v1306 = vrot.slane %v1219, %v1305
        %v1307 = vlaneseq
        %v1308 = vshrl.u32 %v1307, 7
        %v1309 = vsub.s32 6, %v1308
        %v1310 = vrot.slane %v1219, %v1309
        %v1311 = vlaneseq
        %v1312 = vshrl.u32 %v1311, 7
        %v1313 = vsub.s32 7, %v1312
        %v1314 = vrot.slane %v1219, %v1313
        %v1315 = vlaneseq
        %v1316 = vshrl.u32 %v1315, 7
        %v1317 = vsub.s32 0, %v1316
        %v1318 = vrot.slane %v1220, %v1317
        %v1319 = vlaneseq
        %v1320 = vshrl.u32 %v1319, 7
        %v1321 = vsub.s32 1, %v1320
        %v1322 = vrot.slane %v1220, %v1321
        %v1323 = vlaneseq
        %v1324 = vshrl.u32 %v1323, 7
        %v1325 = vsub.s32 2, %v1324
        %v1326 = vrot.slane %v1220, %v1325
        %v1327 = vlaneseq
        %v1328 = vshrl.u32 %v1327, 7
        %v1329 = vsub.s32 3, %v1328
        %v1330 = vrot.slane %v1220, %v1329
        %v1331 = vlaneseq
        %v1332 = vshrl.u32 %v1331, 7
        %v1333 = vsub.s32 4, %v1332
        %v1334 = vrot.slane %v1220, %v1333
        %v1335 = vlaneseq
        %v1336 = vshrl.u32 %v1335, 7
        %v1337 = vsub.s32 5, %v1336
        %v1338 = vrot.slane %v1220, %v1337
        %v1339 = vlaneseq
        %v1340 = vshrl.u32 %v1339, 7
        %v1341 = vsub.s32 6, %v1340
        %v1342 = vrot.slane %v1220, %v1341
        %v1343 = vlaneseq
        %v1344 = vshrl.u32 %v1343, 7
        %v1345 = vsub.s32 7, %v1344
        %v1346 = vrot.slane %v1220, %v1345
        %v1347 = vlaneseq
        %v1348 = vshrl.u32 %v1347, 7
        %v1349 = vsub.s32 0, %v1348
        %v1350 = vrot.slane %v1221, %v1349
        %v1351 = vlaneseq
        %v1352 = vshrl.u32 %v1351, 7
        %v1353 = vsub.s32 1, %v1352
        %v1354 = vrot.slane %v1221, %v1353
        %v1355 = vlaneseq
        %v1356 = vshrl.u32 %v1355, 7
        %v1357 = vsub.s32 2, %v1356
        %v1358 = vrot.slane %v1221, %v1357
        %v1359 = vlaneseq
        %v1360 = vshrl.u32 %v1359, 7
        %v1361 = vsub.s32 3, %v1360
        %v1362 = vrot.slane %v1221, %v1361
        %v1363 = vlaneseq
        %v1364 = vshrl.u32 %v1363, 7
        %v1365 = vsub.s32 4, %v1364
        %v1366 = vrot.slane %v1221, %v1365
        %v1367 = vlaneseq
        %v1368 = vshrl.u32 %v1367, 7
        %v1369 = vsub.s32 5, %v1368
        %v1370 = vrot.slane %v1221, %v1369
        %v1371 = vlaneseq
        %v1372 = vshrl.u32 %v1371, 7
        %v1373 = vsub.s32 6, %v1372
        %v1374 = vrot.slane %v1221, %v1373
        %v1375 = vlaneseq
        %v1376 = vshrl.u32 %v1375, 7
        %v1377 = vsub.s32 7, %v1376
        %v1378 = vrot.slane %v1221, %v1377
        %v1379 = vlaneseq
        %v1380 = vshrl.u32 %v1379, 7
        %v1381 = vsub.s32 0, %v1380
        %v1382 = vrot.slane %v1222, %v1381
        %v1383 = vlaneseq
        %v1384 = vshrl.u32 %v1383, 7
        %v1385 = vsub.s32 1, %v1384
        %v1386 = vrot.slane %v1222, %v1385
        %v1387 = vlaneseq
        %v1388 = vshrl.u32 %v1387, 7
        %v1389 = vsub.s32 2, %v1388
        %v1390 = vrot.slane %v1222, %v1389
        %v1391 = vlaneseq
        %v1392 = vshrl.u32 %v1391, 7
        %v1393 = vsub.s32 3, %v1392
        %v1394 = vrot.slane %v1222, %v1393
        %v1395 = vlaneseq
        %v1396 = vshrl.u32 %v1395, 7
        %v1397 = vsub.s32 4, %v1396
        %v1398 = vrot.slane %v1222, %v1397
        %v1399 = vlaneseq
        %v1400 = vshrl.u32 %v1399, 7
        %v1401 = vsub.s32 5, %v1400
        %v1402 = vrot.slane %v1222, %v1401
        %v1403 = vlaneseq
        %v1404 = vshrl.u32 %v1403, 7
        %v1405 = vsub.s32 6, %v1404
        %v1406 = vrot.slane %v1222, %v1405
        %v1407 = vlaneseq
        %v1408 = vshrl.u32 %v1407, 7
        %v1409 = vsub.s32 7, %v1408
        %v1410 = vrot.slane %v1222, %v1409
        %v1411 = vlaneseq
        %v1412 = vshrl.u32 %v1411, 7
        %v1413 = vsub.s32 0, %v1412
        %v1414 = vrot.slane %v1223, %v1413
        %v1415 = vlaneseq
        %v1416 = vshrl.u32 %v1415, 7
        %v1417 = vsub.s32 1, %v1416
        %v1418 = vrot.slane %v1223, %v1417
        %v1419 = vlaneseq
        %v1420 = vshrl.u32 %v1419, 7
        %v1421 = vsub.s32 2, %v1420
        %v1422 = vrot.slane %v1223, %v1421
        %v1423 = vlaneseq
        %v1424 = vshrl.u32 %v1423, 7
        %v1425 = vsub.s32 3, %v1424
        %v1426 = vrot.slane %v1223, %v1425
        %v1427 = vlaneseq
        %v1428 = vshrl.u32 %v1427, 7
        %v1429 = vsub.s32 4, %v1428
        %v1430 = vrot.slane %v1223, %v1429
        %v1431 = vlaneseq
        %v1432 = vshrl.u32 %v1431, 7
        %v1433 = vsub.s32 5, %v1432
        %v1434 = vrot.slane %v1223, %v1433
        %v1435 = vlaneseq
        %v1436 = vshrl.u32 %v1435, 7
        %v1437 = vsub.s32 6, %v1436
        %v1438 = vrot.slane %v1223, %v1437
        %v1439 = vlaneseq
        %v1440 = vshrl.u32 %v1439, 7
        %v1441 = vsub.s32 7, %v1440
        %v1442 = vrot.slane %v1223, %v1441
        %v1443 = vlaneseq
        %v1444 = vshrl.u32 %v1443, 7
        %v1445 = vsub.s32 0, %v1444
        %v1446 = vrot.slane %v1224, %v1445
        %v1447 = vlaneseq
        %v1448 = vshrl.u32 %v1447, 7
        %v1449 = vsub.s32 1, %v1448
        %v1450 = vrot.slane %v1224, %v1449
        %v1451 = vlaneseq
        %v1452 = vshrl.u32 %v1451, 7
        %v1453 = vsub.s32 2, %v1452
        %v1454 = vrot.slane %v1224, %v1453
        %v1455 = vlaneseq
        %v1456 = vshrl.u32 %v1455, 7
        %v1457 = vsub.s32 3, %v1456
        %v1458 = vrot.slane %v1224, %v1457
        %v1459 = vlaneseq
        %v1460 = vshrl.u32 %v1459, 7
        %v1461 = vsub.s32 4, %v1460
        %v1462 = vrot.slane %v1224, %v1461
        %v1463 = vlaneseq
        %v1464 = vshrl.u32 %v1463, 7
        %v1465 = vsub.s32 5, %v1464
        %v1466 = vrot.slane %v1224, %v1465
        %v1467 = vlaneseq
        %v1468 = vshrl.u32 %v1467, 7
        %v1469 = vsub.s32 6, %v1468
        %v1470 = vrot.slane %v1224, %v1469
        %v1471 = vlaneseq
        %v1472 = vshrl.u32 %v1471, 7
        %v1473 = vsub.s32 7, %v1472
        %v1474 = vrot.slane %v1224, %v1473
        %v1475 = vlaneseq
        %v1476 = vshrl.u32 %v1475, 7
        %v1477 = vsub.s32 0, %v1476
        %v1478 = vrot.slane %v1225, %v1477
        %v1479 = vlaneseq
        %v1480 = vshrl.u32 %v1479, 7
        %v1481 = vsub.s32 1, %v1480
        %v1482 = vrot.slane %v1225, %v1481
        %v1483 = vlaneseq
        %v1484 = vshrl.u32 %v1483, 7
        %v1485 = vsub.s32 2, %v1484
        %v1486 = vrot.slane %v1225, %v1485
        %v1487 = vlaneseq
        %v1488 = vshrl.u32 %v1487, 7
        %v1489 = vsub.s32 3, %v1488
        %v1490 = vrot.slane %v1225, %v1489
        %v1491 = vlaneseq
        %v1492 = vshrl.u32 %v1491, 7
        %v1493 = vsub.s32 4, %v1492
        %v1494 = vrot.slane %v1225, %v1493
        %v1495 = vlaneseq
        %v1496 = vshrl.u32 %v1495, 7
        %v1497 = vsub.s32 5, %v1496
        %v1498 = vrot.slane %v1225, %v1497
        %v1499 = vlaneseq
        %v1500 = vshrl.u32 %v1499, 7
        %v1501 = vsub.s32 6, %v1500
        %v1502 = vrot.slane %v1225, %v1501
        %v1503 = vlaneseq
        %v1504 = vshrl.u32 %v1503, 7
        %v1505 = vsub.s32 7, %v1504
        %v1506 = vrot.slane %v1225, %v1505
        %v1507 = vlaneseq
        %v1508 = vshrl.u32 %v1507, 7
        %v1509 = vsub.s32 0, %v1508
        %v1510 = vrot.slane %v1226, %v1509
        %v1511 = vlaneseq
        %v1512 = vshrl.u32 %v1511, 7
        %v1513 = vsub.s32 1, %v1512
        %v1514 = vrot.slane %v1226, %v1513
        %v1515 = vlaneseq
        %v1516 = vshrl.u32 %v1515, 7
        %v1517 = vsub.s32 2, %v1516
        %v1518 = vrot.slane %v1226, %v1517
        %v1519 = vlaneseq
        %v1520 = vshrl.u32 %v1519, 7
        %v1521 = vsub.s32 3, %v1520
        %v1522 = vrot.slane %v1226, %v1521
        %v1523 = vlaneseq
        %v1524 = vshrl.u32 %v1523, 7
        %v1525 = vsub.s32 4, %v1524
        %v1526 = vrot.slane %v1226, %v1525
        %v1527 = vlaneseq
        %v1528 = vshrl.u32 %v1527, 7
        %v1529 = vsub.s32 5, %v1528
        %v1530 = vrot.slane %v1226, %v1529
        %v1531 = vlaneseq
        %v1532 = vshrl.u32 %v1531, 7
        %v1533 = vsub.s32 6, %v1532
        %v1534 = vrot.slane %v1226, %v1533
        %v1535 = vlaneseq
        %v1536 = vshrl.u32 %v1535, 7
        %v1537 = vsub.s32 7, %v1536
        %v1538 = vrot.slane %v1226, %v1537
        %v1539 = vlaneseq
        %v1540 = vshrl.u32 %v1539, 7
        %v1541 = vsub.s32 0, %v1540
        %v1542 = vrot.slane %v1227, %v1541
        %v1543 = vlaneseq
        %v1544 = vshrl.u32 %v1543, 7
        %v1545 = vsub.s32 1, %v1544
        %v1546 = vrot.slane %v1227, %v1545
        %v1547 = vlaneseq
        %v1548 = vshrl.u32 %v1547, 7
        %v1549 = vsub.s32 2, %v1548
        %v1550 = vrot.slane %v1227, %v1549
        %v1551 = vlaneseq
        %v1552 = vshrl.u32 %v1551, 7
        %v1553 = vsub.s32 3, %v1552
        %v1554 = vrot.slane %v1227, %v1553
        %v1555 = vlaneseq
        %v1556 = vshrl.u32 %v1555, 7
        %v1557 = vsub.s32 4, %v1556
        %v1558 = vrot.slane %v1227, %v1557
        %v1559 = vlaneseq
        %v1560 = vshrl.u32 %v1559, 7
        %v1561 = vsub.s32 5, %v1560
        %v1562 = vrot.slane %v1227, %v1561
        %v1563 = vlaneseq
        %v1564 = vshrl.u32 %v1563, 7
        %v1565 = vsub.s32 6, %v1564
        %v1566 = vrot.slane %v1227, %v1565
        %v1567 = vlaneseq
        %v1568 = vshrl.u32 %v1567, 7
        %v1569 = vsub.s32 7, %v1568
        %v1570 = vrot.slane %v1227, %v1569
        %v1571 = vlaneseq
        %v1572 = vshrl.u32 %v1571, 7
        %v1573 = vsub.s32 0, %v1572
        %v1574 = vrot.slane %v1228, %v1573
        %v1575 = vlaneseq
        %v1576 = vshrl.u32 %v1575, 7
        %v1577 = vsub.s32 1, %v1576
        %v1578 = vrot.slane %v1228, %v1577
        %v1579 = vlaneseq
        %v1580 = vshrl.u32 %v1579, 7
        %v1581 = vsub.s32 2, %v1580
        %v1582 = vrot.slane %v1228, %v1581
        %v1583 = vlaneseq
        %v1584 = vshrl.u32 %v1583, 7
        %v1585 = vsub.s32 3, %v1584
        %v1586 = vrot.slane %v1228, %v1585
        %v1587 = vlaneseq
        %v1588 = vshrl.u32 %v1587, 7
        %v1589 = vsub.s32 4, %v1588
        %v1590 = vrot.slane %v1228, %v1589
        %v1591 = vlaneseq
        %v1592 = vshrl.u32 %v1591, 7
        %v1593 = vsub.s32 5, %v1592
        %v1594 = vrot.slane %v1228, %v1593
        %v1595 = vlaneseq
        %v1596 = vshrl.u32 %v1595, 7
        %v1597 = vsub.s32 6, %v1596
        %v1598 = vrot.slane %v1228, %v1597
        %v1599 = vlaneseq
        %v1600 = vshrl.u32 %v1599, 7
        %v1601 = vsub.s32 7, %v1600
        %v1602 = vrot.slane %v1228, %v1601
        %v1603 = vlaneseq
        %v1604 = vshrl.u32 %v1603, 7
        %v1605 = vsub.s32 0, %v1604
        %v1606 = vrot.slane %v1229, %v1605
        %v1607 = vlaneseq
        %v1608 = vshrl.u32 %v1607, 7
        %v1609 = vsub.s32 1, %v1608
        %v1610 = vrot.slane %v1229, %v1609
        %v1611 = vlaneseq
        %v1612 = vshrl.u32 %v1611, 7
        %v1613 = vsub.s32 2, %v1612
        %v1614 = vrot.slane %v1229, %v1613
        %v1615 = vlaneseq
        %v1616 = vshrl.u32 %v1615, 7
        %v1617 = vsub.s32 3, %v1616
        %v1618 = vrot.slane %v1229, %v1617
        %v1619 = vlaneseq
        %v1620 = vshrl.u32 %v1619, 7
        %v1621 = vsub.s32 4, %v1620
        %v1622 = vrot.slane %v1229, %v1621
        %v1623 = vlaneseq
        %v1624 = vshrl.u32 %v1623, 7
        %v1625 = vsub.s32 5, %v1624
        %v1626 = vrot.slane %v1229, %v1625
        %v1627 = vlaneseq
        %v1628 = vshrl.u32 %v1627, 7
        %v1629 = vsub.s32 6, %v1628
        %v1630 = vrot.slane %v1229, %v1629
        %v1631 = vlaneseq
        %v1632 = vshrl.u32 %v1631, 7
        %v1633 = vsub.s32 7, %v1632
        %v1634 = vrot.slane %v1229, %v1633
        %v1635 = vlaneseq
        %v1636 = vshrl.u32 %v1635, 7
        %v1637 = vsub.s32 0, %v1636
        %v1638 = vrot.slane %v1230, %v1637
        %v1639 = vlaneseq
        %v1640 = vshrl.u32 %v1639, 7
        %v1641 = vsub.s32 1, %v1640
        %v1642 = vrot.slane %v1230, %v1641
        %v1643 = vlaneseq
        %v1644 = vshrl.u32 %v1643, 7
        %v1645 = vsub.s32 2, %v1644
        %v1646 = vrot.slane %v1230, %v1645
        %v1647 = vlaneseq
        %v1648 = vshrl.u32 %v1647, 7
        %v1649 = vsub.s32 3, %v1648
        %v1650 = vrot.slane %v1230, %v1649
        %v1651 = vlaneseq
        %v1652 = vshrl.u32 %v1651, 7
        %v1653 = vsub.s32 4, %v1652
        %v1654 = vrot.slane %v1230, %v1653
        %v1655 = vlaneseq
        %v1656 = vshrl.u32 %v1655, 7
        %v1657 = vsub.s32 5, %v1656
        %v1658 = vrot.slane %v1230, %v1657
        %v1659 = vlaneseq
        %v1660 = vshrl.u32 %v1659, 7
        %v1661 = vsub.s32 6, %v1660
        %v1662 = vrot.slane %v1230, %v1661
        %v1663 = vlaneseq
        %v1664 = vshrl.u32 %v1663, 7
        %v1665 = vsub.s32 7, %v1664
        %v1666 = vrot.slane %v1230, %v1665
        %v1667 = vlaneseq
        %v1668 = vshrl.u32 %v1667, 7
        %v1669 = vsub.s32 0, %v1668
        %v1670 = vrot.slane %v1231, %v1669
        %v1671 = vlaneseq
        %v1672 = vshrl.u32 %v1671, 7
        %v1673 = vsub.s32 1, %v1672
        %v1674 = vrot.slane %v1231, %v1673
        %v1675 = vlaneseq
        %v1676 = vshrl.u32 %v1675, 7
        %v1677 = vsub.s32 2, %v1676
        %v1678 = vrot.slane %v1231, %v1677
        %v1679 = vlaneseq
        %v1680 = vshrl.u32 %v1679, 7
        %v1681 = vsub.s32 3, %v1680
        %v1682 = vrot.slane %v1231, %v1681
        %v1683 = vlaneseq
        %v1684 = vshrl.u32 %v1683, 7
        %v1685 = vsub.s32 4, %v1684
        %v1686 = vrot.slane %v1231, %v1685
        %v1687 = vlaneseq
        %v1688 = vshrl.u32 %v1687, 7
        %v1689 = vsub.s32 5, %v1688
        %v1690 = vrot.slane %v1231, %v1689
        %v1691 = vlaneseq
        %v1692 = vshrl.u32 %v1691, 7
        %v1693 = vsub.s32 6, %v1692
        %v1694 = vrot.slane %v1231, %v1693
        %v1695 = vlaneseq
        %v1696 = vshrl.u32 %v1695, 7
        %v1697 = vsub.s32 7, %v1696
        %v1698 = vrot.slane %v1231, %v1697
        %v1699 = vlaneseq
        %v1700 = vshrl.u32 %v1699, 7
        %v1701 = vsub.s32 0, %v1700
        %v1702 = vrot.slane %v1232, %v1701
        %v1703 = vlaneseq
        %v1704 = vshrl.u32 %v1703, 7
        %v1705 = vsub.s32 1, %v1704
        %v1706 = vrot.slane %v1232, %v1705
        %v1707 = vlaneseq
        %v1708 = vshrl.u32 %v1707, 7
        %v1709 = vsub.s32 2, %v1708
        %v1710 = vrot.slane %v1232, %v1709
        %v1711 = vlaneseq
        %v1712 = vshrl.u32 %v1711, 7
        %v1713 = vsub.s32 3, %v1712
        %v1714 = vrot.slane %v1232, %v1713
        %v1715 = vlaneseq
        %v1716 = vshrl.u32 %v1715, 7
        %v1717 = vsub.s32 4, %v1716
        %v1718 = vrot.slane %v1232, %v1717
        %v1719 = vlaneseq
        %v1720 = vshrl.u32 %v1719, 7
        %v1721 = vsub.s32 5, %v1720
        %v1722 = vrot.slane %v1232, %v1721
        %v1723 = vlaneseq
        %v1724 = vshrl.u32 %v1723, 7
        %v1725 = vsub.s32 6, %v1724
        %v1726 = vrot.slane %v1232, %v1725
        %v1727 = vlaneseq
        %v1728 = vshrl.u32 %v1727, 7
        %v1729 = vsub.s32 7, %v1728
        %v1730 = vrot.slane %v1232, %v1729
        %v1731 = vlaneseq
        %v1732 = vshrl.u32 %v1731, 7
        %v1733 = vsub.s32 0, %v1732
        %v1734 = vrot.slane %v1233, %v1733
        %v1735 = vlaneseq
        %v1736 = vshrl.u32 %v1735, 7
        %v1737 = vsub.s32 1, %v1736
        %v1738 = vrot.slane %v1233, %v1737
        %v1739 = vlaneseq
        %v1740 = vshrl.u32 %v1739, 7
        %v1741 = vsub.s32 2, %v1740
        %v1742 = vrot.slane %v1233, %v1741
        %v1743 = vlaneseq
        %v1744 = vshrl.u32 %v1743, 7
        %v1745 = vsub.s32 3, %v1744
        %v1746 = vrot.slane %v1233, %v1745
        %v1747 = vlaneseq
        %v1748 = vshrl.u32 %v1747, 7
        %v1749 = vsub.s32 4, %v1748
        %v1750 = vrot.slane %v1233, %v1749
        %v1751 = vlaneseq
        %v1752 = vshrl.u32 %v1751, 7
        %v1753 = vsub.s32 5, %v1752
        %v1754 = vrot.slane %v1233, %v1753
        %v1755 = vlaneseq
        %v1756 = vshrl.u32 %v1755, 7
        %v1757 = vsub.s32 6, %v1756
        %v1758 = vrot.slane %v1233, %v1757
        %v1759 = vlaneseq
        %v1760 = vshrl.u32 %v1759, 7
        %v1761 = vsub.s32 7, %v1760
        %v1762 = vrot.slane %v1233, %v1761
        %v1763 = vlaneseq
        %v1764 = vshrl.u32 %v1763, 7
        %v1765 = vsub.s32 0, %v1764
        %v1766 = vrot.slane %v1234, %v1765
        %v1767 = vlaneseq
        %v1768 = vshrl.u32 %v1767, 7
        %v1769 = vsub.s32 1, %v1768
        %v1770 = vrot.slane %v1234, %v1769
        %v1771 = vlaneseq
        %v1772 = vshrl.u32 %v1771, 7
        %v1773 = vsub.s32 2, %v1772
        %v1774 = vrot.slane %v1234, %v1773
        %v1775 = vlaneseq
        %v1776 = vshrl.u32 %v1775, 7
        %v1777 = vsub.s32 3, %v1776
        %v1778 = vrot.slane %v1234, %v1777
        %v1779 = vlaneseq
        %v1780 = vshrl.u32 %v1779, 7
        %v1781 = vsub.s32 4, %v1780
        %v1782 = vrot.slane %v1234, %v1781
        %v1783 = vlaneseq
        %v1784 = vshrl.u32 %v1783, 7
        %v1785 = vsub.s32 5, %v1784
        %v1786 = vrot.slane %v1234, %v1785
        %v1787 = vlaneseq
        %v1788 = vshrl.u32 %v1787, 7
        %v1789 = vsub.s32 6, %v1788
        %v1790 = vrot.slane %v1234, %v1789
        %v1791 = vlaneseq
        %v1792 = vshrl.u32 %v1791, 7
        %v1793 = vsub.s32 7, %v1792
        %v1794 = vrot.slane %v1234, %v1793
        %v1795 = vlaneseq
        %v1796 = vshrl.u32 %v1795, 7
        %v1797 = vsub.s32 0, %v1796
        %v1798 = vrot.slane %v1235, %v1797
        %v1799 = vlaneseq
        %v1800 = vshrl.u32 %v1799, 7
        %v1801 = vsub.s32 1, %v1800
        %v1802 = vrot.slane %v1235, %v1801
        %v1803 = vlaneseq
        %v1804 = vshrl.u32 %v1803, 7
        %v1805 = vsub.s32 2, %v1804
        %v1806 = vrot.slane %v1235, %v1805
        %v1807 = vlaneseq
        %v1808 = vshrl.u32 %v1807, 7
        %v1809 = vsub.s32 3, %v1808
        %v1810 = vrot.slane %v1235, %v1809
        %v1811 = vlaneseq
        %v1812 = vshrl.u32 %v1811, 7
        %v1813 = vsub.s32 4, %v1812
        %v1814 = vrot.slane %v1235, %v1813
        %v1815 = vlaneseq
        %v1816 = vshrl.u32 %v1815, 7
        %v1817 = vsub.s32 5, %v1816
        %v1818 = vrot.slane %v1235, %v1817
        %v1819 = vlaneseq
        %v1820 = vshrl.u32 %v1819, 7
        %v1821 = vsub.s32 6, %v1820
        %v1822 = vrot.slane %v1235, %v1821
        %v1823 = vlaneseq
        %v1824 = vshrl.u32 %v1823, 7
        %v1825 = vsub.s32 7, %v1824
        %v1826 = vrot.slane %v1235, %v1825
        %v1827 = vlaneseq
        %v1828 = vshrl.u32 %v1827, 7
        %v1829 = vsub.s32 0, %v1828
        %v1830 = vrot.slane %v1236, %v1829
        %v1831 = vlaneseq
        %v1832 = vshrl.u32 %v1831, 7
        %v1833 = vsub.s32 1, %v1832
        %v1834 = vrot.slane %v1236, %v1833
        %v1835 = vlaneseq
        %v1836 = vshrl.u32 %v1835, 7
        %v1837 = vsub.s32 2, %v1836
        %v1838 = vrot.slane %v1236, %v1837
        %v1839 = vlaneseq
        %v1840 = vshrl.u32 %v1839, 7
        %v1841 = vsub.s32 3, %v1840
        %v1842 = vrot.slane %v1236, %v1841
        %v1843 = vlaneseq
        %v1844 = vshrl.u32 %v1843, 7
        %v1845 = vsub.s32 4, %v1844
        %v1846 = vrot.slane %v1236, %v1845
        %v1847 = vlaneseq
        %v1848 = vshrl.u32 %v1847, 7
        %v1849 = vsub.s32 5, %v1848
        %v1850 = vrot.slane %v1236, %v1849
        %v1851 = vlaneseq
        %v1852 = vshrl.u32 %v1851, 7
        %v1853 = vsub.s32 6, %v1852
        %v1854 = vrot.slane %v1236, %v1853
        %v1855 = vlaneseq
        %v1856 = vshrl.u32 %v1855, 7
        %v1857 = vsub.s32 7, %v1856
        %v1858 = vrot.slane %v1236, %v1857
        %v1859 = vlaneseq
        %v1860 = vshrl.u32 %v1859, 7
        %v1861 = vsub.s32 0, %v1860
        %v1862 = vrot.slane %v1237, %v1861
        %v1863 = vlaneseq
        %v1864 = vshrl.u32 %v1863, 7
        %v1865 = vsub.s32 1, %v1864
        %v1866 = vrot.slane %v1237, %v1865
        %v1867 = vlaneseq
        %v1868 = vshrl.u32 %v1867, 7
        %v1869 = vsub.s32 2, %v1868
        %v1870 = vrot.slane %v1237, %v1869
        %v1871 = vlaneseq
        %v1872 = vshrl.u32 %v1871, 7
        %v1873 = vsub.s32 3, %v1872
        %v1874 = vrot.slane %v1237, %v1873
        %v1875 = vlaneseq
        %v1876 = vshrl.u32 %v1875, 7
        %v1877 = vsub.s32 4, %v1876
        %v1878 = vrot.slane %v1237, %v1877
        %v1879 = vlaneseq
        %v1880 = vshrl.u32 %v1879, 7
        %v1881 = vsub.s32 5, %v1880
        %v1882 = vrot.slane %v1237, %v1881
        %v1883 = vlaneseq
        %v1884 = vshrl.u32 %v1883, 7
        %v1885 = vsub.s32 6, %v1884
        %v1886 = vrot.slane %v1237, %v1885
        %v1887 = vlaneseq
        %v1888 = vshrl.u32 %v1887, 7
        %v1889 = vsub.s32 7, %v1888
        %v1890 = vrot.slane %v1237, %v1889
        %v1891 = vlaneseq
        %v1892 = vshrl.u32 %v1891, 7
        %v1893 = vsub.s32 0, %v1892
        %v1894 = vrot.slane %v1238, %v1893
        %v1895 = vlaneseq
        %v1896 = vshrl.u32 %v1895, 7
        %v1897 = vsub.s32 1, %v1896
        %v1898 = vrot.slane %v1238, %v1897
        %v1899 = vlaneseq
        %v1900 = vshrl.u32 %v1899, 7
        %v1901 = vsub.s32 2, %v1900
        %v1902 = vrot.slane %v1238, %v1901
        %v1903 = vlaneseq
        %v1904 = vshrl.u32 %v1903, 7
        %v1905 = vsub.s32 3, %v1904
        %v1906 = vrot.slane %v1238, %v1905
        %v1907 = vlaneseq
        %v1908 = vshrl.u32 %v1907, 7
        %v1909 = vsub.s32 4, %v1908
        %v1910 = vrot.slane %v1238, %v1909
        %v1911 = vlaneseq
        %v1912 = vshrl.u32 %v1911, 7
        %v1913 = vsub.s32 5, %v1912
        %v1914 = vrot.slane %v1238, %v1913
        %v1915 = vlaneseq
        %v1916 = vshrl.u32 %v1915, 7
        %v1917 = vsub.s32 6, %v1916
        %v1918 = vrot.slane %v1238, %v1917
        %v1919 = vlaneseq
        %v1920 = vshrl.u32 %v1919, 7
        %v1921 = vsub.s32 7, %v1920
        %v1922 = vrot.slane %v1238, %v1921
        %v1923 = vlaneseq
        %v1924 = vshrl.u32 %v1923, 7
        %v1925 = vsub.s32 0, %v1924
        %v1926 = vrot.slane %v1239, %v1925
        %v1927 = vlaneseq
        %v1928 = vshrl.u32 %v1927, 7
        %v1929 = vsub.s32 1, %v1928
        %v1930 = vrot.slane %v1239, %v1929
        %v1931 = vlaneseq
        %v1932 = vshrl.u32 %v1931, 7
        %v1933 = vsub.s32 2, %v1932
        %v1934 = vrot.slane %v1239, %v1933
        %v1935 = vlaneseq
        %v1936 = vshrl.u32 %v1935, 7
        %v1937 = vsub.s32 3, %v1936
        %v1938 = vrot.slane %v1239, %v1937
        %v1939 = vlaneseq
        %v1940 = vshrl.u32 %v1939, 7
        %v1941 = vsub.s32 4, %v1940
        %v1942 = vrot.slane %v1239, %v1941
        %v1943 = vlaneseq
        %v1944 = vshrl.u32 %v1943, 7
        %v1945 = vsub.s32 5, %v1944
        %v1946 = vrot.slane %v1239, %v1945
        %v1947 = vlaneseq
        %v1948 = vshrl.u32 %v1947, 7
        %v1949 = vsub.s32 6, %v1948
        %v1950 = vrot.slane %v1239, %v1949
        %v1951 = vlaneseq
        %v1952 = vshrl.u32 %v1951, 7
        %v1953 = vsub.s32 7, %v1952
        %v1954 = vrot.slane %v1239, %v1953
        %v1955 = vlaneseq
        %v1956 = vshrl.u32 %v1955, 7
        %v1957 = vsub.s32 0, %v1956
        %v1958 = vrot.slane %v1240, %v1957
        %v1959 = vlaneseq
        %v1960 = vshrl.u32 %v1959, 7
        %v1961 = vsub.s32 1, %v1960
        %v1962 = vrot.slane %v1240, %v1961
        %v1963 = vlaneseq
        %v1964 = vshrl.u32 %v1963, 7
        %v1965 = vsub.s32 2, %v1964
        %v1966 = vrot.slane %v1240, %v1965
        %v1967 = vlaneseq
        %v1968 = vshrl.u32 %v1967, 7
        %v1969 = vsub.s32 3, %v1968
        %v1970 = vrot.slane %v1240, %v1969
        %v1971 = vlaneseq
        %v1972 = vshrl.u32 %v1971, 7
        %v1973 = vsub.s32 4, %v1972
        %v1974 = vrot.slane %v1240, %v1973
        %v1975 = vlaneseq
        %v1976 = vshrl.u32 %v1975, 7
        %v1977 = vsub.s32 5, %v1976
        %v1978 = vrot.slane %v1240, %v1977
        %v1979 = vlaneseq
        %v1980 = vshrl.u32 %v1979, 7
        %v1981 = vsub.s32 6, %v1980
        %v1982 = vrot.slane %v1240, %v1981
        %v1983 = vlaneseq
        %v1984 = vshrl.u32 %v1983, 7
        %v1985 = vsub.s32 7, %v1984
        %v1986 = vrot.slane %v1240, %v1985
        %v1987 = vlaneseq
        %v1988 = vshrl.u32 %v1987, 7
        %v1989 = vsub.s32 0, %v1988
        %v1990 = vrot.slane %v1241, %v1989
        %v1991 = vlaneseq
        %v1992 = vshrl.u32 %v1991, 7
        %v1993 = vsub.s32 1, %v1992
        %v1994 = vrot.slane %v1241, %v1993
        %v1995 = vlaneseq
        %v1996 = vshrl.u32 %v1995, 7
        %v1997 = vsub.s32 2, %v1996
        %v1998 = vrot.slane %v1241, %v1997
        %v1999 = vlaneseq
        %v2000 = vshrl.u32 %v1999, 7
        %v2001 = vsub.s32 3, %v2000
        %v2002 = vrot.slane %v1241, %v2001
        %v2003 = vlaneseq
        %v2004 = vshrl.u32 %v2003, 7
        %v2005 = vsub.s32 4, %v2004
        %v2006 = vrot.slane %v1241, %v2005
        %v2007 = vlaneseq
        %v2008 = vshrl.u32 %v2007, 7
        %v2009 = vsub.s32 5, %v2008
        %v2010 = vrot.slane %v1241, %v2009
        %v2011 = vlaneseq
        %v2012 = vshrl.u32 %v2011, 7
        %v2013 = vsub.s32 6, %v2012
        %v2014 = vrot.slane %v1241, %v2013
        %v2015 = vlaneseq
        %v2016 = vshrl.u32 %v2015, 7
        %v2017 = vsub.s32 7, %v2016
        %v2018 = vrot.slane %v1241, %v2017
        %v2019 = vlaneseq
        %v2020 = vshrl.u32 %v2019, 7
        %v2021 = vsub.s32 0, %v2020
        %v2022 = vrot.slane %v1242, %v2021
        %v2023 = vlaneseq
        %v2024 = vshrl.u32 %v2023, 7
        %v2025 = vsub.s32 1, %v2024
        %v2026 = vrot.slane %v1242, %v2025
        %v2027 = vlaneseq
        %v2028 = vshrl.u32 %v2027, 7
        %v2029 = vsub.s32 2, %v2028
        %v2030 = vrot.slane %v1242, %v2029
        %v2031 = vlaneseq
        %v2032 = vshrl.u32 %v2031, 7
        %v2033 = vsub.s32 3, %v2032
        %v2034 = vrot.slane %v1242, %v2033
        %v2035 = vlaneseq
        %v2036 = vshrl.u32 %v2035, 7
        %v2037 = vsub.s32 4, %v2036
        %v2038 = vrot.slane %v1242, %v2037
        %v2039 = vlaneseq
        %v2040 = vshrl.u32 %v2039, 7
        %v2041 = vsub.s32 5, %v2040
        %v2042 = vrot.slane %v1242, %v2041
        %v2043 = vlaneseq
        %v2044 = vshrl.u32 %v2043, 7
        %v2045 = vsub.s32 6, %v2044
        %v2046 = vrot.slane %v1242, %v2045
        %v2047 = vlaneseq
        %v2048 = vshrl.u32 %v2047, 7
        %v2049 = vsub.s32 7, %v2048
        %v2050 = vrot.slane %v1242, %v2049
        %v2051 = vlaneseq
        %v2052 = vshrl.u32 %v2051, 7
        %v2053 = vsub.s32 0, %v2052
        %v2054 = vrot.slane %v1243, %v2053
        %v2055 = vlaneseq
        %v2056 = vshrl.u32 %v2055, 7
        %v2057 = vsub.s32 1, %v2056
        %v2058 = vrot.slane %v1243, %v2057
        %v2059 = vlaneseq
        %v2060 = vshrl.u32 %v2059, 7
        %v2061 = vsub.s32 2, %v2060
        %v2062 = vrot.slane %v1243, %v2061
        %v2063 = vlaneseq
        %v2064 = vshrl.u32 %v2063, 7
        %v2065 = vsub.s32 3, %v2064
        %v2066 = vrot.slane %v1243, %v2065
        %v2067 = vlaneseq
        %v2068 = vshrl.u32 %v2067, 7
        %v2069 = vsub.s32 4, %v2068
        %v2070 = vrot.slane %v1243, %v2069
        %v2071 = vlaneseq
        %v2072 = vshrl.u32 %v2071, 7
        %v2073 = vsub.s32 5, %v2072
        %v2074 = vrot.slane %v1243, %v2073
        %v2075 = vlaneseq
        %v2076 = vshrl.u32 %v2075, 7
        %v2077 = vsub.s32 6, %v2076
        %v2078 = vrot.slane %v1243, %v2077
        %v2079 = vlaneseq
        %v2080 = vshrl.u32 %v2079, 7
        %v2081 = vsub.s32 7, %v2080
        %v2082 = vrot.slane %v1243, %v2081
        %v2083 = vlaneseq
        %v2084 = vshrl.u32 %v2083, 7
        %v2085 = vsub.s32 0, %v2084
        %v2086 = vrot.slane %v1244, %v2085
        %v2087 = vlaneseq
        %v2088 = vshrl.u32 %v2087, 7
        %v2089 = vsub.s32 1, %v2088
        %v2090 = vrot.slane %v1244, %v2089
        %v2091 = vlaneseq
        %v2092 = vshrl.u32 %v2091, 7
        %v2093 = vsub.s32 2, %v2092
        %v2094 = vrot.slane %v1244, %v2093
        %v2095 = vlaneseq
        %v2096 = vshrl.u32 %v2095, 7
        %v2097 = vsub.s32 3, %v2096
        %v2098 = vrot.slane %v1244, %v2097
        %v2099 = vlaneseq
        %v2100 = vshrl.u32 %v2099, 7
        %v2101 = vsub.s32 4, %v2100
        %v2102 = vrot.slane %v1244, %v2101
        %v2103 = vlaneseq
        %v2104 = vshrl.u32 %v2103, 7
        %v2105 = vsub.s32 5, %v2104
        %v2106 = vrot.slane %v1244, %v2105
        %v2107 = vlaneseq
        %v2108 = vshrl.u32 %v2107, 7
        %v2109 = vsub.s32 6, %v2108
        %v2110 = vrot.slane %v1244, %v2109
        %v2111 = vlaneseq
        %v2112 = vshrl.u32 %v2111, 7
        %v2113 = vsub.s32 7, %v2112
        %v2114 = vrot.slane %v1244, %v2113
        %v2115 = vlaneseq
        %v2116 = vshrl.u32 %v2115, 7
        %v2117 = vsub.s32 0, %v2116
        %v2118 = vrot.slane %v1245, %v2117
        %v2119 = vlaneseq
        %v2120 = vshrl.u32 %v2119, 7
        %v2121 = vsub.s32 1, %v2120
        %v2122 = vrot.slane %v1245, %v2121
        %v2123 = vlaneseq
        %v2124 = vshrl.u32 %v2123, 7
        %v2125 = vsub.s32 2, %v2124
        %v2126 = vrot.slane %v1245, %v2125
        %v2127 = vlaneseq
        %v2128 = vshrl.u32 %v2127, 7
        %v2129 = vsub.s32 3, %v2128
        %v2130 = vrot.slane %v1245, %v2129
        %v2131 = vlaneseq
        %v2132 = vshrl.u32 %v2131, 7
        %v2133 = vsub.s32 4, %v2132
        %v2134 = vrot.slane %v1245, %v2133
        %v2135 = vlaneseq
        %v2136 = vshrl.u32 %v2135, 7
        %v2137 = vsub.s32 5, %v2136
        %v2138 = vrot.slane %v1245, %v2137
        %v2139 = vlaneseq
        %v2140 = vshrl.u32 %v2139, 7
        %v2141 = vsub.s32 6, %v2140
        %v2142 = vrot.slane %v1245, %v2141
        %v2143 = vlaneseq
        %v2144 = vshrl.u32 %v2143, 7
        %v2145 = vsub.s32 7, %v2144
        %v2146 = vrot.slane %v1245, %v2145
        %v2147 = vlaneseq
        %v2148 = vshrl.u32 %v2147, 7
        %v2149 = vsub.s32 0, %v2148
        %v2150 = vrot.slane %v1246, %v2149
        %v2151 = vlaneseq
        %v2152 = vshrl.u32 %v2151, 7
        %v2153 = vsub.s32 1, %v2152
        %v2154 = vrot.slane %v1246, %v2153
        %v2155 = vlaneseq
        %v2156 = vshrl.u32 %v2155, 7
        %v2157 = vsub.s32 2, %v2156
        %v2158 = vrot.slane %v1246, %v2157
        %v2159 = vlaneseq
        %v2160 = vshrl.u32 %v2159, 7
        %v2161 = vsub.s32 3, %v2160
        %v2162 = vrot.slane %v1246, %v2161
        %v2163 = vlaneseq
        %v2164 = vshrl.u32 %v2163, 7
        %v2165 = vsub.s32 4, %v2164
        %v2166 = vrot.slane %v1246, %v2165
        %v2167 = vlaneseq
        %v2168 = vshrl.u32 %v2167, 7
        %v2169 = vsub.s32 5, %v2168
        %v2170 = vrot.slane %v1246, %v2169
        %v2171 = vlaneseq
        %v2172 = vshrl.u32 %v2171, 7
        %v2173 = vsub.s32 6, %v2172
        %v2174 = vrot.slane %v1246, %v2173
        %v2175 = vlaneseq
        %v2176 = vshrl.u32 %v2175, 7
        %v2177 = vsub.s32 7, %v2176
        %v2178 = vrot.slane %v1246, %v2177
        %v2179 = vlaneseq
        %v2180 = vshrl.u32 %v2179, 7
        %v2181 = vsub.s32 0, %v2180
        %v2182 = vrot.slane %v1247, %v2181
        %v2183 = vlaneseq
        %v2184 = vshrl.u32 %v2183, 7
        %v2185 = vsub.s32 1, %v2184
        %v2186 = vrot.slane %v1247, %v2185
        %v2187 = vlaneseq
        %v2188 = vshrl.u32 %v2187, 7
        %v2189 = vsub.s32 2, %v2188
        %v2190 = vrot.slane %v1247, %v2189
        %v2191 = vlaneseq
        %v2192 = vshrl.u32 %v2191, 7
        %v2193 = vsub.s32 3, %v2192
        %v2194 = vrot.slane %v1247, %v2193
        %v2195 = vlaneseq
        %v2196 = vshrl.u32 %v2195, 7
        %v2197 = vsub.s32 4, %v2196
        %v2198 = vrot.slane %v1247, %v2197
        %v2199 = vlaneseq
        %v2200 = vshrl.u32 %v2199, 7
        %v2201 = vsub.s32 5, %v2200
        %v2202 = vrot.slane %v1247, %v2201
        %v2203 = vlaneseq
        %v2204 = vshrl.u32 %v2203, 7
        %v2205 = vsub.s32 6, %v2204
        %v2206 = vrot.slane %v1247, %v2205
        %v2207 = vlaneseq
        %v2208 = vshrl.u32 %v2207, 7
        %v2209 = vsub.s32 7, %v2208
        %v2210 = vrot.slane %v1247, %v2209
        %v2211 = vlaneseq
        %v2212 = vshrl.u32 %v2211, 7
        %v2213 = vsub.s32 0, %v2212
        %v2214 = vrot.slane %v1248, %v2213
        %v2215 = vlaneseq
        %v2216 = vshrl.u32 %v2215, 7
        %v2217 = vsub.s32 1, %v2216
        %v2218 = vrot.slane %v1248, %v2217
        %v2219 = vlaneseq
        %v2220 = vshrl.u32 %v2219, 7
        %v2221 = vsub.s32 2, %v2220
        %v2222 = vrot.slane %v1248, %v2221
        %v2223 = vlaneseq
        %v2224 = vshrl.u32 %v2223, 7
        %v2225 = vsub.s32 3, %v2224
        %v2226 = vrot.slane %v1248, %v2225
        %v2227 = vlaneseq
        %v2228 = vshrl.u32 %v2227, 7
        %v2229 = vsub.s32 4, %v2228
        %v2230 = vrot.slane %v1248, %v2229
        %v2231 = vlaneseq
        %v2232 = vshrl.u32 %v2231, 7
        %v2233 = vsub.s32 5, %v2232
        %v2234 = vrot.slane %v1248, %v2233
        %v2235 = vlaneseq
        %v2236 = vshrl.u32 %v2235, 7
        %v2237 = vsub.s32 6, %v2236
        %v2238 = vrot.slane %v1248, %v2237
        %v2239 = vlaneseq
        %v2240 = vshrl.u32 %v2239, 7
        %v2241 = vsub.s32 7, %v2240
        %v2242 = vrot.slane %v1248, %v2241
        %v2243 = vlaneseq
        %v2244 = vshrl.u32 %v2243, 7
        %v2245 = vsub.s32 0, %v2244
        %v2246 = vrot.slane %v1249, %v2245
        %v2247 = vlaneseq
        %v2248 = vshrl.u32 %v2247, 7
        %v2249 = vsub.s32 1, %v2248
        %v2250 = vrot.slane %v1249, %v2249
        %v2251 = vlaneseq
        %v2252 = vshrl.u32 %v2251, 7
        %v2253 = vsub.s32 2, %v2252
        %v2254 = vrot.slane %v1249, %v2253
        %v2255 = vlaneseq
        %v2256 = vshrl.u32 %v2255, 7
        %v2257 = vsub.s32 3, %v2256
        %v2258 = vrot.slane %v1249, %v2257
        %v2259 = vlaneseq
        %v2260 = vshrl.u32 %v2259, 7
        %v2261 = vsub.s32 4, %v2260
        %v2262 = vrot.slane %v1249, %v2261
        %v2263 = vlaneseq
        %v2264 = vshrl.u32 %v2263, 7
        %v2265 = vsub.s32 5, %v2264
        %v2266 = vrot.slane %v1249, %v2265
        %v2267 = vlaneseq
        %v2268 = vshrl.u32 %v2267, 7
        %v2269 = vsub.s32 6, %v2268
        %v2270 = vrot.slane %v1249, %v2269
        %v2271 = vlaneseq
        %v2272 = vshrl.u32 %v2271, 7
        %v2273 = vsub.s32 7, %v2272
        %v2274 = vrot.slane %v1249, %v2273
        %v2275 = vlaneseq
        %v2276 = vshrl.u32 %v2275, 7
        %v2277 = vsub.s32 0, %v2276
        %v2278 = vrot.slane %v1250, %v2277
        %v2279 = vlaneseq
        %v2280 = vshrl.u32 %v2279, 7
        %v2281 = vsub.s32 1, %v2280
        %v2282 = vrot.slane %v1250, %v2281
        %v2283 = vlaneseq
        %v2284 = vshrl.u32 %v2283, 7
        %v2285 = vsub.s32 2, %v2284
        %v2286 = vrot.slane %v1250, %v2285
        %v2287 = vlaneseq
        %v2288 = vshrl.u32 %v2287, 7
        %v2289 = vsub.s32 3, %v2288
        %v2290 = vrot.slane %v1250, %v2289
        %v2291 = vlaneseq
        %v2292 = vshrl.u32 %v2291, 7
        %v2293 = vsub.s32 4, %v2292
        %v2294 = vrot.slane %v1250, %v2293
        %v2295 = vlaneseq
        %v2296 = vshrl.u32 %v2295, 7
        %v2297 = vsub.s32 5, %v2296
        %v2298 = vrot.slane %v1250, %v2297
        %v2299 = vlaneseq
        %v2300 = vshrl.u32 %v2299, 7
        %v2301 = vsub.s32 6, %v2300
        %v2302 = vrot.slane %v1250, %v2301
        %v2303 = vlaneseq
        %v2304 = vshrl.u32 %v2303, 7
        %v2305 = vsub.s32 7, %v2304
        %v2306 = vrot.slane %v1250, %v2305
        %v2307 = vcombine.low %v1286, %v1290
        %v2308 = vcombine.low %v1294, %v1298
        %v2309 = vcombine.low %v1302, %v1306
        %v2310 = vcombine.low %v1310, %v1314
        %v2312 = vunpack.c.l.s4 1966171168
        %v2313 = vunpack.c.0.s8 %v2312
        %v2314 = vlaneseq
        %v2315 = vshrl.u32 %v2314, 7
        %v2316 = vsub.s32 %v2313, %v2315
        %v2317 = vrot.slane %v2307, %v2316
        %v2319 = vunpack.c.l.s4 1966171168
        %v2320 = vunpack.c.0.s8 %v2319
        %v2321 = vlaneseq
        %v2322 = vshrl.u32 %v2321, 7
        %v2323 = vsub.s32 %v2320, %v2322
        %v2324 = vrot.slane %v2308, %v2323
        %v2326 = vunpack.c.l.s4 1966171168
        %v2327 = vunpack.c.0.s8 %v2326
        %v2328 = vlaneseq
        %v2329 = vshrl.u32 %v2328, 7
        %v2330 = vsub.s32 %v2327, %v2329
        %v2331 = vrot.slane %v2309, %v2330
        %v2333 = vunpack.c.l.s4 1966171168
        %v2334 = vunpack.c.0.s8 %v2333
        %v2335 = vlaneseq
        %v2336 = vshrl.u32 %v2335, 7
        %v2337 = vsub.s32 %v2334, %v2336
        %v2338 = vrot.slane %v2310, %v2337
        %v2339 = vcombine.low %v2317, %v2324
        %v2340 = vcombine.low %v2331, %v2338
        %v2342 = vunpack.c.l.s4 1966171168
        %v2343 = vunpack.c.0.s8 %v2342
        %v2344 = vlaneseq
        %v2345 = vshrl.u32 %v2344, 7
        %v2346 = vsub.s32 %v2343, %v2345
        %v2347 = vrot.slane %v2339, %v2346
        %v2349 = vunpack.c.l.s4 1966171168
        %v2350 = vunpack.c.0.s8 %v2349
        %v2351 = vlaneseq
        %v2352 = vshrl.u32 %v2351, 7
        %v2353 = vsub.s32 %v2350, %v2352
        %v2354 = vrot.slane %v2340, %v2353
        %v2355 = vcombine.low %v2347, %v2354
        %v2356 = vcombine.low %v1318, %v1322
        %v2357 = vcombine.low %v1326, %v1330
        %v2358 = vcombine.low %v1334, %v1338
        %v2359 = vcombine.low %v1342, %v1346
        %v2361 = vunpack.c.l.s4 1966171168
        %v2362 = vunpack.c.0.s8 %v2361
        %v2363 = vlaneseq
        %v2364 = vshrl.u32 %v2363, 7
        %v2365 = vsub.s32 %v2362, %v2364
        %v2366 = vrot.slane %v2356, %v2365
        %v2368 = vunpack.c.l.s4 1966171168
        %v2369 = vunpack.c.0.s8 %v2368
        %v2370 = vlaneseq
        %v2371 = vshrl.u32 %v2370, 7
        %v2372 = vsub.s32 %v2369, %v2371
        %v2373 = vrot.slane %v2357, %v2372
        %v2375 = vunpack.c.l.s4 1966171168
        %v2376 = vunpack.c.0.s8 %v2375
        %v2377 = vlaneseq
        %v2378 = vshrl.u32 %v2377, 7
        %v2379 = vsub.s32 %v2376, %v2378
        %v2380 = vrot.slane %v2358, %v2379
        %v2382 = vunpack.c.l.s4 1966171168
        %v2383 = vunpack.c.0.s8 %v2382
        %v2384 = vlaneseq
        %v2385 = vshrl.u32 %v2384, 7
        %v2386 = vsub.s32 %v2383, %v2385
        %v2387 = vrot.slane %v2359, %v2386
        %v2388 = vcombine.low %v2366, %v2373
        %v2389 = vcombine.low %v2380, %v2387
        %v2391 = vunpack.c.l.s4 1966171168
        %v2392 = vunpack.c.0.s8 %v2391
        %v2393 = vlaneseq
        %v2394 = vshrl.u32 %v2393, 7
        %v2395 = vsub.s32 %v2392, %v2394
        %v2396 = vrot.slane %v2388, %v2395
        %v2398 = vunpack.c.l.s4 1966171168
        %v2399 = vunpack.c.0.s8 %v2398
        %v2400 = vlaneseq
        %v2401 = vshrl.u32 %v2400, 7
        %v2402 = vsub.s32 %v2399, %v2401
        %v2403 = vrot.slane %v2389, %v2402
        %v2404 = vcombine.low %v2396, %v2403
        %v2405 = vcombine.low %v1350, %v1354
        %v2406 = vcombine.low %v1358, %v1362
        %v2407 = vcombine.low %v1366, %v1370
        %v2408 = vcombine.low %v1374, %v1378
        %v2410 = vunpack.c.l.s4 1966171168
        %v2411 = vunpack.c.0.s8 %v2410
        %v2412 = vlaneseq
        %v2413 = vshrl.u32 %v2412, 7
        %v2414 = vsub.s32 %v2411, %v2413
        %v2415 = vrot.slane %v2405, %v2414
        %v2417 = vunpack.c.l.s4 1966171168
        %v2418 = vunpack.c.0.s8 %v2417
        %v2419 = vlaneseq
        %v2420 = vshrl.u32 %v2419, 7
        %v2421 = vsub.s32 %v2418, %v2420
        %v2422 = vrot.slane %v2406, %v2421
        %v2424 = vunpack.c.l.s4 1966171168
        %v2425 = vunpack.c.0.s8 %v2424
        %v2426 = vlaneseq
        %v2427 = vshrl.u32 %v2426, 7
        %v2428 = vsub.s32 %v2425, %v2427
        %v2429 = vrot.slane %v2407, %v2428
        %v2431 = vunpack.c.l.s4 1966171168
        %v2432 = vunpack.c.0.s8 %v2431
        %v2433 = vlaneseq
        %v2434 = vshrl.u32 %v2433, 7
        %v2435 = vsub.s32 %v2432, %v2434
        %v2436 = vrot.slane %v2408, %v2435
        %v2437 = vcombine.low %v2415, %v2422
        %v2438 = vcombine.low %v2429, %v2436
        %v2440 = vunpack.c.l.s4 1966171168
        %v2441 = vunpack.c.0.s8 %v2440
        %v2442 = vlaneseq
        %v2443 = vshrl.u32 %v2442, 7
        %v2444 = vsub.s32 %v2441, %v2443
        %v2445 = vrot.slane %v2437, %v2444
        %v2447 = vunpack.c.l.s4 1966171168
        %v2448 = vunpack.c.0.s8 %v2447
        %v2449 = vlaneseq
        %v2450 = vshrl.u32 %v2449, 7
        %v2451 = vsub.s32 %v2448, %v2450
        %v2452 = vrot.slane %v2438, %v2451
        %v2453 = vcombine.low %v2445, %v2452
        %v2454 = vcombine.low %v1382, %v1386
        %v2455 = vcombine.low %v1390, %v1394
        %v2456 = vcombine.low %v1398, %v1402
        %v2457 = vcombine.low %v1406, %v1410
        %v2459 = vunpack.c.l.s4 1966171168
        %v2460 = vunpack.c.0.s8 %v2459
        %v2461 = vlaneseq
        %v2462 = vshrl.u32 %v2461, 7
        %v2463 = vsub.s32 %v2460, %v2462
        %v2464 = vrot.slane %v2454, %v2463
        %v2466 = vunpack.c.l.s4 1966171168
        %v2467 = vunpack.c.0.s8 %v2466
        %v2468 = vlaneseq
        %v2469 = vshrl.u32 %v2468, 7
        %v2470 = vsub.s32 %v2467, %v2469
        %v2471 = vrot.slane %v2455, %v2470
        %v2473 = vunpack.c.l.s4 1966171168
        %v2474 = vunpack.c.0.s8 %v2473
        %v2475 = vlaneseq
        %v2476 = vshrl.u32 %v2475, 7
        %v2477 = vsub.s32 %v2474, %v2476
        %v2478 = vrot.slane %v2456, %v2477
        %v2480 = vunpack.c.l.s4 1966171168
        %v2481 = vunpack.c.0.s8 %v2480
        %v2482 = vlaneseq
        %v2483 = vshrl.u32 %v2482, 7
        %v2484 = vsub.s32 %v2481, %v2483
        %v2485 = vrot.slane %v2457, %v2484
        %v2486 = vcombine.low %v2464, %v2471
        %v2487 = vcombine.low %v2478, %v2485
        %v2489 = vunpack.c.l.s4 1966171168
        %v2490 = vunpack.c.0.s8 %v2489
        %v2491 = vlaneseq
        %v2492 = vshrl.u32 %v2491, 7
        %v2493 = vsub.s32 %v2490, %v2492
        %v2494 = vrot.slane %v2486, %v2493
        %v2496 = vunpack.c.l.s4 1966171168
        %v2497 = vunpack.c.0.s8 %v2496
        %v2498 = vlaneseq
        %v2499 = vshrl.u32 %v2498, 7
        %v2500 = vsub.s32 %v2497, %v2499
        %v2501 = vrot.slane %v2487, %v2500
        %v2502 = vcombine.low %v2494, %v2501
        %v2503 = vcombine.low %v1414, %v1418
        %v2504 = vcombine.low %v1422, %v1426
        %v2505 = vcombine.low %v1430, %v1434
        %v2506 = vcombine.low %v1438, %v1442
        %v2508 = vunpack.c.l.s4 1966171168
        %v2509 = vunpack.c.0.s8 %v2508
        %v2510 = vlaneseq
        %v2511 = vshrl.u32 %v2510, 7
        %v2512 = vsub.s32 %v2509, %v2511
        %v2513 = vrot.slane %v2503, %v2512
        %v2515 = vunpack.c.l.s4 1966171168
        %v2516 = vunpack.c.0.s8 %v2515
        %v2517 = vlaneseq
        %v2518 = vshrl.u32 %v2517, 7
        %v2519 = vsub.s32 %v2516, %v2518
        %v2520 = vrot.slane %v2504, %v2519
        %v2522 = vunpack.c.l.s4 1966171168
        %v2523 = vunpack.c.0.s8 %v2522
        %v2524 = vlaneseq
        %v2525 = vshrl.u32 %v2524, 7
        %v2526 = vsub.s32 %v2523, %v2525
        %v2527 = vrot.slane %v2505, %v2526
        %v2529 = vunpack.c.l.s4 1966171168
        %v2530 = vunpack.c.0.s8 %v2529
        %v2531 = vlaneseq
        %v2532 = vshrl.u32 %v2531, 7
        %v2533 = vsub.s32 %v2530, %v2532
        %v2534 = vrot.slane %v2506, %v2533
        %v2535 = vcombine.low %v2513, %v2520
        %v2536 = vcombine.low %v2527, %v2534
        %v2538 = vunpack.c.l.s4 1966171168
        %v2539 = vunpack.c.0.s8 %v2538
        %v2540 = vlaneseq
        %v2541 = vshrl.u32 %v2540, 7
        %v2542 = vsub.s32 %v2539, %v2541
        %v2543 = vrot.slane %v2535, %v2542
        %v2545 = vunpack.c.l.s4 1966171168
        %v2546 = vunpack.c.0.s8 %v2545
        %v2547 = vlaneseq
        %v2548 = vshrl.u32 %v2547, 7
        %v2549 = vsub.s32 %v2546, %v2548
        %v2550 = vrot.slane %v2536, %v2549
        %v2551 = vcombine.low %v2543, %v2550
        %v2552 = vcombine.low %v1446, %v1450
        %v2553 = vcombine.low %v1454, %v1458
        %v2554 = vcombine.low %v1462, %v1466
        %v2555 = vcombine.low %v1470, %v1474
        %v2557 = vunpack.c.l.s4 1966171168
        %v2558 = vunpack.c.0.s8 %v2557
        %v2559 = vlaneseq
        %v2560 = vshrl.u32 %v2559, 7
        %v2561 = vsub.s32 %v2558, %v2560
        %v2562 = vrot.slane %v2552, %v2561
        %v2564 = vunpack.c.l.s4 1966171168
        %v2565 = vunpack.c.0.s8 %v2564
        %v2566 = vlaneseq
        %v2567 = vshrl.u32 %v2566, 7
        %v2568 = vsub.s32 %v2565, %v2567
        %v2569 = vrot.slane %v2553, %v2568
        %v2571 = vunpack.c.l.s4 1966171168
        %v2572 = vunpack.c.0.s8 %v2571
        %v2573 = vlaneseq
        %v2574 = vshrl.u32 %v2573, 7
        %v2575 = vsub.s32 %v2572, %v2574
        %v2576 = vrot.slane %v2554, %v2575
        %v2578 = vunpack.c.l.s4 1966171168
        %v2579 = vunpack.c.0.s8 %v2578
        %v2580 = vlaneseq
        %v2581 = vshrl.u32 %v2580, 7
        %v2582 = vsub.s32 %v2579, %v2581
        %v2583 = vrot.slane %v2555, %v2582
        %v2584 = vcombine.low %v2562, %v2569
        %v2585 = vcombine.low %v2576, %v2583
        %v2587 = vunpack.c.l.s4 1966171168
        %v2588 = vunpack.c.0.s8 %v2587
        %v2589 = vlaneseq
        %v2590 = vshrl.u32 %v2589, 7
        %v2591 = vsub.s32 %v2588, %v2590
        %v2592 = vrot.slane %v2584, %v2591
        %v2594 = vunpack.c.l.s4 1966171168
        %v2595 = vunpack.c.0.s8 %v2594
        %v2596 = vlaneseq
        %v2597 = vshrl.u32 %v2596, 7
        %v2598 = vsub.s32 %v2595, %v2597
        %v2599 = vrot.slane %v2585, %v2598
        %v2600 = vcombine.low %v2592, %v2599
        %v2601 = vcombine.low %v1478, %v1482
        %v2602 = vcombine.low %v1486, %v1490
        %v2603 = vcombine.low %v1494, %v1498
        %v2604 = vcombine.low %v1502, %v1506
        %v2606 = vunpack.c.l.s4 1966171168
        %v2607 = vunpack.c.0.s8 %v2606
        %v2608 = vlaneseq
        %v2609 = vshrl.u32 %v2608, 7
        %v2610 = vsub.s32 %v2607, %v2609
        %v2611 = vrot.slane %v2601, %v2610
        %v2613 = vunpack.c.l.s4 1966171168
        %v2614 = vunpack.c.0.s8 %v2613
        %v2615 = vlaneseq
        %v2616 = vshrl.u32 %v2615, 7
        %v2617 = vsub.s32 %v2614, %v2616
        %v2618 = vrot.slane %v2602, %v2617
        %v2620 = vunpack.c.l.s4 1966171168
        %v2621 = vunpack.c.0.s8 %v2620
        %v2622 = vlaneseq
        %v2623 = vshrl.u32 %v2622, 7
        %v2624 = vsub.s32 %v2621, %v2623
        %v2625 = vrot.slane %v2603, %v2624
        %v2627 = vunpack.c.l.s4 1966171168
        %v2628 = vunpack.c.0.s8 %v2627
        %v2629 = vlaneseq
        %v2630 = vshrl.u32 %v2629, 7
        %v2631 = vsub.s32 %v2628, %v2630
        %v2632 = vrot.slane %v2604, %v2631
        %v2633 = vcombine.low %v2611, %v2618
        %v2634 = vcombine.low %v2625, %v2632
        %v2636 = vunpack.c.l.s4 1966171168
        %v2637 = vunpack.c.0.s8 %v2636
        %v2638 = vlaneseq
        %v2639 = vshrl.u32 %v2638, 7
        %v2640 = vsub.s32 %v2637, %v2639
        %v2641 = vrot.slane %v2633, %v2640
        %v2643 = vunpack.c.l.s4 1966171168
        %v2644 = vunpack.c.0.s8 %v2643
        %v2645 = vlaneseq
        %v2646 = vshrl.u32 %v2645, 7
        %v2647 = vsub.s32 %v2644, %v2646
        %v2648 = vrot.slane %v2634, %v2647
        %v2649 = vcombine.low %v2641, %v2648
        %v2650 = vcombine.low %v1510, %v1514
        %v2651 = vcombine.low %v1518, %v1522
        %v2652 = vcombine.low %v1526, %v1530
        %v2653 = vcombine.low %v1534, %v1538
        %v2655 = vunpack.c.l.s4 1966171168
        %v2656 = vunpack.c.0.s8 %v2655
        %v2657 = vlaneseq
        %v2658 = vshrl.u32 %v2657, 7
        %v2659 = vsub.s32 %v2656, %v2658
        %v2660 = vrot.slane %v2650, %v2659
        %v2662 = vunpack.c.l.s4 1966171168
        %v2663 = vunpack.c.0.s8 %v2662
        %v2664 = vlaneseq
        %v2665 = vshrl.u32 %v2664, 7
        %v2666 = vsub.s32 %v2663, %v2665
        %v2667 = vrot.slane %v2651, %v2666
        %v2669 = vunpack.c.l.s4 1966171168
        %v2670 = vunpack.c.0.s8 %v2669
        %v2671 = vlaneseq
        %v2672 = vshrl.u32 %v2671, 7
        %v2673 = vsub.s32 %v2670, %v2672
        %v2674 = vrot.slane %v2652, %v2673
        %v2676 = vunpack.c.l.s4 1966171168
        %v2677 = vunpack.c.0.s8 %v2676
        %v2678 = vlaneseq
        %v2679 = vshrl.u32 %v2678, 7
        %v2680 = vsub.s32 %v2677, %v2679
        %v2681 = vrot.slane %v2653, %v2680
        %v2682 = vcombine.low %v2660, %v2667
        %v2683 = vcombine.low %v2674, %v2681
        %v2685 = vunpack.c.l.s4 1966171168
        %v2686 = vunpack.c.0.s8 %v2685
        %v2687 = vlaneseq
        %v2688 = vshrl.u32 %v2687, 7
        %v2689 = vsub.s32 %v2686, %v2688
        %v2690 = vrot.slane %v2682, %v2689
        %v2692 = vunpack.c.l.s4 1966171168
        %v2693 = vunpack.c.0.s8 %v2692
        %v2694 = vlaneseq
        %v2695 = vshrl.u32 %v2694, 7
        %v2696 = vsub.s32 %v2693, %v2695
        %v2697 = vrot.slane %v2683, %v2696
        %v2698 = vcombine.low %v2690, %v2697
        %v2699 = vcombine.low %v1542, %v1546
        %v2700 = vcombine.low %v1550, %v1554
        %v2701 = vcombine.low %v1558, %v1562
        %v2702 = vcombine.low %v1566, %v1570
        %v2704 = vunpack.c.l.s4 1966171168
        %v2705 = vunpack.c.0.s8 %v2704
        %v2706 = vlaneseq
        %v2707 = vshrl.u32 %v2706, 7
        %v2708 = vsub.s32 %v2705, %v2707
        %v2709 = vrot.slane %v2699, %v2708
        %v2711 = vunpack.c.l.s4 1966171168
        %v2712 = vunpack.c.0.s8 %v2711
        %v2713 = vlaneseq
        %v2714 = vshrl.u32 %v2713, 7
        %v2715 = vsub.s32 %v2712, %v2714
        %v2716 = vrot.slane %v2700, %v2715
        %v2718 = vunpack.c.l.s4 1966171168
        %v2719 = vunpack.c.0.s8 %v2718
        %v2720 = vlaneseq
        %v2721 = vshrl.u32 %v2720, 7
        %v2722 = vsub.s32 %v2719, %v2721
        %v2723 = vrot.slane %v2701, %v2722
        %v2725 = vunpack.c.l.s4 1966171168
        %v2726 = vunpack.c.0.s8 %v2725
        %v2727 = vlaneseq
        %v2728 = vshrl.u32 %v2727, 7
        %v2729 = vsub.s32 %v2726, %v2728
        %v2730 = vrot.slane %v2702, %v2729
        %v2731 = vcombine.low %v2709, %v2716
        %v2732 = vcombine.low %v2723, %v2730
        %v2734 = vunpack.c.l.s4 1966171168
        %v2735 = vunpack.c.0.s8 %v2734
        %v2736 = vlaneseq
        %v2737 = vshrl.u32 %v2736, 7
        %v2738 = vsub.s32 %v2735, %v2737
        %v2739 = vrot.slane %v2731, %v2738
        %v2741 = vunpack.c.l.s4 1966171168
        %v2742 = vunpack.c.0.s8 %v2741
        %v2743 = vlaneseq
        %v2744 = vshrl.u32 %v2743, 7
        %v2745 = vsub.s32 %v2742, %v2744
        %v2746 = vrot.slane %v2732, %v2745
        %v2747 = vcombine.low %v2739, %v2746
        %v2748 = vcombine.low %v1574, %v1578
        %v2749 = vcombine.low %v1582, %v1586
        %v2750 = vcombine.low %v1590, %v1594
        %v2751 = vcombine.low %v1598, %v1602
        %v2753 = vunpack.c.l.s4 1966171168
        %v2754 = vunpack.c.0.s8 %v2753
        %v2755 = vlaneseq
        %v2756 = vshrl.u32 %v2755, 7
        %v2757 = vsub.s32 %v2754, %v2756
        %v2758 = vrot.slane %v2748, %v2757
        %v2760 = vunpack.c.l.s4 1966171168
        %v2761 = vunpack.c.0.s8 %v2760
        %v2762 = vlaneseq
        %v2763 = vshrl.u32 %v2762, 7
        %v2764 = vsub.s32 %v2761, %v2763
        %v2765 = vrot.slane %v2749, %v2764
        %v2767 = vunpack.c.l.s4 1966171168
        %v2768 = vunpack.c.0.s8 %v2767
        %v2769 = vlaneseq
        %v2770 = vshrl.u32 %v2769, 7
        %v2771 = vsub.s32 %v2768, %v2770
        %v2772 = vrot.slane %v2750, %v2771
        %v2774 = vunpack.c.l.s4 1966171168
        %v2775 = vunpack.c.0.s8 %v2774
        %v2776 = vlaneseq
        %v2777 = vshrl.u32 %v2776, 7
        %v2778 = vsub.s32 %v2775, %v2777
        %v2779 = vrot.slane %v2751, %v2778
        %v2780 = vcombine.low %v2758, %v2765
        %v2781 = vcombine.low %v2772, %v2779
        %v2783 = vunpack.c.l.s4 1966171168
        %v2784 = vunpack.c.0.s8 %v2783
        %v2785 = vlaneseq
        %v2786 = vshrl.u32 %v2785, 7
        %v2787 = vsub.s32 %v2784, %v2786
        %v2788 = vrot.slane %v2780, %v2787
        %v2790 = vunpack.c.l.s4 1966171168
        %v2791 = vunpack.c.0.s8 %v2790
        %v2792 = vlaneseq
        %v2793 = vshrl.u32 %v2792, 7
        %v2794 = vsub.s32 %v2791, %v2793
        %v2795 = vrot.slane %v2781, %v2794
        %v2796 = vcombine.low %v2788, %v2795
        %v2797 = vcombine.low %v1606, %v1610
        %v2798 = vcombine.low %v1614, %v1618
        %v2799 = vcombine.low %v1622, %v1626
        %v2800 = vcombine.low %v1630, %v1634
        %v2802 = vunpack.c.l.s4 1966171168
        %v2803 = vunpack.c.0.s8 %v2802
        %v2804 = vlaneseq
        %v2805 = vshrl.u32 %v2804, 7
        %v2806 = vsub.s32 %v2803, %v2805
        %v2807 = vrot.slane %v2797, %v2806
        %v2809 = vunpack.c.l.s4 1966171168
        %v2810 = vunpack.c.0.s8 %v2809
        %v2811 = vlaneseq
        %v2812 = vshrl.u32 %v2811, 7
        %v2813 = vsub.s32 %v2810, %v2812
        %v2814 = vrot.slane %v2798, %v2813
        %v2816 = vunpack.c.l.s4 1966171168
        %v2817 = vunpack.c.0.s8 %v2816
        %v2818 = vlaneseq
        %v2819 = vshrl.u32 %v2818, 7
        %v2820 = vsub.s32 %v2817, %v2819
        %v2821 = vrot.slane %v2799, %v2820
        %v2823 = vunpack.c.l.s4 1966171168
        %v2824 = vunpack.c.0.s8 %v2823
        %v2825 = vlaneseq
        %v2826 = vshrl.u32 %v2825, 7
        %v2827 = vsub.s32 %v2824, %v2826
        %v2828 = vrot.slane %v2800, %v2827
        %v2829 = vcombine.low %v2807, %v2814
        %v2830 = vcombine.low %v2821, %v2828
        %v2832 = vunpack.c.l.s4 1966171168
        %v2833 = vunpack.c.0.s8 %v2832
        %v2834 = vlaneseq
        %v2835 = vshrl.u32 %v2834, 7
        %v2836 = vsub.s32 %v2833, %v2835
        %v2837 = vrot.slane %v2829, %v2836
        %v2839 = vunpack.c.l.s4 1966171168
        %v2840 = vunpack.c.0.s8 %v2839
        %v2841 = vlaneseq
        %v2842 = vshrl.u32 %v2841, 7
        %v2843 = vsub.s32 %v2840, %v2842
        %v2844 = vrot.slane %v2830, %v2843
        %v2845 = vcombine.low %v2837, %v2844
        %v2846 = vcombine.low %v1638, %v1642
        %v2847 = vcombine.low %v1646, %v1650
        %v2848 = vcombine.low %v1654, %v1658
        %v2849 = vcombine.low %v1662, %v1666
        %v2851 = vunpack.c.l.s4 1966171168
        %v2852 = vunpack.c.0.s8 %v2851
        %v2853 = vlaneseq
        %v2854 = vshrl.u32 %v2853, 7
        %v2855 = vsub.s32 %v2852, %v2854
        %v2856 = vrot.slane %v2846, %v2855
        %v2858 = vunpack.c.l.s4 1966171168
        %v2859 = vunpack.c.0.s8 %v2858
        %v2860 = vlaneseq
        %v2861 = vshrl.u32 %v2860, 7
        %v2862 = vsub.s32 %v2859, %v2861
        %v2863 = vrot.slane %v2847, %v2862
        %v2865 = vunpack.c.l.s4 1966171168
        %v2866 = vunpack.c.0.s8 %v2865
        %v2867 = vlaneseq
        %v2868 = vshrl.u32 %v2867, 7
        %v2869 = vsub.s32 %v2866, %v2868
        %v2870 = vrot.slane %v2848, %v2869
        %v2872 = vunpack.c.l.s4 1966171168
        %v2873 = vunpack.c.0.s8 %v2872
        %v2874 = vlaneseq
        %v2875 = vshrl.u32 %v2874, 7
        %v2876 = vsub.s32 %v2873, %v2875
        %v2877 = vrot.slane %v2849, %v2876
        %v2878 = vcombine.low %v2856, %v2863
        %v2879 = vcombine.low %v2870, %v2877
        %v2881 = vunpack.c.l.s4 1966171168
        %v2882 = vunpack.c.0.s8 %v2881
        %v2883 = vlaneseq
        %v2884 = vshrl.u32 %v2883, 7
        %v2885 = vsub.s32 %v2882, %v2884
        %v2886 = vrot.slane %v2878, %v2885
        %v2888 = vunpack.c.l.s4 1966171168
        %v2889 = vunpack.c.0.s8 %v2888
        %v2890 = vlaneseq
        %v2891 = vshrl.u32 %v2890, 7
        %v2892 = vsub.s32 %v2889, %v2891
        %v2893 = vrot.slane %v2879, %v2892
        %v2894 = vcombine.low %v2886, %v2893
        %v2895 = vcombine.low %v1670, %v1674
        %v2896 = vcombine.low %v1678, %v1682
        %v2897 = vcombine.low %v1686, %v1690
        %v2898 = vcombine.low %v1694, %v1698
        %v2900 = vunpack.c.l.s4 1966171168
        %v2901 = vunpack.c.0.s8 %v2900
        %v2902 = vlaneseq
        %v2903 = vshrl.u32 %v2902, 7
        %v2904 = vsub.s32 %v2901, %v2903
        %v2905 = vrot.slane %v2895, %v2904
        %v2907 = vunpack.c.l.s4 1966171168
        %v2908 = vunpack.c.0.s8 %v2907
        %v2909 = vlaneseq
        %v2910 = vshrl.u32 %v2909, 7
        %v2911 = vsub.s32 %v2908, %v2910
        %v2912 = vrot.slane %v2896, %v2911
        %v2914 = vunpack.c.l.s4 1966171168
        %v2915 = vunpack.c.0.s8 %v2914
        %v2916 = vlaneseq
        %v2917 = vshrl.u32 %v2916, 7
        %v2918 = vsub.s32 %v2915, %v2917
        %v2919 = vrot.slane %v2897, %v2918
        %v2921 = vunpack.c.l.s4 1966171168
        %v2922 = vunpack.c.0.s8 %v2921
        %v2923 = vlaneseq
        %v2924 = vshrl.u32 %v2923, 7
        %v2925 = vsub.s32 %v2922, %v2924
        %v2926 = vrot.slane %v2898, %v2925
        %v2927 = vcombine.low %v2905, %v2912
        %v2928 = vcombine.low %v2919, %v2926
        %v2930 = vunpack.c.l.s4 1966171168
        %v2931 = vunpack.c.0.s8 %v2930
        %v2932 = vlaneseq
        %v2933 = vshrl.u32 %v2932, 7
        %v2934 = vsub.s32 %v2931, %v2933
        %v2935 = vrot.slane %v2927, %v2934
        %v2937 = vunpack.c.l.s4 1966171168
        %v2938 = vunpack.c.0.s8 %v2937
        %v2939 = vlaneseq
        %v2940 = vshrl.u32 %v2939, 7
        %v2941 = vsub.s32 %v2938, %v2940
        %v2942 = vrot.slane %v2928, %v2941
        %v2943 = vcombine.low %v2935, %v2942
        %v2944 = vcombine.low %v1702, %v1706
        %v2945 = vcombine.low %v1710, %v1714
        %v2946 = vcombine.low %v1718, %v1722
        %v2947 = vcombine.low %v1726, %v1730
        %v2949 = vunpack.c.l.s4 1966171168
        %v2950 = vunpack.c.0.s8 %v2949
        %v2951 = vlaneseq
        %v2952 = vshrl.u32 %v2951, 7
        %v2953 = vsub.s32 %v2950, %v2952
        %v2954 = vrot.slane %v2944, %v2953
        %v2956 = vunpack.c.l.s4 1966171168
        %v2957 = vunpack.c.0.s8 %v2956
        %v2958 = vlaneseq
        %v2959 = vshrl.u32 %v2958, 7
        %v2960 = vsub.s32 %v2957, %v2959
        %v2961 = vrot.slane %v2945, %v2960
        %v2963 = vunpack.c.l.s4 1966171168
        %v2964 = vunpack.c.0.s8 %v2963
        %v2965 = vlaneseq
        %v2966 = vshrl.u32 %v2965, 7
        %v2967 = vsub.s32 %v2964, %v2966
        %v2968 = vrot.slane %v2946, %v2967
        %v2970 = vunpack.c.l.s4 1966171168
        %v2971 = vunpack.c.0.s8 %v2970
        %v2972 = vlaneseq
        %v2973 = vshrl.u32 %v2972, 7
        %v2974 = vsub.s32 %v2971, %v2973
        %v2975 = vrot.slane %v2947, %v2974
        %v2976 = vcombine.low %v2954, %v2961
        %v2977 = vcombine.low %v2968, %v2975
        %v2979 = vunpack.c.l.s4 1966171168
        %v2980 = vunpack.c.0.s8 %v2979
        %v2981 = vlaneseq
        %v2982 = vshrl.u32 %v2981, 7
        %v2983 = vsub.s32 %v2980, %v2982
        %v2984 = vrot.slane %v2976, %v2983
        %v2986 = vunpack.c.l.s4 1966171168
        %v2987 = vunpack.c.0.s8 %v2986
        %v2988 = vlaneseq
        %v2989 = vshrl.u32 %v2988, 7
        %v2990 = vsub.s32 %v2987, %v2989
        %v2991 = vrot.slane %v2977, %v2990
        %v2992 = vcombine.low %v2984, %v2991
        %v2993 = vcombine.low %v1734, %v1738
        %v2994 = vcombine.low %v1742, %v1746
        %v2995 = vcombine.low %v1750, %v1754
        %v2996 = vcombine.low %v1758, %v1762
        %v2998 = vunpack.c.l.s4 1966171168
        %v2999 = vunpack.c.0.s8 %v2998
        %v3000 = vlaneseq
        %v3001 = vshrl.u32 %v3000, 7
        %v3002 = vsub.s32 %v2999, %v3001
        %v3003 = vrot.slane %v2993, %v3002
        %v3005 = vunpack.c.l.s4 1966171168
        %v3006 = vunpack.c.0.s8 %v3005
        %v3007 = vlaneseq
        %v3008 = vshrl.u32 %v3007, 7
        %v3009 = vsub.s32 %v3006, %v3008
        %v3010 = vrot.slane %v2994, %v3009
        %v3012 = vunpack.c.l.s4 1966171168
        %v3013 = vunpack.c.0.s8 %v3012
        %v3014 = vlaneseq
        %v3015 = vshrl.u32 %v3014, 7
        %v3016 = vsub.s32 %v3013, %v3015
        %v3017 = vrot.slane %v2995, %v3016
        %v3019 = vunpack.c.l.s4 1966171168
        %v3020 = vunpack.c.0.s8 %v3019
        %v3021 = vlaneseq
        %v3022 = vshrl.u32 %v3021, 7
        %v3023 = vsub.s32 %v3020, %v3022
        %v3024 = vrot.slane %v2996, %v3023
        %v3025 = vcombine.low %v3003, %v3010
        %v3026 = vcombine.low %v3017, %v3024
        %v3028 = vunpack.c.l.s4 1966171168
        %v3029 = vunpack.c.0.s8 %v3028
        %v3030 = vlaneseq
        %v3031 = vshrl.u32 %v3030, 7
        %v3032 = vsub.s32 %v3029, %v3031
        %v3033 = vrot.slane %v3025, %v3032
        %v3035 = vunpack.c.l.s4 1966171168
        %v3036 = vunpack.c.0.s8 %v3035
        %v3037 = vlaneseq
        %v3038 = vshrl.u32 %v3037, 7
        %v3039 = vsub.s32 %v3036, %v3038
        %v3040 = vrot.slane %v3026, %v3039
        %v3041 = vcombine.low %v3033, %v3040
        %v3042 = vcombine.low %v1766, %v1770
        %v3043 = vcombine.low %v1774, %v1778
        %v3044 = vcombine.low %v1782, %v1786
        %v3045 = vcombine.low %v1790, %v1794
        %v3047 = vunpack.c.l.s4 1966171168
        %v3048 = vunpack.c.0.s8 %v3047
        %v3049 = vlaneseq
        %v3050 = vshrl.u32 %v3049, 7
        %v3051 = vsub.s32 %v3048, %v3050
        %v3052 = vrot.slane %v3042, %v3051
        %v3054 = vunpack.c.l.s4 1966171168
        %v3055 = vunpack.c.0.s8 %v3054
        %v3056 = vlaneseq
        %v3057 = vshrl.u32 %v3056, 7
        %v3058 = vsub.s32 %v3055, %v3057
        %v3059 = vrot.slane %v3043, %v3058
        %v3061 = vunpack.c.l.s4 1966171168
        %v3062 = vunpack.c.0.s8 %v3061
        %v3063 = vlaneseq
        %v3064 = vshrl.u32 %v3063, 7
        %v3065 = vsub.s32 %v3062, %v3064
        %v3066 = vrot.slane %v3044, %v3065
        %v3068 = vunpack.c.l.s4 1966171168
        %v3069 = vunpack.c.0.s8 %v3068
        %v3070 = vlaneseq
        %v3071 = vshrl.u32 %v3070, 7
        %v3072 = vsub.s32 %v3069, %v3071
        %v3073 = vrot.slane %v3045, %v3072
        %v3074 = vcombine.low %v3052, %v3059
        %v3075 = vcombine.low %v3066, %v3073
        %v3077 = vunpack.c.l.s4 1966171168
        %v3078 = vunpack.c.0.s8 %v3077
        %v3079 = vlaneseq
        %v3080 = vshrl.u32 %v3079, 7
        %v3081 = vsub.s32 %v3078, %v3080
        %v3082 = vrot.slane %v3074, %v3081
        %v3084 = vunpack.c.l.s4 1966171168
        %v3085 = vunpack.c.0.s8 %v3084
        %v3086 = vlaneseq
        %v3087 = vshrl.u32 %v3086, 7
        %v3088 = vsub.s32 %v3085, %v3087
        %v3089 = vrot.slane %v3075, %v3088
        %v3090 = vcombine.low %v3082, %v3089
        %v3091 = vcombine.low %v1798, %v1802
        %v3092 = vcombine.low %v1806, %v1810
        %v3093 = vcombine.low %v1814, %v1818
        %v3094 = vcombine.low %v1822, %v1826
        %v3096 = vunpack.c.l.s4 1966171168
        %v3097 = vunpack.c.0.s8 %v3096
        %v3098 = vlaneseq
        %v3099 = vshrl.u32 %v3098, 7
        %v3100 = vsub.s32 %v3097, %v3099
        %v3101 = vrot.slane %v3091, %v3100
        %v3103 = vunpack.c.l.s4 1966171168
        %v3104 = vunpack.c.0.s8 %v3103
        %v3105 = vlaneseq
        %v3106 = vshrl.u32 %v3105, 7
        %v3107 = vsub.s32 %v3104, %v3106
        %v3108 = vrot.slane %v3092, %v3107
        %v3110 = vunpack.c.l.s4 1966171168
        %v3111 = vunpack.c.0.s8 %v3110
        %v3112 = vlaneseq
        %v3113 = vshrl.u32 %v3112, 7
        %v3114 = vsub.s32 %v3111, %v3113
        %v3115 = vrot.slane %v3093, %v3114
        %v3117 = vunpack.c.l.s4 1966171168
        %v3118 = vunpack.c.0.s8 %v3117
        %v3119 = vlaneseq
        %v3120 = vshrl.u32 %v3119, 7
        %v3121 = vsub.s32 %v3118, %v3120
        %v3122 = vrot.slane %v3094, %v3121
        %v3123 = vcombine.low %v3101, %v3108
        %v3124 = vcombine.low %v3115, %v3122
        %v3126 = vunpack.c.l.s4 1966171168
        %v3127 = vunpack.c.0.s8 %v3126
        %v3128 = vlaneseq
        %v3129 = vshrl.u32 %v3128, 7
        %v3130 = vsub.s32 %v3127, %v3129
        %v3131 = vrot.slane %v3123, %v3130
        %v3133 = vunpack.c.l.s4 1966171168
        %v3134 = vunpack.c.0.s8 %v3133
        %v3135 = vlaneseq
        %v3136 = vshrl.u32 %v3135, 7
        %v3137 = vsub.s32 %v3134, %v3136
        %v3138 = vrot.slane %v3124, %v3137
        %v3139 = vcombine.low %v3131, %v3138
        %v3140 = vcombine.low %v1830, %v1834
        %v3141 = vcombine.low %v1838, %v1842
        %v3142 = vcombine.low %v1846, %v1850
        %v3143 = vcombine.low %v1854, %v1858
        %v3145 = vunpack.c.l.s4 1966171168
        %v3146 = vunpack.c.0.s8 %v3145
        %v3147 = vlaneseq
        %v3148 = vshrl.u32 %v3147, 7
        %v3149 = vsub.s32 %v3146, %v3148
        %v3150 = vrot.slane %v3140, %v3149
        %v3152 = vunpack.c.l.s4 1966171168
        %v3153 = vunpack.c.0.s8 %v3152
        %v3154 = vlaneseq
        %v3155 = vshrl.u32 %v3154, 7
        %v3156 = vsub.s32 %v3153, %v3155
        %v3157 = vrot.slane %v3141, %v3156
        %v3159 = vunpack.c.l.s4 1966171168
        %v3160 = vunpack.c.0.s8 %v3159
        %v3161 = vlaneseq
        %v3162 = vshrl.u32 %v3161, 7
        %v3163 = vsub.s32 %v3160, %v3162
        %v3164 = vrot.slane %v3142, %v3163
        %v3166 = vunpack.c.l.s4 1966171168
        %v3167 = vunpack.c.0.s8 %v3166
        %v3168 = vlaneseq
        %v3169 = vshrl.u32 %v3168, 7
        %v3170 = vsub.s32 %v3167, %v3169
        %v3171 = vrot.slane %v3143, %v3170
        %v3172 = vcombine.low %v3150, %v3157
        %v3173 = vcombine.low %v3164, %v3171
        %v3175 = vunpack.c.l.s4 1966171168
        %v3176 = vunpack.c.0.s8 %v3175
        %v3177 = vlaneseq
        %v3178 = vshrl.u32 %v3177, 7
        %v3179 = vsub.s32 %v3176, %v3178
        %v3180 = vrot.slane %v3172, %v3179
        %v3182 = vunpack.c.l.s4 1966171168
        %v3183 = vunpack.c.0.s8 %v3182
        %v3184 = vlaneseq
        %v3185 = vshrl.u32 %v3184, 7
        %v3186 = vsub.s32 %v3183, %v3185
        %v3187 = vrot.slane %v3173, %v3186
        %v3188 = vcombine.low %v3180, %v3187
        %v3189 = vcombine.low %v1862, %v1866
        %v3190 = vcombine.low %v1870, %v1874
        %v3191 = vcombine.low %v1878, %v1882
        %v3192 = vcombine.low %v1886, %v1890
        %v3194 = vunpack.c.l.s4 1966171168
        %v3195 = vunpack.c.0.s8 %v3194
        %v3196 = vlaneseq
        %v3197 = vshrl.u32 %v3196, 7
        %v3198 = vsub.s32 %v3195, %v3197
        %v3199 = vrot.slane %v3189, %v3198
        %v3201 = vunpack.c.l.s4 1966171168
        %v3202 = vunpack.c.0.s8 %v3201
        %v3203 = vlaneseq
        %v3204 = vshrl.u32 %v3203, 7
        %v3205 = vsub.s32 %v3202, %v3204
        %v3206 = vrot.slane %v3190, %v3205
        %v3208 = vunpack.c.l.s4 1966171168
        %v3209 = vunpack.c.0.s8 %v3208
        %v3210 = vlaneseq
        %v3211 = vshrl.u32 %v3210, 7
        %v3212 = vsub.s32 %v3209, %v3211
        %v3213 = vrot.slane %v3191, %v3212
        %v3215 = vunpack.c.l.s4 1966171168
        %v3216 = vunpack.c.0.s8 %v3215
        %v3217 = vlaneseq
        %v3218 = vshrl.u32 %v3217, 7
        %v3219 = vsub.s32 %v3216, %v3218
        %v3220 = vrot.slane %v3192, %v3219
        %v3221 = vcombine.low %v3199, %v3206
        %v3222 = vcombine.low %v3213, %v3220
        %v3224 = vunpack.c.l.s4 1966171168
        %v3225 = vunpack.c.0.s8 %v3224
        %v3226 = vlaneseq
        %v3227 = vshrl.u32 %v3226, 7
        %v3228 = vsub.s32 %v3225, %v3227
        %v3229 = vrot.slane %v3221, %v3228
        %v3231 = vunpack.c.l.s4 1966171168
        %v3232 = vunpack.c.0.s8 %v3231
        %v3233 = vlaneseq
        %v3234 = vshrl.u32 %v3233, 7
        %v3235 = vsub.s32 %v3232, %v3234
        %v3236 = vrot.slane %v3222, %v3235
        %v3237 = vcombine.low %v3229, %v3236
        %v3238 = vcombine.low %v1894, %v1898
        %v3239 = vcombine.low %v1902, %v1906
        %v3240 = vcombine.low %v1910, %v1914
        %v3241 = vcombine.low %v1918, %v1922
        %v3243 = vunpack.c.l.s4 1966171168
        %v3244 = vunpack.c.0.s8 %v3243
        %v3245 = vlaneseq
        %v3246 = vshrl.u32 %v3245, 7
        %v3247 = vsub.s32 %v3244, %v3246
        %v3248 = vrot.slane %v3238, %v3247
        %v3250 = vunpack.c.l.s4 1966171168
        %v3251 = vunpack.c.0.s8 %v3250
        %v3252 = vlaneseq
        %v3253 = vshrl.u32 %v3252, 7
        %v3254 = vsub.s32 %v3251, %v3253
        %v3255 = vrot.slane %v3239, %v3254
        %v3257 = vunpack.c.l.s4 1966171168
        %v3258 = vunpack.c.0.s8 %v3257
        %v3259 = vlaneseq
        %v3260 = vshrl.u32 %v3259, 7
        %v3261 = vsub.s32 %v3258, %v3260
        %v3262 = vrot.slane %v3240, %v3261
        %v3264 = vunpack.c.l.s4 1966171168
        %v3265 = vunpack.c.0.s8 %v3264
        %v3266 = vlaneseq
        %v3267 = vshrl.u32 %v3266, 7
        %v3268 = vsub.s32 %v3265, %v3267
        %v3269 = vrot.slane %v3241, %v3268
        %v3270 = vcombine.low %v3248, %v3255
        %v3271 = vcombine.low %v3262, %v3269
        %v3273 = vunpack.c.l.s4 1966171168
        %v3274 = vunpack.c.0.s8 %v3273
        %v3275 = vlaneseq
        %v3276 = vshrl.u32 %v3275, 7
        %v3277 = vsub.s32 %v3274, %v3276
        %v3278 = vrot.slane %v3270, %v3277
        %v3280 = vunpack.c.l.s4 1966171168
        %v3281 = vunpack.c.0.s8 %v3280
        %v3282 = vlaneseq
        %v3283 = vshrl.u32 %v3282, 7
        %v3284 = vsub.s32 %v3281, %v3283
        %v3285 = vrot.slane %v3271, %v3284
        %v3286 = vcombine.low %v3278, %v3285
        %v3287 = vcombine.low %v1926, %v1930
        %v3288 = vcombine.low %v1934, %v1938
        %v3289 = vcombine.low %v1942, %v1946
        %v3290 = vcombine.low %v1950, %v1954
        %v3292 = vunpack.c.l.s4 1966171168
        %v3293 = vunpack.c.0.s8 %v3292
        %v3294 = vlaneseq
        %v3295 = vshrl.u32 %v3294, 7
        %v3296 = vsub.s32 %v3293, %v3295
        %v3297 = vrot.slane %v3287, %v3296
        %v3299 = vunpack.c.l.s4 1966171168
        %v3300 = vunpack.c.0.s8 %v3299
        %v3301 = vlaneseq
        %v3302 = vshrl.u32 %v3301, 7
        %v3303 = vsub.s32 %v3300, %v3302
        %v3304 = vrot.slane %v3288, %v3303
        %v3306 = vunpack.c.l.s4 1966171168
        %v3307 = vunpack.c.0.s8 %v3306
        %v3308 = vlaneseq
        %v3309 = vshrl.u32 %v3308, 7
        %v3310 = vsub.s32 %v3307, %v3309
        %v3311 = vrot.slane %v3289, %v3310
        %v3313 = vunpack.c.l.s4 1966171168
        %v3314 = vunpack.c.0.s8 %v3313
        %v3315 = vlaneseq
        %v3316 = vshrl.u32 %v3315, 7
        %v3317 = vsub.s32 %v3314, %v3316
        %v3318 = vrot.slane %v3290, %v3317
        %v3319 = vcombine.low %v3297, %v3304
        %v3320 = vcombine.low %v3311, %v3318
        %v3322 = vunpack.c.l.s4 1966171168
        %v3323 = vunpack.c.0.s8 %v3322
        %v3324 = vlaneseq
        %v3325 = vshrl.u32 %v3324, 7
        %v3326 = vsub.s32 %v3323, %v3325
        %v3327 = vrot.slane %v3319, %v3326
        %v3329 = vunpack.c.l.s4 1966171168
        %v3330 = vunpack.c.0.s8 %v3329
        %v3331 = vlaneseq
        %v3332 = vshrl.u32 %v3331, 7
        %v3333 = vsub.s32 %v3330, %v3332
        %v3334 = vrot.slane %v3320, %v3333
        %v3335 = vcombine.low %v3327, %v3334
        %v3336 = vcombine.low %v1958, %v1962
        %v3337 = vcombine.low %v1966, %v1970
        %v3338 = vcombine.low %v1974, %v1978
        %v3339 = vcombine.low %v1982, %v1986
        %v3341 = vunpack.c.l.s4 1966171168
        %v3342 = vunpack.c.0.s8 %v3341
        %v3343 = vlaneseq
        %v3344 = vshrl.u32 %v3343, 7
        %v3345 = vsub.s32 %v3342, %v3344
        %v3346 = vrot.slane %v3336, %v3345
        %v3348 = vunpack.c.l.s4 1966171168
        %v3349 = vunpack.c.0.s8 %v3348
        %v3350 = vlaneseq
        %v3351 = vshrl.u32 %v3350, 7
        %v3352 = vsub.s32 %v3349, %v3351
        %v3353 = vrot.slane %v3337, %v3352
        %v3355 = vunpack.c.l.s4 1966171168
        %v3356 = vunpack.c.0.s8 %v3355
        %v3357 = vlaneseq
        %v3358 = vshrl.u32 %v3357, 7
        %v3359 = vsub.s32 %v3356, %v3358
        %v3360 = vrot.slane %v3338, %v3359
        %v3362 = vunpack.c.l.s4 1966171168
        %v3363 = vunpack.c.0.s8 %v3362
        %v3364 = vlaneseq
        %v3365 = vshrl.u32 %v3364, 7
        %v3366 = vsub.s32 %v3363, %v3365
        %v3367 = vrot.slane %v3339, %v3366
        %v3368 = vcombine.low %v3346, %v3353
        %v3369 = vcombine.low %v3360, %v3367
        %v3371 = vunpack.c.l.s4 1966171168
        %v3372 = vunpack.c.0.s8 %v3371
        %v3373 = vlaneseq
        %v3374 = vshrl.u32 %v3373, 7
        %v3375 = vsub.s32 %v3372, %v3374
        %v3376 = vrot.slane %v3368, %v3375
        %v3378 = vunpack.c.l.s4 1966171168
        %v3379 = vunpack.c.0.s8 %v3378
        %v3380 = vlaneseq
        %v3381 = vshrl.u32 %v3380, 7
        %v3382 = vsub.s32 %v3379, %v3381
        %v3383 = vrot.slane %v3369, %v3382
        %v3384 = vcombine.low %v3376, %v3383
        %v3385 = vcombine.low %v1990, %v1994
        %v3386 = vcombine.low %v1998, %v2002
        %v3387 = vcombine.low %v2006, %v2010
        %v3388 = vcombine.low %v2014, %v2018
        %v3390 = vunpack.c.l.s4 1966171168
        %v3391 = vunpack.c.0.s8 %v3390
        %v3392 = vlaneseq
        %v3393 = vshrl.u32 %v3392, 7
        %v3394 = vsub.s32 %v3391, %v3393
        %v3395 = vrot.slane %v3385, %v3394
        %v3397 = vunpack.c.l.s4 1966171168
        %v3398 = vunpack.c.0.s8 %v3397
        %v3399 = vlaneseq
        %v3400 = vshrl.u32 %v3399, 7
        %v3401 = vsub.s32 %v3398, %v3400
        %v3402 = vrot.slane %v3386, %v3401
        %v3404 = vunpack.c.l.s4 1966171168
        %v3405 = vunpack.c.0.s8 %v3404
        %v3406 = vlaneseq
        %v3407 = vshrl.u32 %v3406, 7
        %v3408 = vsub.s32 %v3405, %v3407
        %v3409 = vrot.slane %v3387, %v3408
        %v3411 = vunpack.c.l.s4 1966171168
        %v3412 = vunpack.c.0.s8 %v3411
        %v3413 = vlaneseq
        %v3414 = vshrl.u32 %v3413, 7
        %v3415 = vsub.s32 %v3412, %v3414
        %v3416 = vrot.slane %v3388, %v3415
        %v3417 = vcombine.low %v3395, %v3402
        %v3418 = vcombine.low %v3409, %v3416
        %v3420 = vunpack.c.l.s4 1966171168
        %v3421 = vunpack.c.0.s8 %v3420
        %v3422 = vlaneseq
        %v3423 = vshrl.u32 %v3422, 7
        %v3424 = vsub.s32 %v3421, %v3423
        %v3425 = vrot.slane %v3417, %v3424
        %v3427 = vunpack.c.l.s4 1966171168
        %v3428 = vunpack.c.0.s8 %v3427
        %v3429 = vlaneseq
        %v3430 = vshrl.u32 %v3429, 7
        %v3431 = vsub.s32 %v3428, %v3430
        %v3432 = vrot.slane %v3418, %v3431
        %v3433 = vcombine.low %v3425, %v3432
        %v3434 = vcombine.low %v2022, %v2026
        %v3435 = vcombine.low %v2030, %v2034
        %v3436 = vcombine.low %v2038, %v2042
        %v3437 = vcombine.low %v2046, %v2050
        %v3439 = vunpack.c.l.s4 1966171168
        %v3440 = vunpack.c.0.s8 %v3439
        %v3441 = vlaneseq
        %v3442 = vshrl.u32 %v3441, 7
        %v3443 = vsub.s32 %v3440, %v3442
        %v3444 = vrot.slane %v3434, %v3443
        %v3446 = vunpack.c.l.s4 1966171168
        %v3447 = vunpack.c.0.s8 %v3446
        %v3448 = vlaneseq
        %v3449 = vshrl.u32 %v3448, 7
        %v3450 = vsub.s32 %v3447, %v3449
        %v3451 = vrot.slane %v3435, %v3450
        %v3453 = vunpack.c.l.s4 1966171168
        %v3454 = vunpack.c.0.s8 %v3453
        %v3455 = vlaneseq
        %v3456 = vshrl.u32 %v3455, 7
        %v3457 = vsub.s32 %v3454, %v3456
        %v3458 = vrot.slane %v3436, %v3457
        %v3460 = vunpack.c.l.s4 1966171168
        %v3461 = vunpack.c.0.s8 %v3460
        %v3462 = vlaneseq
        %v3463 = vshrl.u32 %v3462, 7
        %v3464 = vsub.s32 %v3461, %v3463
        %v3465 = vrot.slane %v3437, %v3464
        %v3466 = vcombine.low %v3444, %v3451
        %v3467 = vcombine.low %v3458, %v3465
        %v3469 = vunpack.c.l.s4 1966171168
        %v3470 = vunpack.c.0.s8 %v3469
        %v3471 = vlaneseq
        %v3472 = vshrl.u32 %v3471, 7
        %v3473 = vsub.s32 %v3470, %v3472
        %v3474 = vrot.slane %v3466, %v3473
        %v3476 = vunpack.c.l.s4 1966171168
        %v3477 = vunpack.c.0.s8 %v3476
        %v3478 = vlaneseq
        %v3479 = vshrl.u32 %v3478, 7
        %v3480 = vsub.s32 %v3477, %v3479
        %v3481 = vrot.slane %v3467, %v3480
        %v3482 = vcombine.low %v3474, %v3481
        %v3483 = vcombine.low %v2054, %v2058
        %v3484 = vcombine.low %v2062, %v2066
        %v3485 = vcombine.low %v2070, %v2074
        %v3486 = vcombine.low %v2078, %v2082
        %v3488 = vunpack.c.l.s4 1966171168
        %v3489 = vunpack.c.0.s8 %v3488
        %v3490 = vlaneseq
        %v3491 = vshrl.u32 %v3490, 7
        %v3492 = vsub.s32 %v3489, %v3491
        %v3493 = vrot.slane %v3483, %v3492
        %v3495 = vunpack.c.l.s4 1966171168
        %v3496 = vunpack.c.0.s8 %v3495
        %v3497 = vlaneseq
        %v3498 = vshrl.u32 %v3497, 7
        %v3499 = vsub.s32 %v3496, %v3498
        %v3500 = vrot.slane %v3484, %v3499
        %v3502 = vunpack.c.l.s4 1966171168
        %v3503 = vunpack.c.0.s8 %v3502
        %v3504 = vlaneseq
        %v3505 = vshrl.u32 %v3504, 7
        %v3506 = vsub.s32 %v3503, %v3505
        %v3507 = vrot.slane %v3485, %v3506
        %v3509 = vunpack.c.l.s4 1966171168
        %v3510 = vunpack.c.0.s8 %v3509
        %v3511 = vlaneseq
        %v3512 = vshrl.u32 %v3511, 7
        %v3513 = vsub.s32 %v3510, %v3512
        %v3514 = vrot.slane %v3486, %v3513
        %v3515 = vcombine.low %v3493, %v3500
        %v3516 = vcombine.low %v3507, %v3514
        %v3518 = vunpack.c.l.s4 1966171168
        %v3519 = vunpack.c.0.s8 %v3518
        %v3520 = vlaneseq
        %v3521 = vshrl.u32 %v3520, 7
        %v3522 = vsub.s32 %v3519, %v3521
        %v3523 = vrot.slane %v3515, %v3522
        %v3525 = vunpack.c.l.s4 1966171168
        %v3526 = vunpack.c.0.s8 %v3525
        %v3527 = vlaneseq
        %v3528 = vshrl.u32 %v3527, 7
        %v3529 = vsub.s32 %v3526, %v3528
        %v3530 = vrot.slane %v3516, %v3529
        %v3531 = vcombine.low %v3523, %v3530
        %v3532 = vcombine.low %v2086, %v2090
        %v3533 = vcombine.low %v2094, %v2098
        %v3534 = vcombine.low %v2102, %v2106
        %v3535 = vcombine.low %v2110, %v2114
        %v3537 = vunpack.c.l.s4 1966171168
        %v3538 = vunpack.c.0.s8 %v3537
        %v3539 = vlaneseq
        %v3540 = vshrl.u32 %v3539, 7
        %v3541 = vsub.s32 %v3538, %v3540
        %v3542 = vrot.slane %v3532, %v3541
        %v3544 = vunpack.c.l.s4 1966171168
        %v3545 = vunpack.c.0.s8 %v3544
        %v3546 = vlaneseq
        %v3547 = vshrl.u32 %v3546, 7
        %v3548 = vsub.s32 %v3545, %v3547
        %v3549 = vrot.slane %v3533, %v3548
        %v3551 = vunpack.c.l.s4 1966171168
        %v3552 = vunpack.c.0.s8 %v3551
        %v3553 = vlaneseq
        %v3554 = vshrl.u32 %v3553, 7
        %v3555 = vsub.s32 %v3552, %v3554
        %v3556 = vrot.slane %v3534, %v3555
        %v3558 = vunpack.c.l.s4 1966171168
        %v3559 = vunpack.c.0.s8 %v3558
        %v3560 = vlaneseq
        %v3561 = vshrl.u32 %v3560, 7
        %v3562 = vsub.s32 %v3559, %v3561
        %v3563 = vrot.slane %v3535, %v3562
        %v3564 = vcombine.low %v3542, %v3549
        %v3565 = vcombine.low %v3556, %v3563
        %v3567 = vunpack.c.l.s4 1966171168
        %v3568 = vunpack.c.0.s8 %v3567
        %v3569 = vlaneseq
        %v3570 = vshrl.u32 %v3569, 7
        %v3571 = vsub.s32 %v3568, %v3570
        %v3572 = vrot.slane %v3564, %v3571
        %v3574 = vunpack.c.l.s4 1966171168
        %v3575 = vunpack.c.0.s8 %v3574
        %v3576 = vlaneseq
        %v3577 = vshrl.u32 %v3576, 7
        %v3578 = vsub.s32 %v3575, %v3577
        %v3579 = vrot.slane %v3565, %v3578
        %v3580 = vcombine.low %v3572, %v3579
        %v3581 = vcombine.low %v2118, %v2122
        %v3582 = vcombine.low %v2126, %v2130
        %v3583 = vcombine.low %v2134, %v2138
        %v3584 = vcombine.low %v2142, %v2146
        %v3586 = vunpack.c.l.s4 1966171168
        %v3587 = vunpack.c.0.s8 %v3586
        %v3588 = vlaneseq
        %v3589 = vshrl.u32 %v3588, 7
        %v3590 = vsub.s32 %v3587, %v3589
        %v3591 = vrot.slane %v3581, %v3590
        %v3593 = vunpack.c.l.s4 1966171168
        %v3594 = vunpack.c.0.s8 %v3593
        %v3595 = vlaneseq
        %v3596 = vshrl.u32 %v3595, 7
        %v3597 = vsub.s32 %v3594, %v3596
        %v3598 = vrot.slane %v3582, %v3597
        %v3600 = vunpack.c.l.s4 1966171168
        %v3601 = vunpack.c.0.s8 %v3600
        %v3602 = vlaneseq
        %v3603 = vshrl.u32 %v3602, 7
        %v3604 = vsub.s32 %v3601, %v3603
        %v3605 = vrot.slane %v3583, %v3604
        %v3607 = vunpack.c.l.s4 1966171168
        %v3608 = vunpack.c.0.s8 %v3607
        %v3609 = vlaneseq
        %v3610 = vshrl.u32 %v3609, 7
        %v3611 = vsub.s32 %v3608, %v3610
        %v3612 = vrot.slane %v3584, %v3611
        %v3613 = vcombine.low %v3591, %v3598
        %v3614 = vcombine.low %v3605, %v3612
        %v3616 = vunpack.c.l.s4 1966171168
        %v3617 = vunpack.c.0.s8 %v3616
        %v3618 = vlaneseq
        %v3619 = vshrl.u32 %v3618, 7
        %v3620 = vsub.s32 %v3617, %v3619
        %v3621 = vrot.slane %v3613, %v3620
        %v3623 = vunpack.c.l.s4 1966171168
        %v3624 = vunpack.c.0.s8 %v3623
        %v3625 = vlaneseq
        %v3626 = vshrl.u32 %v3625, 7
        %v3627 = vsub.s32 %v3624, %v3626
        %v3628 = vrot.slane %v3614, %v3627
        %v3629 = vcombine.low %v3621, %v3628
        %v3630 = vcombine.low %v2150, %v2154
        %v3631 = vcombine.low %v2158, %v2162
        %v3632 = vcombine.low %v2166, %v2170
        %v3633 = vcombine.low %v2174, %v2178
        %v3635 = vunpack.c.l.s4 1966171168
        %v3636 = vunpack.c.0.s8 %v3635
        %v3637 = vlaneseq
        %v3638 = vshrl.u32 %v3637, 7
        %v3639 = vsub.s32 %v3636, %v3638
        %v3640 = vrot.slane %v3630, %v3639
        %v3642 = vunpack.c.l.s4 1966171168
        %v3643 = vunpack.c.0.s8 %v3642
        %v3644 = vlaneseq
        %v3645 = vshrl.u32 %v3644, 7
        %v3646 = vsub.s32 %v3643, %v3645
        %v3647 = vrot.slane %v3631, %v3646
        %v3649 = vunpack.c.l.s4 1966171168
        %v3650 = vunpack.c.0.s8 %v3649
        %v3651 = vlaneseq
        %v3652 = vshrl.u32 %v3651, 7
        %v3653 = vsub.s32 %v3650, %v3652
        %v3654 = vrot.slane %v3632, %v3653
        %v3656 = vunpack.c.l.s4 1966171168
        %v3657 = vunpack.c.0.s8 %v3656
        %v3658 = vlaneseq
        %v3659 = vshrl.u32 %v3658, 7
        %v3660 = vsub.s32 %v3657, %v3659
        %v3661 = vrot.slane %v3633, %v3660
        %v3662 = vcombine.low %v3640, %v3647
        %v3663 = vcombine.low %v3654, %v3661
        %v3665 = vunpack.c.l.s4 1966171168
        %v3666 = vunpack.c.0.s8 %v3665
        %v3667 = vlaneseq
        %v3668 = vshrl.u32 %v3667, 7
        %v3669 = vsub.s32 %v3666, %v3668
        %v3670 = vrot.slane %v3662, %v3669
        %v3672 = vunpack.c.l.s4 1966171168
        %v3673 = vunpack.c.0.s8 %v3672
        %v3674 = vlaneseq
        %v3675 = vshrl.u32 %v3674, 7
        %v3676 = vsub.s32 %v3673, %v3675
        %v3677 = vrot.slane %v3663, %v3676
        %v3678 = vcombine.low %v3670, %v3677
        %v3679 = vcombine.low %v2182, %v2186
        %v3680 = vcombine.low %v2190, %v2194
        %v3681 = vcombine.low %v2198, %v2202
        %v3682 = vcombine.low %v2206, %v2210
        %v3684 = vunpack.c.l.s4 1966171168
        %v3685 = vunpack.c.0.s8 %v3684
        %v3686 = vlaneseq
        %v3687 = vshrl.u32 %v3686, 7
        %v3688 = vsub.s32 %v3685, %v3687
        %v3689 = vrot.slane %v3679, %v3688
        %v3691 = vunpack.c.l.s4 1966171168
        %v3692 = vunpack.c.0.s8 %v3691
        %v3693 = vlaneseq
        %v3694 = vshrl.u32 %v3693, 7
        %v3695 = vsub.s32 %v3692, %v3694
        %v3696 = vrot.slane %v3680, %v3695
        %v3698 = vunpack.c.l.s4 1966171168
        %v3699 = vunpack.c.0.s8 %v3698
        %v3700 = vlaneseq
        %v3701 = vshrl.u32 %v3700, 7
        %v3702 = vsub.s32 %v3699, %v3701
        %v3703 = vrot.slane %v3681, %v3702
        %v3705 = vunpack.c.l.s4 1966171168
        %v3706 = vunpack.c.0.s8 %v3705
        %v3707 = vlaneseq
        %v3708 = vshrl.u32 %v3707, 7
        %v3709 = vsub.s32 %v3706, %v3708
        %v3710 = vrot.slane %v3682, %v3709
        %v3711 = vcombine.low %v3689, %v3696
        %v3712 = vcombine.low %v3703, %v3710
        %v3714 = vunpack.c.l.s4 1966171168
        %v3715 = vunpack.c.0.s8 %v3714
        %v3716 = vlaneseq
        %v3717 = vshrl.u32 %v3716, 7
        %v3718 = vsub.s32 %v3715, %v3717
        %v3719 = vrot.slane %v3711, %v3718
        %v3721 = vunpack.c.l.s4 1966171168
        %v3722 = vunpack.c.0.s8 %v3721
        %v3723 = vlaneseq
        %v3724 = vshrl.u32 %v3723, 7
        %v3725 = vsub.s32 %v3722, %v3724
        %v3726 = vrot.slane %v3712, %v3725
        %v3727 = vcombine.low %v3719, %v3726
        %v3728 = vcombine.low %v2214, %v2218
        %v3729 = vcombine.low %v2222, %v2226
        %v3730 = vcombine.low %v2230, %v2234
        %v3731 = vcombine.low %v2238, %v2242
        %v3733 = vunpack.c.l.s4 1966171168
        %v3734 = vunpack.c.0.s8 %v3733
        %v3735 = vlaneseq
        %v3736 = vshrl.u32 %v3735, 7
        %v3737 = vsub.s32 %v3734, %v3736
        %v3738 = vrot.slane %v3728, %v3737
        %v3740 = vunpack.c.l.s4 1966171168
        %v3741 = vunpack.c.0.s8 %v3740
        %v3742 = vlaneseq
        %v3743 = vshrl.u32 %v3742, 7
        %v3744 = vsub.s32 %v3741, %v3743
        %v3745 = vrot.slane %v3729, %v3744
        %v3747 = vunpack.c.l.s4 1966171168
        %v3748 = vunpack.c.0.s8 %v3747
        %v3749 = vlaneseq
        %v3750 = vshrl.u32 %v3749, 7
        %v3751 = vsub.s32 %v3748, %v3750
        %v3752 = vrot.slane %v3730, %v3751
        %v3754 = vunpack.c.l.s4 1966171168
        %v3755 = vunpack.c.0.s8 %v3754
        %v3756 = vlaneseq
        %v3757 = vshrl.u32 %v3756, 7
        %v3758 = vsub.s32 %v3755, %v3757
        %v3759 = vrot.slane %v3731, %v3758
        %v3760 = vcombine.low %v3738, %v3745
        %v3761 = vcombine.low %v3752, %v3759
        %v3763 = vunpack.c.l.s4 1966171168
        %v3764 = vunpack.c.0.s8 %v3763
        %v3765 = vlaneseq
        %v3766 = vshrl.u32 %v3765, 7
        %v3767 = vsub.s32 %v3764, %v3766
        %v3768 = vrot.slane %v3760, %v3767
        %v3770 = vunpack.c.l.s4 1966171168
        %v3771 = vunpack.c.0.s8 %v3770
        %v3772 = vlaneseq
        %v3773 = vshrl.u32 %v3772, 7
        %v3774 = vsub.s32 %v3771, %v3773
        %v3775 = vrot.slane %v3761, %v3774
        %v3776 = vcombine.low %v3768, %v3775
        %v3777 = vcombine.low %v2246, %v2250
        %v3778 = vcombine.low %v2254, %v2258
        %v3779 = vcombine.low %v2262, %v2266
        %v3780 = vcombine.low %v2270, %v2274
        %v3782 = vunpack.c.l.s4 1966171168
        %v3783 = vunpack.c.0.s8 %v3782
        %v3784 = vlaneseq
        %v3785 = vshrl.u32 %v3784, 7
        %v3786 = vsub.s32 %v3783, %v3785
        %v3787 = vrot.slane %v3777, %v3786
        %v3789 = vunpack.c.l.s4 1966171168
        %v3790 = vunpack.c.0.s8 %v3789
        %v3791 = vlaneseq
        %v3792 = vshrl.u32 %v3791, 7
        %v3793 = vsub.s32 %v3790, %v3792
        %v3794 = vrot.slane %v3778, %v3793
        %v3796 = vunpack.c.l.s4 1966171168
        %v3797 = vunpack.c.0.s8 %v3796
        %v3798 = vlaneseq
        %v3799 = vshrl.u32 %v3798, 7
        %v3800 = vsub.s32 %v3797, %v3799
        %v3801 = vrot.slane %v3779, %v3800
        %v3803 = vunpack.c.l.s4 1966171168
        %v3804 = vunpack.c.0.s8 %v3803
        %v3805 = vlaneseq
        %v3806 = vshrl.u32 %v3805, 7
        %v3807 = vsub.s32 %v3804, %v3806
        %v3808 = vrot.slane %v3780, %v3807
        %v3809 = vcombine.low %v3787, %v3794
        %v3810 = vcombine.low %v3801, %v3808
        %v3812 = vunpack.c.l.s4 1966171168
        %v3813 = vunpack.c.0.s8 %v3812
        %v3814 = vlaneseq
        %v3815 = vshrl.u32 %v3814, 7
        %v3816 = vsub.s32 %v3813, %v3815
        %v3817 = vrot.slane %v3809, %v3816
        %v3819 = vunpack.c.l.s4 1966171168
        %v3820 = vunpack.c.0.s8 %v3819
        %v3821 = vlaneseq
        %v3822 = vshrl.u32 %v3821, 7
        %v3823 = vsub.s32 %v3820, %v3822
        %v3824 = vrot.slane %v3810, %v3823
        %v3825 = vcombine.low %v3817, %v3824
        %v3826 = vcombine.low %v2278, %v2282
        %v3827 = vcombine.low %v2286, %v2290
        %v3828 = vcombine.low %v2294, %v2298
        %v3829 = vcombine.low %v2302, %v2306
        %v3831 = vunpack.c.l.s4 1966171168
        %v3832 = vunpack.c.0.s8 %v3831
        %v3833 = vlaneseq
        %v3834 = vshrl.u32 %v3833, 7
        %v3835 = vsub.s32 %v3832, %v3834
        %v3836 = vrot.slane %v3826, %v3835
        %v3838 = vunpack.c.l.s4 1966171168
        %v3839 = vunpack.c.0.s8 %v3838
        %v3840 = vlaneseq
        %v3841 = vshrl.u32 %v3840, 7
        %v3842 = vsub.s32 %v3839, %v3841
        %v3843 = vrot.slane %v3827, %v3842
        %v3845 = vunpack.c.l.s4 1966171168
        %v3846 = vunpack.c.0.s8 %v3845
        %v3847 = vlaneseq
        %v3848 = vshrl.u32 %v3847, 7
        %v3849 = vsub.s32 %v3846, %v3848
        %v3850 = vrot.slane %v3828, %v3849
        %v3852 = vunpack.c.l.s4 1966171168
        %v3853 = vunpack.c.0.s8 %v3852
        %v3854 = vlaneseq
        %v3855 = vshrl.u32 %v3854, 7
        %v3856 = vsub.s32 %v3853, %v3855
        %v3857 = vrot.slane %v3829, %v3856
        %v3858 = vcombine.low %v3836, %v3843
        %v3859 = vcombine.low %v3850, %v3857
        %v3861 = vunpack.c.l.s4 1966171168
        %v3862 = vunpack.c.0.s8 %v3861
        %v3863 = vlaneseq
        %v3864 = vshrl.u32 %v3863, 7
        %v3865 = vsub.s32 %v3862, %v3864
        %v3866 = vrot.slane %v3858, %v3865
        %v3868 = vunpack.c.l.s4 1966171168
        %v3869 = vunpack.c.0.s8 %v3868
        %v3870 = vlaneseq
        %v3871 = vshrl.u32 %v3870, 7
        %v3872 = vsub.s32 %v3869, %v3871
        %v3873 = vrot.slane %v3859, %v3872
        %v3874 = vcombine.low %v3866, %v3873
        %3875 = vset.pattern.permute.xlu0 0
        %3876 = vperm.xlu0 %3875, %v2355
        %v3877 = vpop.permute.xlu0 %3876
        %3878 = vset.pattern.permute.xlu0 0
        %3879 = vperm.xlu0 %3878, %v2404
        %v3880 = vpop.permute.xlu0 %3879
        %3881 = vset.pattern.permute.xlu0 0
        %3882 = vperm.xlu0 %3881, %v2453
        %v3883 = vpop.permute.xlu0 %3882
        %3884 = vset.pattern.permute.xlu0 0
        %3885 = vperm.xlu0 %3884, %v2502
        %v3886 = vpop.permute.xlu0 %3885
        %3887 = vset.pattern.permute.xlu0 0
        %3888 = vperm.xlu0 %3887, %v2551
        %v3889 = vpop.permute.xlu0 %3888
        %3890 = vset.pattern.permute.xlu0 0
        %3891 = vperm.xlu0 %3890, %v2600
        %v3892 = vpop.permute.xlu0 %3891
        %3893 = vset.pattern.permute.xlu0 0
        %3894 = vperm.xlu0 %3893, %v2649
        %v3895 = vpop.permute.xlu0 %3894
        %3896 = vset.pattern.permute.xlu0 0
        %3897 = vperm.xlu0 %3896, %v2698
        %v3898 = vpop.permute.xlu0 %3897
        %3899 = vset.pattern.permute.xlu0 0
        %3900 = vperm.xlu0 %3899, %v2747
        %v3901 = vpop.permute.xlu0 %3900
        %3902 = vset.pattern.permute.xlu0 0
        %3903 = vperm.xlu0 %3902, %v2796
        %v3904 = vpop.permute.xlu0 %3903
        %3905 = vset.pattern.permute.xlu0 0
        %3906 = vperm.xlu0 %3905, %v2845
        %v3907 = vpop.permute.xlu0 %3906
        %3908 = vset.pattern.permute.xlu0 0
        %3909 = vperm.xlu0 %3908, %v2894
        %v3910 = vpop.permute.xlu0 %3909
        %3911 = vset.pattern.permute.xlu0 0
        %3912 = vperm.xlu0 %3911, %v2943
        %v3913 = vpop.permute.xlu0 %3912
        %3914 = vset.pattern.permute.xlu0 0
        %3915 = vperm.xlu0 %3914, %v2992
        %v3916 = vpop.permute.xlu0 %3915
        %3917 = vset.pattern.permute.xlu0 0
        %3918 = vperm.xlu0 %3917, %v3041
        %v3919 = vpop.permute.xlu0 %3918
        %3920 = vset.pattern.permute.xlu0 0
        %3921 = vperm.xlu0 %3920, %v3090
        %v3922 = vpop.permute.xlu0 %3921
        %3923 = vset.pattern.permute.xlu0 0
        %3924 = vperm.xlu0 %3923, %v3139
        %v3925 = vpop.permute.xlu0 %3924
        %3926 = vset.pattern.permute.xlu0 0
        %3927 = vperm.xlu0 %3926, %v3188
        %v3928 = vpop.permute.xlu0 %3927
        %3929 = vset.pattern.permute.xlu0 0
        %3930 = vperm.xlu0 %3929, %v3237
        %v3931 = vpop.permute.xlu0 %3930
        %3932 = vset.pattern.permute.xlu0 0
        %3933 = vperm.xlu0 %3932, %v3286
        %v3934 = vpop.permute.xlu0 %3933
        %3935 = vset.pattern.permute.xlu0 0
        %3936 = vperm.xlu0 %3935, %v3335
        %v3937 = vpop.permute.xlu0 %3936
        %3938 = vset.pattern.permute.xlu0 0
        %3939 = vperm.xlu0 %3938, %v3384
        %v3940 = vpop.permute.xlu0 %3939
        %3941 = vset.pattern.permute.xlu0 0
        %3942 = vperm.xlu0 %3941, %v3433
        %v3943 = vpop.permute.xlu0 %3942
        %3944 = vset.pattern.permute.xlu0 0
        %3945 = vperm.xlu0 %3944, %v3482
        %v3946 = vpop.permute.xlu0 %3945
        %3947 = vset.pattern.permute.xlu0 0
        %3948 = vperm.xlu0 %3947, %v3531
        %v3949 = vpop.permute.xlu0 %3948
        %3950 = vset.pattern.permute.xlu0 0
        %3951 = vperm.xlu0 %3950, %v3580
        %v3952 = vpop.permute.xlu0 %3951
        %3953 = vset.pattern.permute.xlu0 0
        %3954 = vperm.xlu0 %3953, %v3629
        %v3955 = vpop.permute.xlu0 %3954
        %3956 = vset.pattern.permute.xlu0 0
        %3957 = vperm.xlu0 %3956, %v3678
        %v3958 = vpop.permute.xlu0 %3957
        %3959 = vset.pattern.permute.xlu0 0
        %3960 = vperm.xlu0 %3959, %v3727
        %v3961 = vpop.permute.xlu0 %3960
        %3962 = vset.pattern.permute.xlu0 0
        %3963 = vperm.xlu0 %3962, %v3776
        %v3964 = vpop.permute.xlu0 %3963
        %3965 = vset.pattern.permute.xlu0 0
        %3966 = vperm.xlu0 %3965, %v3825
        %v3967 = vpop.permute.xlu0 %3966
        %3968 = vset.pattern.permute.xlu0 0
        %3969 = vperm.xlu0 %3968, %v3874
        %v3970 = vpop.permute.xlu0 %3969
        %v3971 = vlaneseq
        %v3972 = vand.u32 %v3971, 127
        %v3973 = vlaneseq
        %v3974 = vshrl.u32 %v3973, 7
        %v3975 = vsub.s32 %v3972, %v3974
        %v3976 = vrot.slane %v3877, %v3975
        %v3977 = vadd.s32 %v3972, 4294967288
        %v3978 = vlaneseq
        %v3979 = vshrl.u32 %v3978, 7
        %v3980 = vsub.s32 %v3977, %v3979
        %v3981 = vrot.slane %v3880, %v3980
        %vm3982 = vcmask 130112
        %v3983 = vsel %vm3982, %v3981, %v3976
        %v3984 = vadd.s32 %v3972, 4294967280
        %v3985 = vlaneseq
        %v3986 = vshrl.u32 %v3985, 7
        %v3987 = vsub.s32 %v3984, %v3986
        %v3988 = vrot.slane %v3883, %v3987
        %vm3989 = vcmask 195712
        %v3990 = vsel %vm3989, %v3988, %v3983
        %v3991 = vadd.s32 %v3972, 4294967272
        %v3992 = vlaneseq
        %v3993 = vshrl.u32 %v3992, 7
        %v3994 = vsub.s32 %v3991, %v3993
        %v3995 = vrot.slane %v3886, %v3994
        %vm3996 = vcmask 261312
        %v3997 = vsel %vm3996, %v3995, %v3990
        %v3998 = vadd.s32 %v3972, 4294967264
        %v3999 = vlaneseq
        %v4000 = vshrl.u32 %v3999, 7
        %v4001 = vsub.s32 %v3998, %v4000
        %v4002 = vrot.slane %v3889, %v4001
        %vm4003 = vcmask 326912
        %v4004 = vsel %vm4003, %v4002, %v3997
        %v4005 = vadd.s32 %v3972, 4294967256
        %v4006 = vlaneseq
        %v4007 = vshrl.u32 %v4006, 7
        %v4008 = vsub.s32 %v4005, %v4007
        %v4009 = vrot.slane %v3892, %v4008
        %vm4010 = vcmask 392512
        %v4011 = vsel %vm4010, %v4009, %v4004
        %v4012 = vadd.s32 %v3972, 4294967248
        %v4013 = vlaneseq
        %v4014 = vshrl.u32 %v4013, 7
        %v4015 = vsub.s32 %v4012, %v4014
        %v4016 = vrot.slane %v3895, %v4015
        %vm4017 = vcmask 458112
        %v4018 = vsel %vm4017, %v4016, %v4011
        %v4019 = vadd.s32 %v3972, 4294967240
        %v4020 = vlaneseq
        %v4021 = vshrl.u32 %v4020, 7
        %v4022 = vsub.s32 %v4019, %v4021
        %v4023 = vrot.slane %v3898, %v4022
        %vm4024 = vcmask 523712
        %v4025 = vsel %vm4024, %v4023, %v4018
        %v4026 = vadd.s32 %v3972, 4294967232
        %v4027 = vlaneseq
        %v4028 = vshrl.u32 %v4027, 7
        %v4029 = vsub.s32 %v4026, %v4028
        %v4030 = vrot.slane %v3901, %v4029
        %vm4031 = vcmask 589312
        %v4032 = vsel %vm4031, %v4030, %v4025
        %v4033 = vadd.s32 %v3972, 4294967224
        %v4034 = vlaneseq
        %v4035 = vshrl.u32 %v4034, 7
        %v4036 = vsub.s32 %v4033, %v4035
        %v4037 = vrot.slane %v3904, %v4036
        %vm4038 = vcmask 654912
        %v4039 = vsel %vm4038, %v4037, %v4032
        %v4040 = vadd.s32 %v3972, 4294967216
        %v4041 = vlaneseq
        %v4042 = vshrl.u32 %v4041, 7
        %v4043 = vsub.s32 %v4040, %v4042
        %v4044 = vrot.slane %v3907, %v4043
        %vm4045 = vcmask 720512
        %v4046 = vsel %vm4045, %v4044, %v4039
        %v4047 = vadd.s32 %v3972, 4294967208
        %v4048 = vlaneseq
        %v4049 = vshrl.u32 %v4048, 7
        %v4050 = vsub.s32 %v4047, %v4049
        %v4051 = vrot.slane %v3910, %v4050
        %vm4052 = vcmask 786112
        %v4053 = vsel %vm4052, %v4051, %v4046
        %v4054 = vadd.s32 %v3972, 4294967200
        %v4055 = vlaneseq
        %v4056 = vshrl.u32 %v4055, 7
        %v4057 = vsub.s32 %v4054, %v4056
        %v4058 = vrot.slane %v3913, %v4057
        %vm4059 = vcmask 851712
        %v4060 = vsel %vm4059, %v4058, %v4053
        %v4061 = vadd.s32 %v3972, 4294967192
        %v4062 = vlaneseq
        %v4063 = vshrl.u32 %v4062, 7
        %v4064 = vsub.s32 %v4061, %v4063
        %v4065 = vrot.slane %v3916, %v4064
        %vm4066 = vcmask 917312
        %v4067 = vsel %vm4066, %v4065, %v4060
        %v4068 = vadd.s32 %v3972, 4294967184
        %v4069 = vlaneseq
        %v4070 = vshrl.u32 %v4069, 7
        %v4071 = vsub.s32 %v4068, %v4070
        %v4072 = vrot.slane %v3919, %v4071
        %vm4073 = vcmask 982912
        %v4074 = vsel %vm4073, %v4072, %v4067
        %v4075 = vadd.s32 %v3972, 4294967176
        %v4076 = vlaneseq
        %v4077 = vshrl.u32 %v4076, 7
        %v4078 = vsub.s32 %v4075, %v4077
        %v4079 = vrot.slane %v3922, %v4078
        %vm4080 = vcmask 1048512
        %v4081 = vsel %vm4080, %v4079, %v4074
        %v4082 = vlaneseq
        %v4083 = vshrl.u32 %v4082, 7
        %v4084 = vsub.s32 %v3972, %v4083
        %v4085 = vrot.slane %v3925, %v4084
        %v4086 = vlaneseq
        %v4087 = vshrl.u32 %v4086, 7
        %v4088 = vsub.s32 %v3977, %v4087
        %v4089 = vrot.slane %v3928, %v4088
        %v4090 = vsel %vm3982, %v4089, %v4085
        %v4091 = vlaneseq
        %v4092 = vshrl.u32 %v4091, 7
        %v4093 = vsub.s32 %v3984, %v4092
        %v4094 = vrot.slane %v3931, %v4093
        %v4095 = vsel %vm3989, %v4094, %v4090
        %v4096 = vlaneseq
        %v4097 = vshrl.u32 %v4096, 7
        %v4098 = vsub.s32 %v3991, %v4097
        %v4099 = vrot.slane %v3934, %v4098
        %v4100 = vsel %vm3996, %v4099, %v4095
        %v4101 = vlaneseq
        %v4102 = vshrl.u32 %v4101, 7
        %v4103 = vsub.s32 %v3998, %v4102
        %v4104 = vrot.slane %v3937, %v4103
        %v4105 = vsel %vm4003, %v4104, %v4100
        %v4106 = vlaneseq
        %v4107 = vshrl.u32 %v4106, 7
        %v4108 = vsub.s32 %v4005, %v4107
        %v4109 = vrot.slane %v3940, %v4108
        %v4110 = vsel %vm4010, %v4109, %v4105
        %v4111 = vlaneseq
        %v4112 = vshrl.u32 %v4111, 7
        %v4113 = vsub.s32 %v4012, %v4112
        %v4114 = vrot.slane %v3943, %v4113
        %v4115 = vsel %vm4017, %v4114, %v4110
        %v4116 = vlaneseq
        %v4117 = vshrl.u32 %v4116, 7
        %v4118 = vsub.s32 %v4019, %v4117
        %v4119 = vrot.slane %v3946, %v4118
        %v4120 = vsel %vm4024, %v4119, %v4115
        %v4121 = vlaneseq
        %v4122 = vshrl.u32 %v4121, 7
        %v4123 = vsub.s32 %v4026, %v4122
        %v4124 = vrot.slane %v3949, %v4123
        %v4125 = vsel %vm4031, %v4124, %v4120
        %v4126 = vlaneseq
        %v4127 = vshrl.u32 %v4126, 7
        %v4128 = vsub.s32 %v4033, %v4127
        %v4129 = vrot.slane %v3952, %v4128
        %v4130 = vsel %vm4038, %v4129, %v4125
        %v4131 = vlaneseq
        %v4132 = vshrl.u32 %v4131, 7
        %v4133 = vsub.s32 %v4040, %v4132
        %v4134 = vrot.slane %v3955, %v4133
        %v4135 = vsel %vm4045, %v4134, %v4130
        %v4136 = vlaneseq
        %v4137 = vshrl.u32 %v4136, 7
        %v4138 = vsub.s32 %v4047, %v4137
        %v4139 = vrot.slane %v3958, %v4138
        %v4140 = vsel %vm4052, %v4139, %v4135
        %v4141 = vlaneseq
        %v4142 = vshrl.u32 %v4141, 7
        %v4143 = vsub.s32 %v4054, %v4142
        %v4144 = vrot.slane %v3961, %v4143
        %v4145 = vsel %vm4059, %v4144, %v4140
        %v4146 = vlaneseq
        %v4147 = vshrl.u32 %v4146, 7
        %v4148 = vsub.s32 %v4061, %v4147
        %v4149 = vrot.slane %v3964, %v4148
        %v4150 = vsel %vm4066, %v4149, %v4145
        %v4151 = vlaneseq
        %v4152 = vshrl.u32 %v4151, 7
        %v4153 = vsub.s32 %v4068, %v4152
        %v4154 = vrot.slane %v3967, %v4153
        %v4155 = vsel %vm4073, %v4154, %v4150
        %v4156 = vlaneseq
        %v4157 = vshrl.u32 %v4156, 7
        %v4158 = vsub.s32 %v4075, %v4157
        %v4159 = vrot.slane %v3970, %v4158
        %v4160 = vsel %vm4080, %v4159, %v4155
        %v4161 = vcombine.low %v4081, %v4160
        %v4163 = vunpack.c.l.s4 1966171168
        %v4164 = vunpack.c.0.s8 %v4163
        %v4165 = vlaneseq
        %v4166 = vshrl.u32 %v4165, 7
        %v4167 = vsub.s32 %v4164, %v4166
        %v4168 = vrot.slane %v4161, %v4167
        %v4170 = vunpack.c.l.s4 1966171168
        %v4171 = vunpack.c.0.s8 %v4170
        %v4172 = vlaneseq
        %v4173 = vshrl.u32 %v4172, 7
        %v4174 = vsub.s32 %v4171, %v4173
        %v4175 = vrot.slane %v4168, %v4174
        %v4177 = vlaneseq
        %vm4178 = vcmp.ge.s32.totalorder %v4177, 0
        %vm4179 = vcmp.lt.s32.totalorder %v4177, 256
        %vm4180 = vmand %vm4178, %vm4179
        %4181 = vst.msk [vmem:[%s220] sm:$0x3] %vm4180, %v4175
        %s4182 = sand.u32 %s139, 1
        %s4183 = scalar_lea.sflag [#allocation4], %s4182
        %s4184 = sand.u32 %s139, 1
        %s4185 = smul.addr %s4184, 2
        %s4186 = scalar_lea.vmem [#allocation3], %s4185
        // Predicated region
        $region41: #{tpu_custom_call.1} parent=39 // pred_check
          %p4187 = pneg %p149
        $region42: #{tpu_custom_call.1} parent=39 // pred_check_branch
          %4189 = sbr.rel (%p4187) target = $region44
        $region43: #{tpu_custom_call.1} parent=39 // pred_region
          %s4190 = smul.u32 2, %s21
          %s4192 = ssub.s32 32, 32
          %4193 = vsyncadd %s4183, %s4192
          %s4194 = smul.addr %s4190, 16
          %s4195 = scalar_lea.hbm %s5, %s4194
          %s4197 = sshll.u32 %s4186, 4
          %s4198 = int_to_ptr.vmem [resolvable:$true] %s4197
          %4200 = dma.vmem_to_hbm [thread:$0]  %s4198, 32, %s4195, %s4183
        $region44: #{tpu_custom_call.1} parent=39 // pred_fallthru
          _
      $region40: #{tpu_custom_call.1} parent=5 // pred_fallthru
        _
      %p4201 = scmp.le.s32.totalorder 2, %s16
      // Predicated region
      $region45: #{tpu_custom_call.1} parent=5 // pred_check
        %p4202 = pneg %p4201
      $region46: #{tpu_custom_call.1} parent=5 // pred_check_branch
        %4204 = sbr.rel (%p4202) target = $region48
      $region47: #{tpu_custom_call.1} parent=5 // pred_region
        %s4205 = ssub.s32 %s16, 2
        // Predicated region
        $region49: #{tpu_custom_call.1} parent=47 // pred_check
          %p4206 = pneg %p155
        $region50: #{tpu_custom_call.1} parent=47 // pred_check_branch
          %4208 = sbr.rel (%p4206) target = $region52
        $region51: #{tpu_custom_call.1} parent=47 // pred_region
          %s4209 = sand.u32 %s140, 1
          %s4210 = scalar_lea.sflag [#allocation4], %s4209
          %s4211 = sand.u32 %s140, 1
          %s4212 = smul.addr %s4211, 2
          %s4213 = scalar_lea.vmem [#allocation3], %s4212
          %4214 = dma.done %s4210, 32
        $region52: #{tpu_custom_call.1} parent=47 // pred_fallthru
          _
      $region48: #{tpu_custom_call.1} parent=5 // pred_fallthru
        _
    $region6: #{tpu_custom_call.1} parent=1 // loop_footer
      %s20 = sadd.s32 1, %s16
    $region7: #{tpu_custom_call.1} parent=1 // loop_footer_branch
      %15 = sbr.rel target = $region3
    $region8: #{tpu_custom_call.1} parent=1 // loop_exit
      _
    %4215 = vsyncpa [#allocation4], 1
    %s4216 = scalar_lea.sflag [#allocation4], 1
    %4217 = vsyncpa %s4216, 1

</llo_original>
